<compile_context>
chip_gen: v7x
topology: tpu7x:2x2x1
jax: 0.10.0
libtpu: 0.0.40
codegen_flags: <defaults>
</compile_context>

<pallas_src>
import functools

import jax
import jax.numpy as jnp
from jax import lax
from jax.experimental import pallas as pl
from jax.experimental.pallas import tpu as pltpu


# ----------------------------------------------------------------------------
# Small helpers
# ----------------------------------------------------------------------------
def _round_up(n, m):
    return (n + m - 1) // m * m


def _cdiv(a, b):
    return -(-a // b)


def _lstm_vmem_bytes(tt, b_eff, hp, gx_bytes):
    """Rough per-layer VMEM residency of the recurrence pallas_call."""
    gp = 4 * hp
    return (2 * 2 * tt * b_eff * gp * gx_bytes    # gx_f + gx_b, double-buffered
            + 2 * 2 * tt * b_eff * hp * 4         # out_f + out_b, double-buffered (f32)
            + 2 * 2 * hp * gp * gx_bytes          # whh (2, Hp, Gp), double-buffered
            + 2 * 2 * b_eff * hp * 4)             # h/c carry scratch (f32)


def _choose_tile_t(T, b_eff, hp, gx_bytes, max_tile=32):
    """Pick the largest time tile that fits a per-generation VMEM budget."""
    try:
        phys = pltpu.get_tpu_info().vmem_capacity_bytes
        budget = min(32 << 20, phys // 2)         # e.g. <= 32 MiB, and <= half of v7x's 64 MiB
    except Exception:
        budget = 24 << 20
    tt = max(1, min(max_tile, T))
    while tt > 1 and _lstm_vmem_bytes(tt, b_eff, hp, gx_bytes) > budget:
        tt //= 2
    nt = _cdiv(T, tt)
    tt = _cdiv(T, nt)                             # even out blocks -> minimal time padding
    return tt, nt, nt * tt


def _vmem_limit_bytes(tt, b_eff, hp, gx_bytes):
    need = _lstm_vmem_bytes(tt, b_eff, hp, gx_bytes)
    return int(max(min(max(2 * need, 16 << 20), 48 << 20), need + (2 << 20)))


def _pack_w(w, H, Hp, in_dim, in_pad=None):
    """(4H, in_dim) PyTorch gate weights -> (in_pad, 4*Hp) gate-major lane-padded matrix
    so that  x @ result  yields gates laid out [i | f | g | o], each Hp lanes wide."""
    in_pad = in_dim if in_pad is None else in_pad
    w4 = w.astype(jnp.float32).reshape(4, H, in_dim)   # (gate, out, in)
    w4 = jnp.transpose(w4, (2, 0, 1))                  # (in, gate, out)
    w4 = jnp.pad(w4, ((0, in_pad - in_dim), (0, 0), (0, Hp - H)))
    return w4.reshape(in_pad, 4 * Hp)


def _pad_gate_bias(b, H, Hp):
    """(4H,) -> (4*Hp,) with zero pads per gate block (pads MUST be zero so that the
    padded lanes of h/c stay exactly 0 through the recurrence)."""
    return jnp.pad(b.astype(jnp.float32).reshape(4, H),
                   ((0, 0), (0, Hp - H))).reshape(4 * Hp)


# ----------------------------------------------------------------------------
# Pallas kernels
# ----------------------------------------------------------------------------
def _bilstm_kernel(gxf_ref, gxb_ref, whh_ref, outf_ref, outb_ref, h_scr, c_scr):
    """Fused bidirectional LSTM recurrence, both directions per grid step.

    grid = (nt,) over time tiles (sequential recurrence; "arbitrary").

      gxf_ref : (TT, B, 4Hp) bf16  precomputed x@W_ih.T + bias for the FORWARD chain,
                time block i (ascending time).
      gxb_ref : (TT, B, 4Hp) bf16  same for the BACKWARD chain, time block nt-1-i
                (time runs backwards across grid steps and within the tile).
      whh_ref : (2, Hp, 4Hp) bf16  hidden->gates weights (gate-major, lane-padded).
      outf_ref/outb_ref : (TT, B, Hp) f32 hidden states at the *original* time indices.
      h_scr, c_scr      : (2, B, Hp) f32 carried recurrent state [0]=fwd, [1]=bwd.
    """
    @pl.when(pl.program_id(0) == 0)
    def _():
        h_scr[...] = jnp.zeros_like(h_scr)
        c_scr[...] = jnp.zeros_like(c_scr)

    Hp = h_scr.shape[-1]
    TT = gxf_ref.shape[0]
    whh_f = whh_ref[0]          # (Hp, 4Hp) — hoisted out of the time loop
    whh_b = whh_ref[1]

    def gates(g, c):
        # PyTorch gate order: i, f, g, o — each slice is 128-lane-group aligned (Hp pad).
        i_g = jax.nn.sigmoid(g[:, 0 * Hp:1 * Hp])
        f_g = jax.nn.sigmoid(g[:, 1 * Hp:2 * Hp])
        g_g = jnp.tanh(g[:, 2 * Hp:3 * Hp])
        o_g = jax.nn.sigmoid(g[:, 3 * Hp:4 * Hp])
        c_new = f_g * c + i_g * g_g
        return o_g * jnp.tanh(c_new), c_new

    def step(j, carry):
        h_f, c_f, h_b, c_b = carry
        r = TT - 1 - j
        # Two independent chains: back-to-back small dots interleave on the MXU and
        # hide each other's fill/drain + EUP latency on single-TC chips.
        g_f = gxf_ref[j].astype(jnp.float32) + jnp.dot(
            h_f.astype(jnp.bfloat16), whh_f, preferred_element_type=jnp.float32)
        g_b = gxb_ref[r].astype(jnp.float32) + jnp.dot(
            h_b.astype(jnp.bfloat16), whh_b, preferred_element_type=jnp.float32)
        h_f, c_f = gates(g_f, c_f)
        h_b, c_b = gates(g_b, c_b)
        outf_ref[j] = h_f
        outb_ref[r] = h_b
        return (h_f, c_f, h_b, c_b)

    carry = (h_scr[0], c_scr[0], h_scr[1], c_scr[1])
    h_f, c_f, h_b, c_b = lax.fori_loop(0, TT, step, carry, unroll=True)
    h_scr[0] = h_f
    c_scr[0] = c_f
    h_scr[1] = h_b
    c_scr[1] = c_b


def _join_kernel(f_ref, b_ref, o_ref):
    """Streamed elementwise epilogue: join = fwd + bwd (lane-padded inputs, H-wide out)."""
    h = o_ref.shape[-1]
    o_ref[...] = (f_ref[...] + b_ref[...])[:, :, :h]


# ----------------------------------------------------------------------------
# Wrappers
# ----------------------------------------------------------------------------
def _bilstm_layer(gx_f, gx_b, whh, tile_t, nt, vmem_limit):
    """One bidirectional LSTM layer. gx_*: (Tp, B, 4Hp) bf16, whh: (2, Hp, 4Hp) bf16.
    Returns (out_f, out_b), each (Tp, B, Hp) f32, hiddens at original time order."""
    Tp, B, Gp = gx_f.shape
    Hp = Gp // 4
    out_sds = jax.ShapeDtypeStruct((Tp, B, Hp), jnp.float32)

    fwd_map = lambda i: (i, 0, 0)
    bwd_map = lambda i: (nt - 1 - i, 0, 0)

    return pl.pallas_call(
        _bilstm_kernel,
        out_shape=(out_sds, out_sds),
        grid_spec=pltpu.PrefetchScalarGridSpec(
            num_scalar_prefetch=0,
            grid=(nt,),
            in_specs=[
                pl.BlockSpec((tile_t, B, Gp), fwd_map),
                pl.BlockSpec((tile_t, B, Gp), bwd_map),
                # constant block index -> weights DMA'd once for the whole layer
                pl.BlockSpec((2, Hp, Gp), lambda i: (0, 0, 0)),
            ],
            out_specs=(
                pl.BlockSpec((tile_t, B, Hp), fwd_map),
                pl.BlockSpec((tile_t, B, Hp), bwd_map),
            ),
            scratch_shapes=[
                pltpu.VMEM((2, B, Hp), jnp.float32),   # h carry (fwd, bwd)
                pltpu.VMEM((2, B, Hp), jnp.float32),   # c carry (fwd, bwd)
            ],
        ),
        compiler_params=pltpu.CompilerParams(
            dimension_semantics=("arbitrary",),        # sequential recurrence
            vmem_limit_bytes=vmem_limit,
        ),
    )(gx_f, gx_b, whh)


def _join(out_f, out_b, hid_dim, tile_t, nt):
    """Tiled, double-buffered streamed add: join = fwd + bwd (last dim sliced to H)."""
    Tp, B, Hp = out_f.shape
    return pl.pallas_call(
        _join_kernel,
        out_shape=jax.ShapeDtypeStruct((Tp, B, hid_dim), jnp.float32),
        grid_spec=pltpu.PrefetchScalarGridSpec(
            num_scalar_prefetch=0,
            grid=(nt,),
            in_specs=[pl.BlockSpec((tile_t, B, Hp), lambda i: (i, 0, 0))] * 2,
            out_specs=pl.BlockSpec((tile_t, B, hid_dim), lambda i: (i, 0, 0)),
        ),
        compiler_params=pltpu.CompilerParams(
            dimension_semantics=("parallel",),
        ),
    )(out_f, out_b)


def encoder_forward(x, lengths, params, hid_dim, depth, compute_dtype=jnp.bfloat16):
    """Bidirectional multi-layer LSTM encoder (inference: dropout = identity).

    x: (T, B, input_dim).  `lengths` unused (matches the bidirectional branch of the
    PyTorch module).  Returns (join, s) with join (T, B, H) f32, s (B, H) f32.
    """
    del lengths  # not used in the bidirectional forward path
    T, B, D = x.shape
    H = hid_dim
    Hp = _round_up(H, 128)            # lane-aligned gate / hidden width
    B_eff = _round_up(B, 8)           # sublane padding for VMEM budgeting
    gx_bytes = jnp.dtype(compute_dtype).itemsize
    tile_t, nt, Tp = _choose_tile_t(T, B_eff, Hp, gx_bytes)
    vmem_limit = _vmem_limit_bytes(tile_t, B_eff, Hp, gx_bytes)

    out_f = out_b = None
    for l in range(depth):
        p = params[f"layer{l}"]
        bias_f = _pad_gate_bias(p["b_ih_f"] + p["b_hh_f"], H, Hp)
        bias_b = _pad_gate_bias(p["b_ih_b"] + p["b_hh_b"], H, Hp)

        if l == 0:
            # Hoisted input projection: large MXU-friendly matmuls in compute_dtype.
            wf = _pack_w(p["w_ih_f"], H, Hp, D).astype(compute_dtype)
            wb = _pack_w(p["w_ih_b"], H, Hp, D).astype(compute_dtype)
            xin = x.astype(compute_dtype)
            gx_f = jnp.einsum("tbd,dg->tbg", xin, wf, preferred_element_type=jnp.float32)
            gx_b = jnp.einsum("tbd,dg->tbg", xin, wb, preferred_element_type=jnp.float32)
        else:
            # Input of this layer is concat([fwd, bwd], -1); fold the concat into two
            # split matmuls against the previous layer's outputs (no HBM concat).
            hf = out_f[:T].astype(compute_dtype)
            hb = out_b[:T].astype(compute_dtype)
            w4f = p["w_ih_f"].reshape(4 * H, 2, H)
            w4b = p["w_ih_b"].reshape(4 * H, 2, H)
            wff = _pack_w(w4f[:, 0, :], H, Hp, H, in_pad=Hp).astype(compute_dtype)
            wfb = _pack_w(w4f[:, 1, :], H, Hp, H, in_pad=Hp).astype(compute_dtype)
            wbf = _pack_w(w4b[:, 0, :], H, Hp, H, in_pad=Hp).astype(compute_dtype)
            wbb = _pack_w(w4b[:, 1, :], H, Hp, H, in_pad=Hp).astype(compute_dtype)
            gx_f = (jnp.einsum("tbh,hg->tbg", hf, wff, preferred_element_type=jnp.float32)
                    + jnp.einsum("tbh,hg->tbg", hb, wfb, preferred_element_type=jnp.float32))
            gx_b = (jnp.einsum("tbh,hg->tbg", hf, wbf, preferred_element_type=jnp.float32)
                    + jnp.einsum("tbh,hg->tbg", hb, wbb, preferred_element_type=jnp.float32))

        gx_f = (gx_f + bias_f).astype(compute_dtype)
        gx_b = (gx_b + bias_b).astype(compute_dtype)
        if Tp > T:
            # Zero gx pad rows keep the recurrent state exactly 0 through the pad steps
            # (forward pads trail the sequence; backward pads precede it).
            pad = ((0, Tp - T), (0, 0), (0, 0))
            gx_f = jnp.pad(gx_f, pad)
            gx_b = jnp.pad(gx_b, pad)

        whh = jnp.stack([
            _pack_w(p["w_hh_f"], H, Hp, H, in_pad=Hp),
            _pack_w(p["w_hh_b"], H, Hp, H, in_pad=Hp),
        ]).astype(compute_dtype)                         # (2, Hp, 4Hp)

        out_f, out_b = _bilstm_layer(gx_f, gx_b, whh, tile_t, nt, vmem_limit)

    # Tiled, streamed join epilogue (Pallas); tiny fc + tanh for `s` in plain XLA.
    join = _join(out_f, out_b, H, tile_t, nt)
    if Tp > T:
        join = join[:T]
    # h_n[-2] = last-layer forward final hidden = out_f[T-1]
    # h_n[-1] = last-layer backward final hidden = out_b[0]
    h_last = out_f[T - 1, :, :H] + out_b[0, :, :H]
    s = jnp.tanh(h_last @ params["fc_weight"].astype(jnp.float32).T)
    return join, s


# ----------------------------------------------------------------------------
# Deterministic parameter construction (PyTorch-style uniform init)
# ----------------------------------------------------------------------------
def init_params(key, input_dim, hid_dim, depth):
    bound = 1.0 / jnp.sqrt(hid_dim)
    params = {}
    for l in range(depth):
        in_d = input_dim if l == 0 else 2 * hid_dim
        layer = {}
        for tag in ("f", "b"):
            key, k1, k2, k3, k4 = jax.random.split(key, 5)
            layer[f"w_ih_{tag}"] = jax.random.uniform(
                k1, (4 * hid_dim, in_d), jnp.float32, -bound, bound)
            layer[f"w_hh_{tag}"] = jax.random.uniform(
                k2, (4 * hid_dim, hid_dim), jnp.float32, -bound, bound)
            layer[f"b_ih_{tag}"] = jax.random.uniform(
                k3, (4 * hid_dim,), jnp.float32, -bound, bound)
            layer[f"b_hh_{tag}"] = jax.random.uniform(
                k4, (4 * hid_dim,), jnp.float32, -bound, bound)
        params[f"layer{l}"] = layer
    key, kfc = jax.random.split(key)
    params["fc_weight"] = jax.random.uniform(
        kfc, (hid_dim, hid_dim), jnp.float32, -bound, bound)
    return params


if __name__ == "__main__":
    T, B = 8, 2          # seq_len, batch
    INPUT_DIM = 16
    HID_DIM = 32
    DEPTH = 2

    key = jax.random.PRNGKey(0)
    key, kx = jax.random.split(key)
    # layout: (seq_len, batch, input_dim) — PyTorch nn.LSTM default (batch_first=False)
    x = jax.random.normal(kx, (T, B, INPUT_DIM), dtype=jnp.float32)
    lengths = jnp.full((B,), T, dtype=jnp.int32)

    params = init_params(key, INPUT_DIM, HID_DIM, DEPTH)

    fwd = jax.jit(functools.partial(encoder_forward, hid_dim=HID_DIM, depth=DEPTH))
    join, s = fwd(x, lengths, params)
    jax.block_until_ready((join, s))

    assert join.shape == (T, B, HID_DIM)
    assert s.shape == (B, HID_DIM)
    assert bool(jnp.all(jnp.isfinite(join))) and bool(jnp.all(jnp.isfinite(s)))
    print("KERNEL_OK")
</pallas_src>

<mosaic_0001>
module attributes {stable_mosaic.version = 11 : i64} {
  func.func @_bilstm_kernel(%arg0: i32, %arg1: memref<8x2x512xbf16, #tpu.memory_space<vmem>>, %arg2: memref<8x2x512xbf16, #tpu.memory_space<vmem>>, %arg3: memref<2x128x512xbf16, #tpu.memory_space<vmem>>, %arg4: memref<8x2x128xf32, #tpu.memory_space<vmem>>, %arg5: memref<8x2x128xf32, #tpu.memory_space<vmem>>, %arg6: memref<2x2x128xf32, #tpu.memory_space<vmem>>, %arg7: memref<2x2x128xf32, #tpu.memory_space<vmem>>) attributes {dimension_semantics = [#tpu.dimension_semantics<arbitrary>], iteration_bounds = array<i64: 1>, scalar_prefetch = 0 : i64, scratch_operands = 2 : i64, tpu.core_type = #tpu.core_type<tc>, window_params = [{transform_indices = @transform_0, window_bounds = array<i64: 8, 2, 512>}, {transform_indices = @transform_1, window_bounds = array<i64: 8, 2, 512>}, {pipeline_mode = #tpu.pipeline_mode<synchronous>, transform_indices = @transform_2, window_bounds = array<i64: 2, 128, 512>}, {transform_indices = @transform_3, window_bounds = array<i64: 8, 2, 128>}, {transform_indices = @transform_4, window_bounds = array<i64: 8, 2, 128>}]} {
    %c0_i32 = arith.constant 0 : i32
    %0 = arith.cmpi eq, %arg0, %c0_i32 : i32
    %1 = arith.extui %0 : i1 to i32
    %c0_i32_0 = arith.constant 0 : i32
    %2 = arith.cmpi ne, %1, %c0_i32_0 : i32
    scf.if %2 {
      %cst_165 = arith.constant 0.000000e+00 : f32
      %611 = vector.broadcast %cst_165 : f32 to vector<2x2x128xf32>
      %c0_166 = arith.constant 0 : index
      %c0_167 = arith.constant 0 : index
      %c0_168 = arith.constant 0 : index
      %612 = vector.load %arg6[%c0_166, %c0_167, %c0_168] : memref<2x2x128xf32, #tpu.memory_space<vmem>>, vector<2x2x128xf32>
      tpu.vector_store %arg6[%c0_166, %c0_167, %c0_168], %611 {strides = array<i32>} : memref<2x2x128xf32, #tpu.memory_space<vmem>>, vector<2x2x128xf32>,
      %cst_169 = arith.constant 0.000000e+00 : f32
      %613 = vector.broadcast %cst_169 : f32 to vector<2x2x128xf32>
      %c0_170 = arith.constant 0 : index
      %c0_171 = arith.constant 0 : index
      %c0_172 = arith.constant 0 : index
      %614 = vector.load %arg7[%c0_170, %c0_171, %c0_172] : memref<2x2x128xf32, #tpu.memory_space<vmem>>, vector<2x2x128xf32>
      tpu.vector_store %arg7[%c0_170, %c0_171, %c0_172], %613 {strides = array<i32>} : memref<2x2x128xf32, #tpu.memory_space<vmem>>, vector<2x2x128xf32>,
    } else {
    }
    %c0 = arith.constant 0 : index
    %c0_1 = arith.constant 0 : index
    %c0_2 = arith.constant 0 : index
    %3 = vector.load %arg3[%c0, %c0_1, %c0_2] : memref<2x128x512xbf16, #tpu.memory_space<vmem>>, vector<1x128x512xbf16>
    %4 = vector.shape_cast %3 : vector<1x128x512xbf16> to vector<128x512xbf16>
    %c1 = arith.constant 1 : index
    %c0_3 = arith.constant 0 : index
    %c0_4 = arith.constant 0 : index
    %5 = vector.load %arg3[%c1, %c0_3, %c0_4] : memref<2x128x512xbf16, #tpu.memory_space<vmem>>, vector<1x128x512xbf16>
    %6 = vector.shape_cast %5 : vector<1x128x512xbf16> to vector<128x512xbf16>
    %c0_5 = arith.constant 0 : index
    %c0_6 = arith.constant 0 : index
    %c0_7 = arith.constant 0 : index
    %7 = vector.load %arg6[%c0_5, %c0_6, %c0_7] : memref<2x2x128xf32, #tpu.memory_space<vmem>>, vector<1x2x128xf32>
    %8 = vector.shape_cast %7 : vector<1x2x128xf32> to vector<2x128xf32>
    %c0_8 = arith.constant 0 : index
    %c0_9 = arith.constant 0 : index
    %c0_10 = arith.constant 0 : index
    %9 = vector.load %arg7[%c0_8, %c0_9, %c0_10] : memref<2x2x128xf32, #tpu.memory_space<vmem>>, vector<1x2x128xf32>
    %10 = vector.shape_cast %9 : vector<1x2x128xf32> to vector<2x128xf32>
    %c1_11 = arith.constant 1 : index
    %c0_12 = arith.constant 0 : index
    %c0_13 = arith.constant 0 : index
    %11 = vector.load %arg6[%c1_11, %c0_12, %c0_13] : memref<2x2x128xf32, #tpu.memory_space<vmem>>, vector<1x2x128xf32>
    %12 = vector.shape_cast %11 : vector<1x2x128xf32> to vector<2x128xf32>
    %c1_14 = arith.constant 1 : index
    %c0_15 = arith.constant 0 : index
    %c0_16 = arith.constant 0 : index
    %13 = vector.load %arg7[%c1_14, %c0_15, %c0_16] : memref<2x2x128xf32, #tpu.memory_space<vmem>>, vector<1x2x128xf32>
    %14 = vector.shape_cast %13 : vector<1x2x128xf32> to vector<2x128xf32>
    %c0_i32_17 = arith.constant 0 : i32
    %c7_i32 = arith.constant 7 : i32
    %15 = arith.subi %c7_i32, %c0_i32_17 : i32
    %16 = arith.index_cast %c0_i32_17 : i32 to index
    %c0_18 = arith.constant 0 : index
    %c0_19 = arith.constant 0 : index
    %17 = vector.load %arg1[%16, %c0_18, %c0_19] : memref<8x2x512xbf16, #tpu.memory_space<vmem>>, vector<1x2x512xbf16>
    %18 = vector.shape_cast %17 : vector<1x2x512xbf16> to vector<2x512xbf16>
    %19 = arith.extf %18 : vector<2x512xbf16> to vector<2x512xf32>
    %20 = arith.truncf %8 : vector<2x128xf32> to vector<2x128xbf16>
    %cst = arith.constant dense<0.000000e+00> : vector<2x512xf32>
    %21 = tpu.matmul %20, %4, %cst {dimension_numbers = #tpu.dot_dimension_numbers<[1], [0], [0], [1], [0, 0, 1, 1], [], []>} : vector<2x128xbf16>, vector<128x512xbf16>, vector<2x512xf32> -> vector<2x512xf32>
    %22 = arith.addf %19, %21 : vector<2x512xf32>
    %23 = arith.index_cast %15 : i32 to index
    %c0_20 = arith.constant 0 : index
    %c0_21 = arith.constant 0 : index
    %24 = vector.load %arg2[%23, %c0_20, %c0_21] : memref<8x2x512xbf16, #tpu.memory_space<vmem>>, vector<1x2x512xbf16>
    %25 = vector.shape_cast %24 : vector<1x2x512xbf16> to vector<2x512xbf16>
    %26 = arith.extf %25 : vector<2x512xbf16> to vector<2x512xf32>
    %27 = arith.truncf %12 : vector<2x128xf32> to vector<2x128xbf16>
    %cst_22 = arith.constant dense<0.000000e+00> : vector<2x512xf32>
    %28 = tpu.matmul %27, %6, %cst_22 {dimension_numbers = #tpu.dot_dimension_numbers<[1], [0], [0], [1], [0, 0, 1, 1], [], []>} : vector<2x128xbf16>, vector<128x512xbf16>, vector<2x512xf32> -> vector<2x512xf32>
    %29 = arith.addf %26, %28 : vector<2x512xf32>
    %30 = vector.extract_strided_slice %22 {offsets = [0, 0], sizes = [2, 128], strides = [1, 1]} : vector<2x512xf32> to vector<2x128xf32>
    %31 = arith.negf %30 : vector<2x128xf32>
    %32 = math.exp %31 : vector<2x128xf32>
    %cst_23 = arith.constant 1.000000e+00 : f32
    %33 = vector.broadcast %cst_23 : f32 to vector<2x128xf32>
    %34 = arith.addf %33, %32 : vector<2x128xf32>
    %35 = arith.divf %33, %34 : vector<2x128xf32>
    %36 = vector.extract_strided_slice %22 {offsets = [0, 128], sizes = [2, 128], strides = [1, 1]} : vector<2x512xf32> to vector<2x128xf32>
    %37 = arith.negf %36 : vector<2x128xf32>
    %38 = math.exp %37 : vector<2x128xf32>
    %cst_24 = arith.constant 1.000000e+00 : f32
    %39 = vector.broadcast %cst_24 : f32 to vector<2x128xf32>
    %40 = arith.addf %39, %38 : vector<2x128xf32>
    %41 = arith.divf %39, %40 : vector<2x128xf32>
    %42 = vector.extract_strided_slice %22 {offsets = [0, 256], sizes = [2, 128], strides = [1, 1]} : vector<2x512xf32> to vector<2x128xf32>
    %43 = math.tanh %42 : vector<2x128xf32>
    %44 = vector.extract_strided_slice %22 {offsets = [0, 384], sizes = [2, 128], strides = [1, 1]} : vector<2x512xf32> to vector<2x128xf32>
    %45 = arith.negf %44 : vector<2x128xf32>
    %46 = math.exp %45 : vector<2x128xf32>
    %cst_25 = arith.constant 1.000000e+00 : f32
    %47 = vector.broadcast %cst_25 : f32 to vector<2x128xf32>
    %48 = arith.addf %47, %46 : vector<2x128xf32>
    %49 = arith.divf %47, %48 : vector<2x128xf32>
    %50 = arith.mulf %41, %10 : vector<2x128xf32>
    %51 = arith.mulf %35, %43 : vector<2x128xf32>
    %52 = arith.addf %50, %51 : vector<2x128xf32>
    %53 = math.tanh %52 : vector<2x128xf32>
    %54 = arith.mulf %49, %53 : vector<2x128xf32>
    %55 = vector.extract_strided_slice %29 {offsets = [0, 0], sizes = [2, 128], strides = [1, 1]} : vector<2x512xf32> to vector<2x128xf32>
    %56 = arith.negf %55 : vector<2x128xf32>
    %57 = math.exp %56 : vector<2x128xf32>
    %cst_26 = arith.constant 1.000000e+00 : f32
    %58 = vector.broadcast %cst_26 : f32 to vector<2x128xf32>
    %59 = arith.addf %58, %57 : vector<2x128xf32>
    %60 = arith.divf %58, %59 : vector<2x128xf32>
    %61 = vector.extract_strided_slice %29 {offsets = [0, 128], sizes = [2, 128], strides = [1, 1]} : vector<2x512xf32> to vector<2x128xf32>
    %62 = arith.negf %61 : vector<2x128xf32>
    %63 = math.exp %62 : vector<2x128xf32>
    %cst_27 = arith.constant 1.000000e+00 : f32
    %64 = vector.broadcast %cst_27 : f32 to vector<2x128xf32>
    %65 = arith.addf %64, %63 : vector<2x128xf32>
    %66 = arith.divf %64, %65 : vector<2x128xf32>
    %67 = vector.extract_strided_slice %29 {offsets = [0, 256], sizes = [2, 128], strides = [1, 1]} : vector<2x512xf32> to vector<2x128xf32>
    %68 = math.tanh %67 : vector<2x128xf32>
    %69 = vector.extract_strided_slice %29 {offsets = [0, 384], sizes = [2, 128], strides = [1, 1]} : vector<2x512xf32> to vector<2x128xf32>
    %70 = arith.negf %69 : vector<2x128xf32>
    %71 = math.exp %70 : vector<2x128xf32>
    %cst_28 = arith.constant 1.000000e+00 : f32
    %72 = vector.broadcast %cst_28 : f32 to vector<2x128xf32>
    %73 = arith.addf %72, %71 : vector<2x128xf32>
    %74 = arith.divf %72, %73 : vector<2x128xf32>
    %75 = arith.mulf %66, %14 : vector<2x128xf32>
    %76 = arith.mulf %60, %68 : vector<2x128xf32>
    %77 = arith.addf %75, %76 : vector<2x128xf32>
    %78 = math.tanh %77 : vector<2x128xf32>
    %79 = arith.mulf %74, %78 : vector<2x128xf32>
    %80 = arith.index_cast %c0_i32_17 : i32 to index
    %c0_29 = arith.constant 0 : index
    %c0_30 = arith.constant 0 : index
    %81 = vector.load %arg4[%80, %c0_29, %c0_30] : memref<8x2x128xf32, #tpu.memory_space<vmem>>, vector<1x2x128xf32>
    %82 = vector.shape_cast %81 : vector<1x2x128xf32> to vector<2x128xf32>
    %83 = vector.shape_cast %54 : vector<2x128xf32> to vector<1x2x128xf32>
    tpu.vector_store %arg4[%80, %c0_29, %c0_30], %83 {strides = array<i32>} : memref<8x2x128xf32, #tpu.memory_space<vmem>>, vector<1x2x128xf32>,
    %84 = arith.index_cast %15 : i32 to index
    %c0_31 = arith.constant 0 : index
    %c0_32 = arith.constant 0 : index
    %85 = vector.load %arg5[%84, %c0_31, %c0_32] : memref<8x2x128xf32, #tpu.memory_space<vmem>>, vector<1x2x128xf32>
    %86 = vector.shape_cast %85 : vector<1x2x128xf32> to vector<2x128xf32>
    %87 = vector.shape_cast %79 : vector<2x128xf32> to vector<1x2x128xf32>
    tpu.vector_store %arg5[%84, %c0_31, %c0_32], %87 {strides = array<i32>} : memref<8x2x128xf32, #tpu.memory_space<vmem>>, vector<1x2x128xf32>,
    %c1_i32 = arith.constant 1 : i32
    %c7_i32_33 = arith.constant 7 : i32
    %88 = arith.subi %c7_i32_33, %c1_i32 : i32
    %89 = arith.index_cast %c1_i32 : i32 to index
    %c0_34 = arith.constant 0 : index
    %c0_35 = arith.constant 0 : index
    %90 = vector.load %arg1[%89, %c0_34, %c0_35] : memref<8x2x512xbf16, #tpu.memory_space<vmem>>, vector<1x2x512xbf16>
    %91 = vector.shape_cast %90 : vector<1x2x512xbf16> to vector<2x512xbf16>
    %92 = arith.extf %91 : vector<2x512xbf16> to vector<2x512xf32>
    %93 = arith.truncf %54 : vector<2x128xf32> to vector<2x128xbf16>
    %cst_36 = arith.constant dense<0.000000e+00> : vector<2x512xf32>
    %94 = tpu.matmul %93, %4, %cst_36 {dimension_numbers = #tpu.dot_dimension_numbers<[1], [0], [0], [1], [0, 0, 1, 1], [], []>} : vector<2x128xbf16>, vector<128x512xbf16>, vector<2x512xf32> -> vector<2x512xf32>
    %95 = arith.addf %92, %94 : vector<2x512xf32>
    %96 = arith.index_cast %88 : i32 to index
    %c0_37 = arith.constant 0 : index
    %c0_38 = arith.constant 0 : index
    %97 = vector.load %arg2[%96, %c0_37, %c0_38] : memref<8x2x512xbf16, #tpu.memory_space<vmem>>, vector<1x2x512xbf16>
    %98 = vector.shape_cast %97 : vector<1x2x512xbf16> to vector<2x512xbf16>
    %99 = arith.extf %98 : vector<2x512xbf16> to vector<2x512xf32>
    %100 = arith.truncf %79 : vector<2x128xf32> to vector<2x128xbf16>
    %cst_39 = arith.constant dense<0.000000e+00> : vector<2x512xf32>
    %101 = tpu.matmul %100, %6, %cst_39 {dimension_numbers = #tpu.dot_dimension_numbers<[1], [0], [0], [1], [0, 0, 1, 1], [], []>} : vector<2x128xbf16>, vector<128x512xbf16>, vector<2x512xf32> -> vector<2x512xf32>
    %102 = arith.addf %99, %101 : vector<2x512xf32>
    %103 = vector.extract_strided_slice %95 {offsets = [0, 0], sizes = [2, 128], strides = [1, 1]} : vector<2x512xf32> to vector<2x128xf32>
    %104 = arith.negf %103 : vector<2x128xf32>
    %105 = math.exp %104 : vector<2x128xf32>
    %cst_40 = arith.constant 1.000000e+00 : f32
    %106 = vector.broadcast %cst_40 : f32 to vector<2x128xf32>
    %107 = arith.addf %106, %105 : vector<2x128xf32>
    %108 = arith.divf %106, %107 : vector<2x128xf32>
    %109 = vector.extract_strided_slice %95 {offsets = [0, 128], sizes = [2, 128], strides = [1, 1]} : vector<2x512xf32> to vector<2x128xf32>
    %110 = arith.negf %109 : vector<2x128xf32>
    %111 = math.exp %110 : vector<2x128xf32>
    %cst_41 = arith.constant 1.000000e+00 : f32
    %112 = vector.broadcast %cst_41 : f32 to vector<2x128xf32>
    %113 = arith.addf %112, %111 : vector<2x128xf32>
    %114 = arith.divf %112, %113 : vector<2x128xf32>
    %115 = vector.extract_strided_slice %95 {offsets = [0, 256], sizes = [2, 128], strides = [1, 1]} : vector<2x512xf32> to vector<2x128xf32>
    %116 = math.tanh %115 : vector<2x128xf32>
    %117 = vector.extract_strided_slice %95 {offsets = [0, 384], sizes = [2, 128], strides = [1, 1]} : vector<2x512xf32> to vector<2x128xf32>
    %118 = arith.negf %117 : vector<2x128xf32>
    %119 = math.exp %118 : vector<2x128xf32>
    %cst_42 = arith.constant 1.000000e+00 : f32
    %120 = vector.broadcast %cst_42 : f32 to vector<2x128xf32>
    %121 = arith.addf %120, %119 : vector<2x128xf32>
    %122 = arith.divf %120, %121 : vector<2x128xf32>
    %123 = arith.mulf %114, %52 : vector<2x128xf32>
    %124 = arith.mulf %108, %116 : vector<2x128xf32>
    %125 = arith.addf %123, %124 : vector<2x128xf32>
    %126 = math.tanh %125 : vector<2x128xf32>
    %127 = arith.mulf %122, %126 : vector<2x128xf32>
    %128 = vector.extract_strided_slice %102 {offsets = [0, 0], sizes = [2, 128], strides = [1, 1]} : vector<2x512xf32> to vector<2x128xf32>
    %129 = arith.negf %128 : vector<2x128xf32>
    %130 = math.exp %129 : vector<2x128xf32>
    %cst_43 = arith.constant 1.000000e+00 : f32
    %131 = vector.broadcast %cst_43 : f32 to vector<2x128xf32>
    %132 = arith.addf %131, %130 : vector<2x128xf32>
    %133 = arith.divf %131, %132 : vector<2x128xf32>
    %134 = vector.extract_strided_slice %102 {offsets = [0, 128], sizes = [2, 128], strides = [1, 1]} : vector<2x512xf32> to vector<2x128xf32>
    %135 = arith.negf %134 : vector<2x128xf32>
    %136 = math.exp %135 : vector<2x128xf32>
    %cst_44 = arith.constant 1.000000e+00 : f32
    %137 = vector.broadcast %cst_44 : f32 to vector<2x128xf32>
    %138 = arith.addf %137, %136 : vector<2x128xf32>
    %139 = arith.divf %137, %138 : vector<2x128xf32>
    %140 = vector.extract_strided_slice %102 {offsets = [0, 256], sizes = [2, 128], strides = [1, 1]} : vector<2x512xf32> to vector<2x128xf32>
    %141 = math.tanh %140 : vector<2x128xf32>
    %142 = vector.extract_strided_slice %102 {offsets = [0, 384], sizes = [2, 128], strides = [1, 1]} : vector<2x512xf32> to vector<2x128xf32>
    %143 = arith.negf %142 : vector<2x128xf32>
    %144 = math.exp %143 : vector<2x128xf32>
    %cst_45 = arith.constant 1.000000e+00 : f32
    %145 = vector.broadcast %cst_45 : f32 to vector<2x128xf32>
    %146 = arith.addf %145, %144 : vector<2x128xf32>
    %147 = arith.divf %145, %146 : vector<2x128xf32>
    %148 = arith.mulf %139, %77 : vector<2x128xf32>
    %149 = arith.mulf %133, %141 : vector<2x128xf32>
    %150 = arith.addf %148, %149 : vector<2x128xf32>
    %151 = math.tanh %150 : vector<2x128xf32>
    %152 = arith.mulf %147, %151 : vector<2x128xf32>
    %153 = arith.index_cast %c1_i32 : i32 to index
    %c0_46 = arith.constant 0 : index
    %c0_47 = arith.constant 0 : index
    %154 = vector.load %arg4[%153, %c0_46, %c0_47] : memref<8x2x128xf32, #tpu.memory_space<vmem>>, vector<1x2x128xf32>
    %155 = vector.shape_cast %154 : vector<1x2x128xf32> to vector<2x128xf32>
    %156 = vector.shape_cast %127 : vector<2x128xf32> to vector<1x2x128xf32>
    tpu.vector_store %arg4[%153, %c0_46, %c0_47], %156 {strides = array<i32>} : memref<8x2x128xf32, #tpu.memory_space<vmem>>, vector<1x2x128xf32>,
    %157 = arith.index_cast %88 : i32 to index
    %c0_48 = arith.constant 0 : index
    %c0_49 = arith.constant 0 : index
    %158 = vector.load %arg5[%157, %c0_48, %c0_49] : memref<8x2x128xf32, #tpu.memory_space<vmem>>, vector<1x2x128xf32>
    %159 = vector.shape_cast %158 : vector<1x2x128xf32> to vector<2x128xf32>
    %160 = vector.shape_cast %152 : vector<2x128xf32> to vector<1x2x128xf32>
    tpu.vector_store %arg5[%157, %c0_48, %c0_49], %160 {strides = array<i32>} : memref<8x2x128xf32, #tpu.memory_space<vmem>>, vector<1x2x128xf32>,
    %c2_i32 = arith.constant 2 : i32
    %c7_i32_50 = arith.constant 7 : i32
    %161 = arith.subi %c7_i32_50, %c2_i32 : i32
    %162 = arith.index_cast %c2_i32 : i32 to index
    %c0_51 = arith.constant 0 : index
    %c0_52 = arith.constant 0 : index
    %163 = vector.load %arg1[%162, %c0_51, %c0_52] : memref<8x2x512xbf16, #tpu.memory_space<vmem>>, vector<1x2x512xbf16>
    %164 = vector.shape_cast %163 : vector<1x2x512xbf16> to vector<2x512xbf16>
    %165 = arith.extf %164 : vector<2x512xbf16> to vector<2x512xf32>
    %166 = arith.truncf %127 : vector<2x128xf32> to vector<2x128xbf16>
    %cst_53 = arith.constant dense<0.000000e+00> : vector<2x512xf32>
    %167 = tpu.matmul %166, %4, %cst_53 {dimension_numbers = #tpu.dot_dimension_numbers<[1], [0], [0], [1], [0, 0, 1, 1], [], []>} : vector<2x128xbf16>, vector<128x512xbf16>, vector<2x512xf32> -> vector<2x512xf32>
    %168 = arith.addf %165, %167 : vector<2x512xf32>
    %169 = arith.index_cast %161 : i32 to index
    %c0_54 = arith.constant 0 : index
    %c0_55 = arith.constant 0 : index
    %170 = vector.load %arg2[%169, %c0_54, %c0_55] : memref<8x2x512xbf16, #tpu.memory_space<vmem>>, vector<1x2x512xbf16>
    %171 = vector.shape_cast %170 : vector<1x2x512xbf16> to vector<2x512xbf16>
    %172 = arith.extf %171 : vector<2x512xbf16> to vector<2x512xf32>
    %173 = arith.truncf %152 : vector<2x128xf32> to vector<2x128xbf16>
    %cst_56 = arith.constant dense<0.000000e+00> : vector<2x512xf32>
    %174 = tpu.matmul %173, %6, %cst_56 {dimension_numbers = #tpu.dot_dimension_numbers<[1], [0], [0], [1], [0, 0, 1, 1], [], []>} : vector<2x128xbf16>, vector<128x512xbf16>, vector<2x512xf32> -> vector<2x512xf32>
    %175 = arith.addf %172, %174 : vector<2x512xf32>
    %176 = vector.extract_strided_slice %168 {offsets = [0, 0], sizes = [2, 128], strides = [1, 1]} : vector<2x512xf32> to vector<2x128xf32>
    %177 = arith.negf %176 : vector<2x128xf32>
    %178 = math.exp %177 : vector<2x128xf32>
    %cst_57 = arith.constant 1.000000e+00 : f32
    %179 = vector.broadcast %cst_57 : f32 to vector<2x128xf32>
    %180 = arith.addf %179, %178 : vector<2x128xf32>
    %181 = arith.divf %179, %180 : vector<2x128xf32>
    %182 = vector.extract_strided_slice %168 {offsets = [0, 128], sizes = [2, 128], strides = [1, 1]} : vector<2x512xf32> to vector<2x128xf32>
    %183 = arith.negf %182 : vector<2x128xf32>
    %184 = math.exp %183 : vector<2x128xf32>
    %cst_58 = arith.constant 1.000000e+00 : f32
    %185 = vector.broadcast %cst_58 : f32 to vector<2x128xf32>
    %186 = arith.addf %185, %184 : vector<2x128xf32>
    %187 = arith.divf %185, %186 : vector<2x128xf32>
    %188 = vector.extract_strided_slice %168 {offsets = [0, 256], sizes = [2, 128], strides = [1, 1]} : vector<2x512xf32> to vector<2x128xf32>
    %189 = math.tanh %188 : vector<2x128xf32>
    %190 = vector.extract_strided_slice %168 {offsets = [0, 384], sizes = [2, 128], strides = [1, 1]} : vector<2x512xf32> to vector<2x128xf32>
    %191 = arith.negf %190 : vector<2x128xf32>
    %192 = math.exp %191 : vector<2x128xf32>
    %cst_59 = arith.constant 1.000000e+00 : f32
    %193 = vector.broadcast %cst_59 : f32 to vector<2x128xf32>
    %194 = arith.addf %193, %192 : vector<2x128xf32>
    %195 = arith.divf %193, %194 : vector<2x128xf32>
    %196 = arith.mulf %187, %125 : vector<2x128xf32>
    %197 = arith.mulf %181, %189 : vector<2x128xf32>
    %198 = arith.addf %196, %197 : vector<2x128xf32>
    %199 = math.tanh %198 : vector<2x128xf32>
    %200 = arith.mulf %195, %199 : vector<2x128xf32>
    %201 = vector.extract_strided_slice %175 {offsets = [0, 0], sizes = [2, 128], strides = [1, 1]} : vector<2x512xf32> to vector<2x128xf32>
    %202 = arith.negf %201 : vector<2x128xf32>
    %203 = math.exp %202 : vector<2x128xf32>
    %cst_60 = arith.constant 1.000000e+00 : f32
    %204 = vector.broadcast %cst_60 : f32 to vector<2x128xf32>
    %205 = arith.addf %204, %203 : vector<2x128xf32>
    %206 = arith.divf %204, %205 : vector<2x128xf32>
    %207 = vector.extract_strided_slice %175 {offsets = [0, 128], sizes = [2, 128], strides = [1, 1]} : vector<2x512xf32> to vector<2x128xf32>
    %208 = arith.negf %207 : vector<2x128xf32>
    %209 = math.exp %208 : vector<2x128xf32>
    %cst_61 = arith.constant 1.000000e+00 : f32
    %210 = vector.broadcast %cst_61 : f32 to vector<2x128xf32>
    %211 = arith.addf %210, %209 : vector<2x128xf32>
    %212 = arith.divf %210, %211 : vector<2x128xf32>
    %213 = vector.extract_strided_slice %175 {offsets = [0, 256], sizes = [2, 128], strides = [1, 1]} : vector<2x512xf32> to vector<2x128xf32>
    %214 = math.tanh %213 : vector<2x128xf32>
    %215 = vector.extract_strided_slice %175 {offsets = [0, 384], sizes = [2, 128], strides = [1, 1]} : vector<2x512xf32> to vector<2x128xf32>
    %216 = arith.negf %215 : vector<2x128xf32>
    %217 = math.exp %216 : vector<2x128xf32>
    %cst_62 = arith.constant 1.000000e+00 : f32
    %218 = vector.broadcast %cst_62 : f32 to vector<2x128xf32>
    %219 = arith.addf %218, %217 : vector<2x128xf32>
    %220 = arith.divf %218, %219 : vector<2x128xf32>
    %221 = arith.mulf %212, %150 : vector<2x128xf32>
    %222 = arith.mulf %206, %214 : vector<2x128xf32>
    %223 = arith.addf %221, %222 : vector<2x128xf32>
    %224 = math.tanh %223 : vector<2x128xf32>
    %225 = arith.mulf %220, %224 : vector<2x128xf32>
    %226 = arith.index_cast %c2_i32 : i32 to index
    %c0_63 = arith.constant 0 : index
    %c0_64 = arith.constant 0 : index
    %227 = vector.load %arg4[%226, %c0_63, %c0_64] : memref<8x2x128xf32, #tpu.memory_space<vmem>>, vector<1x2x128xf32>
    %228 = vector.shape_cast %227 : vector<1x2x128xf32> to vector<2x128xf32>
    %229 = vector.shape_cast %200 : vector<2x128xf32> to vector<1x2x128xf32>
    tpu.vector_store %arg4[%226, %c0_63, %c0_64], %229 {strides = array<i32>} : memref<8x2x128xf32, #tpu.memory_space<vmem>>, vector<1x2x128xf32>,
    %230 = arith.index_cast %161 : i32 to index
    %c0_65 = arith.constant 0 : index
    %c0_66 = arith.constant 0 : index
    %231 = vector.load %arg5[%230, %c0_65, %c0_66] : memref<8x2x128xf32, #tpu.memory_space<vmem>>, vector<1x2x128xf32>
    %232 = vector.shape_cast %231 : vector<1x2x128xf32> to vector<2x128xf32>
    %233 = vector.shape_cast %225 : vector<2x128xf32> to vector<1x2x128xf32>
    tpu.vector_store %arg5[%230, %c0_65, %c0_66], %233 {strides = array<i32>} : memref<8x2x128xf32, #tpu.memory_space<vmem>>, vector<1x2x128xf32>,
    %c3_i32 = arith.constant 3 : i32
    %c7_i32_67 = arith.constant 7 : i32
    %234 = arith.subi %c7_i32_67, %c3_i32 : i32
    %235 = arith.index_cast %c3_i32 : i32 to index
    %c0_68 = arith.constant 0 : index
    %c0_69 = arith.constant 0 : index
    %236 = vector.load %arg1[%235, %c0_68, %c0_69] : memref<8x2x512xbf16, #tpu.memory_space<vmem>>, vector<1x2x512xbf16>
    %237 = vector.shape_cast %236 : vector<1x2x512xbf16> to vector<2x512xbf16>
    %238 = arith.extf %237 : vector<2x512xbf16> to vector<2x512xf32>
    %239 = arith.truncf %200 : vector<2x128xf32> to vector<2x128xbf16>
    %cst_70 = arith.constant dense<0.000000e+00> : vector<2x512xf32>
    %240 = tpu.matmul %239, %4, %cst_70 {dimension_numbers = #tpu.dot_dimension_numbers<[1], [0], [0], [1], [0, 0, 1, 1], [], []>} : vector<2x128xbf16>, vector<128x512xbf16>, vector<2x512xf32> -> vector<2x512xf32>
    %241 = arith.addf %238, %240 : vector<2x512xf32>
    %242 = arith.index_cast %234 : i32 to index
    %c0_71 = arith.constant 0 : index
    %c0_72 = arith.constant 0 : index
    %243 = vector.load %arg2[%242, %c0_71, %c0_72] : memref<8x2x512xbf16, #tpu.memory_space<vmem>>, vector<1x2x512xbf16>
    %244 = vector.shape_cast %243 : vector<1x2x512xbf16> to vector<2x512xbf16>
    %245 = arith.extf %244 : vector<2x512xbf16> to vector<2x512xf32>
    %246 = arith.truncf %225 : vector<2x128xf32> to vector<2x128xbf16>
    %cst_73 = arith.constant dense<0.000000e+00> : vector<2x512xf32>
    %247 = tpu.matmul %246, %6, %cst_73 {dimension_numbers = #tpu.dot_dimension_numbers<[1], [0], [0], [1], [0, 0, 1, 1], [], []>} : vector<2x128xbf16>, vector<128x512xbf16>, vector<2x512xf32> -> vector<2x512xf32>
    %248 = arith.addf %245, %247 : vector<2x512xf32>
    %249 = vector.extract_strided_slice %241 {offsets = [0, 0], sizes = [2, 128], strides = [1, 1]} : vector<2x512xf32> to vector<2x128xf32>
    %250 = arith.negf %249 : vector<2x128xf32>
    %251 = math.exp %250 : vector<2x128xf32>
    %cst_74 = arith.constant 1.000000e+00 : f32
    %252 = vector.broadcast %cst_74 : f32 to vector<2x128xf32>
    %253 = arith.addf %252, %251 : vector<2x128xf32>
    %254 = arith.divf %252, %253 : vector<2x128xf32>
    %255 = vector.extract_strided_slice %241 {offsets = [0, 128], sizes = [2, 128], strides = [1, 1]} : vector<2x512xf32> to vector<2x128xf32>
    %256 = arith.negf %255 : vector<2x128xf32>
    %257 = math.exp %256 : vector<2x128xf32>
    %cst_75 = arith.constant 1.000000e+00 : f32
    %258 = vector.broadcast %cst_75 : f32 to vector<2x128xf32>
    %259 = arith.addf %258, %257 : vector<2x128xf32>
    %260 = arith.divf %258, %259 : vector<2x128xf32>
    %261 = vector.extract_strided_slice %241 {offsets = [0, 256], sizes = [2, 128], strides = [1, 1]} : vector<2x512xf32> to vector<2x128xf32>
    %262 = math.tanh %261 : vector<2x128xf32>
    %263 = vector.extract_strided_slice %241 {offsets = [0, 384], sizes = [2, 128], strides = [1, 1]} : vector<2x512xf32> to vector<2x128xf32>
    %264 = arith.negf %263 : vector<2x128xf32>
    %265 = math.exp %264 : vector<2x128xf32>
    %cst_76 = arith.constant 1.000000e+00 : f32
    %266 = vector.broadcast %cst_76 : f32 to vector<2x128xf32>
    %267 = arith.addf %266, %265 : vector<2x128xf32>
    %268 = arith.divf %266, %267 : vector<2x128xf32>
    %269 = arith.mulf %260, %198 : vector<2x128xf32>
    %270 = arith.mulf %254, %262 : vector<2x128xf32>
    %271 = arith.addf %269, %270 : vector<2x128xf32>
    %272 = math.tanh %271 : vector<2x128xf32>
    %273 = arith.mulf %268, %272 : vector<2x128xf32>
    %274 = vector.extract_strided_slice %248 {offsets = [0, 0], sizes = [2, 128], strides = [1, 1]} : vector<2x512xf32> to vector<2x128xf32>
    %275 = arith.negf %274 : vector<2x128xf32>
    %276 = math.exp %275 : vector<2x128xf32>
    %cst_77 = arith.constant 1.000000e+00 : f32
    %277 = vector.broadcast %cst_77 : f32 to vector<2x128xf32>
    %278 = arith.addf %277, %276 : vector<2x128xf32>
    %279 = arith.divf %277, %278 : vector<2x128xf32>
    %280 = vector.extract_strided_slice %248 {offsets = [0, 128], sizes = [2, 128], strides = [1, 1]} : vector<2x512xf32> to vector<2x128xf32>
    %281 = arith.negf %280 : vector<2x128xf32>
    %282 = math.exp %281 : vector<2x128xf32>
    %cst_78 = arith.constant 1.000000e+00 : f32
    %283 = vector.broadcast %cst_78 : f32 to vector<2x128xf32>
    %284 = arith.addf %283, %282 : vector<2x128xf32>
    %285 = arith.divf %283, %284 : vector<2x128xf32>
    %286 = vector.extract_strided_slice %248 {offsets = [0, 256], sizes = [2, 128], strides = [1, 1]} : vector<2x512xf32> to vector<2x128xf32>
    %287 = math.tanh %286 : vector<2x128xf32>
    %288 = vector.extract_strided_slice %248 {offsets = [0, 384], sizes = [2, 128], strides = [1, 1]} : vector<2x512xf32> to vector<2x128xf32>
    %289 = arith.negf %288 : vector<2x128xf32>
    %290 = math.exp %289 : vector<2x128xf32>
    %cst_79 = arith.constant 1.000000e+00 : f32
    %291 = vector.broadcast %cst_79 : f32 to vector<2x128xf32>
    %292 = arith.addf %291, %290 : vector<2x128xf32>
    %293 = arith.divf %291, %292 : vector<2x128xf32>
    %294 = arith.mulf %285, %223 : vector<2x128xf32>
    %295 = arith.mulf %279, %287 : vector<2x128xf32>
    %296 = arith.addf %294, %295 : vector<2x128xf32>
    %297 = math.tanh %296 : vector<2x128xf32>
    %298 = arith.mulf %293, %297 : vector<2x128xf32>
    %299 = arith.index_cast %c3_i32 : i32 to index
    %c0_80 = arith.constant 0 : index
    %c0_81 = arith.constant 0 : index
    %300 = vector.load %arg4[%299, %c0_80, %c0_81] : memref<8x2x128xf32, #tpu.memory_space<vmem>>, vector<1x2x128xf32>
    %301 = vector.shape_cast %300 : vector<1x2x128xf32> to vector<2x128xf32>
    %302 = vector.shape_cast %273 : vector<2x128xf32> to vector<1x2x128xf32>
    tpu.vector_store %arg4[%299, %c0_80, %c0_81], %302 {strides = array<i32>} : memref<8x2x128xf32, #tpu.memory_space<vmem>>, vector<1x2x128xf32>,
    %303 = arith.index_cast %234 : i32 to index
    %c0_82 = arith.constant 0 : index
    %c0_83 = arith.constant 0 : index
    %304 = vector.load %arg5[%303, %c0_82, %c0_83] : memref<8x2x128xf32, #tpu.memory_space<vmem>>, vector<1x2x128xf32>
    %305 = vector.shape_cast %304 : vector<1x2x128xf32> to vector<2x128xf32>
    %306 = vector.shape_cast %298 : vector<2x128xf32> to vector<1x2x128xf32>
    tpu.vector_store %arg5[%303, %c0_82, %c0_83], %306 {strides = array<i32>} : memref<8x2x128xf32, #tpu.memory_space<vmem>>, vector<1x2x128xf32>,
    %c4_i32 = arith.constant 4 : i32
    %c7_i32_84 = arith.constant 7 : i32
    %307 = arith.subi %c7_i32_84, %c4_i32 : i32
    %308 = arith.index_cast %c4_i32 : i32 to index
    %c0_85 = arith.constant 0 : index
    %c0_86 = arith.constant 0 : index
    %309 = vector.load %arg1[%308, %c0_85, %c0_86] : memref<8x2x512xbf16, #tpu.memory_space<vmem>>, vector<1x2x512xbf16>
    %310 = vector.shape_cast %309 : vector<1x2x512xbf16> to vector<2x512xbf16>
    %311 = arith.extf %310 : vector<2x512xbf16> to vector<2x512xf32>
    %312 = arith.truncf %273 : vector<2x128xf32> to vector<2x128xbf16>
    %cst_87 = arith.constant dense<0.000000e+00> : vector<2x512xf32>
    %313 = tpu.matmul %312, %4, %cst_87 {dimension_numbers = #tpu.dot_dimension_numbers<[1], [0], [0], [1], [0, 0, 1, 1], [], []>} : vector<2x128xbf16>, vector<128x512xbf16>, vector<2x512xf32> -> vector<2x512xf32>
    %314 = arith.addf %311, %313 : vector<2x512xf32>
    %315 = arith.index_cast %307 : i32 to index
    %c0_88 = arith.constant 0 : index
    %c0_89 = arith.constant 0 : index
    %316 = vector.load %arg2[%315, %c0_88, %c0_89] : memref<8x2x512xbf16, #tpu.memory_space<vmem>>, vector<1x2x512xbf16>
    %317 = vector.shape_cast %316 : vector<1x2x512xbf16> to vector<2x512xbf16>
    %318 = arith.extf %317 : vector<2x512xbf16> to vector<2x512xf32>
    %319 = arith.truncf %298 : vector<2x128xf32> to vector<2x128xbf16>
    %cst_90 = arith.constant dense<0.000000e+00> : vector<2x512xf32>
    %320 = tpu.matmul %319, %6, %cst_90 {dimension_numbers = #tpu.dot_dimension_numbers<[1], [0], [0], [1], [0, 0, 1, 1], [], []>} : vector<2x128xbf16>, vector<128x512xbf16>, vector<2x512xf32> -> vector<2x512xf32>
    %321 = arith.addf %318, %320 : vector<2x512xf32>
    %322 = vector.extract_strided_slice %314 {offsets = [0, 0], sizes = [2, 128], strides = [1, 1]} : vector<2x512xf32> to vector<2x128xf32>
    %323 = arith.negf %322 : vector<2x128xf32>
    %324 = math.exp %323 : vector<2x128xf32>
    %cst_91 = arith.constant 1.000000e+00 : f32
    %325 = vector.broadcast %cst_91 : f32 to vector<2x128xf32>
    %326 = arith.addf %325, %324 : vector<2x128xf32>
    %327 = arith.divf %325, %326 : vector<2x128xf32>
    %328 = vector.extract_strided_slice %314 {offsets = [0, 128], sizes = [2, 128], strides = [1, 1]} : vector<2x512xf32> to vector<2x128xf32>
    %329 = arith.negf %328 : vector<2x128xf32>
    %330 = math.exp %329 : vector<2x128xf32>
    %cst_92 = arith.constant 1.000000e+00 : f32
    %331 = vector.broadcast %cst_92 : f32 to vector<2x128xf32>
    %332 = arith.addf %331, %330 : vector<2x128xf32>
    %333 = arith.divf %331, %332 : vector<2x128xf32>
    %334 = vector.extract_strided_slice %314 {offsets = [0, 256], sizes = [2, 128], strides = [1, 1]} : vector<2x512xf32> to vector<2x128xf32>
    %335 = math.tanh %334 : vector<2x128xf32>
    %336 = vector.extract_strided_slice %314 {offsets = [0, 384], sizes = [2, 128], strides = [1, 1]} : vector<2x512xf32> to vector<2x128xf32>
    %337 = arith.negf %336 : vector<2x128xf32>
    %338 = math.exp %337 : vector<2x128xf32>
    %cst_93 = arith.constant 1.000000e+00 : f32
    %339 = vector.broadcast %cst_93 : f32 to vector<2x128xf32>
    %340 = arith.addf %339, %338 : vector<2x128xf32>
    %341 = arith.divf %339, %340 : vector<2x128xf32>
    %342 = arith.mulf %333, %271 : vector<2x128xf32>
    %343 = arith.mulf %327, %335 : vector<2x128xf32>
    %344 = arith.addf %342, %343 : vector<2x128xf32>
    %345 = math.tanh %344 : vector<2x128xf32>
    %346 = arith.mulf %341, %345 : vector<2x128xf32>
    %347 = vector.extract_strided_slice %321 {offsets = [0, 0], sizes = [2, 128], strides = [1, 1]} : vector<2x512xf32> to vector<2x128xf32>
    %348 = arith.negf %347 : vector<2x128xf32>
    %349 = math.exp %348 : vector<2x128xf32>
    %cst_94 = arith.constant 1.000000e+00 : f32
    %350 = vector.broadcast %cst_94 : f32 to vector<2x128xf32>
    %351 = arith.addf %350, %349 : vector<2x128xf32>
    %352 = arith.divf %350, %351 : vector<2x128xf32>
    %353 = vector.extract_strided_slice %321 {offsets = [0, 128], sizes = [2, 128], strides = [1, 1]} : vector<2x512xf32> to vector<2x128xf32>
    %354 = arith.negf %353 : vector<2x128xf32>
    %355 = math.exp %354 : vector<2x128xf32>
    %cst_95 = arith.constant 1.000000e+00 : f32
    %356 = vector.broadcast %cst_95 : f32 to vector<2x128xf32>
    %357 = arith.addf %356, %355 : vector<2x128xf32>
    %358 = arith.divf %356, %357 : vector<2x128xf32>
    %359 = vector.extract_strided_slice %321 {offsets = [0, 256], sizes = [2, 128], strides = [1, 1]} : vector<2x512xf32> to vector<2x128xf32>
    %360 = math.tanh %359 : vector<2x128xf32>
    %361 = vector.extract_strided_slice %321 {offsets = [0, 384], sizes = [2, 128], strides = [1, 1]} : vector<2x512xf32> to vector<2x128xf32>
    %362 = arith.negf %361 : vector<2x128xf32>
    %363 = math.exp %362 : vector<2x128xf32>
    %cst_96 = arith.constant 1.000000e+00 : f32
    %364 = vector.broadcast %cst_96 : f32 to vector<2x128xf32>
    %365 = arith.addf %364, %363 : vector<2x128xf32>
    %366 = arith.divf %364, %365 : vector<2x128xf32>
    %367 = arith.mulf %358, %296 : vector<2x128xf32>
    %368 = arith.mulf %352, %360 : vector<2x128xf32>
    %369 = arith.addf %367, %368 : vector<2x128xf32>
    %370 = math.tanh %369 : vector<2x128xf32>
    %371 = arith.mulf %366, %370 : vector<2x128xf32>
    %372 = arith.index_cast %c4_i32 : i32 to index
    %c0_97 = arith.constant 0 : index
    %c0_98 = arith.constant 0 : index
    %373 = vector.load %arg4[%372, %c0_97, %c0_98] : memref<8x2x128xf32, #tpu.memory_space<vmem>>, vector<1x2x128xf32>
    %374 = vector.shape_cast %373 : vector<1x2x128xf32> to vector<2x128xf32>
    %375 = vector.shape_cast %346 : vector<2x128xf32> to vector<1x2x128xf32>
    tpu.vector_store %arg4[%372, %c0_97, %c0_98], %375 {strides = array<i32>} : memref<8x2x128xf32, #tpu.memory_space<vmem>>, vector<1x2x128xf32>,
    %376 = arith.index_cast %307 : i32 to index
    %c0_99 = arith.constant 0 : index
    %c0_100 = arith.constant 0 : index
    %377 = vector.load %arg5[%376, %c0_99, %c0_100] : memref<8x2x128xf32, #tpu.memory_space<vmem>>, vector<1x2x128xf32>
    %378 = vector.shape_cast %377 : vector<1x2x128xf32> to vector<2x128xf32>
    %379 = vector.shape_cast %371 : vector<2x128xf32> to vector<1x2x128xf32>
    tpu.vector_store %arg5[%376, %c0_99, %c0_100], %379 {strides = array<i32>} : memref<8x2x128xf32, #tpu.memory_space<vmem>>, vector<1x2x128xf32>,
    %c5_i32 = arith.constant 5 : i32
    %c7_i32_101 = arith.constant 7 : i32
    %380 = arith.subi %c7_i32_101, %c5_i32 : i32
    %381 = arith.index_cast %c5_i32 : i32 to index
    %c0_102 = arith.constant 0 : index
    %c0_103 = arith.constant 0 : index
    %382 = vector.load %arg1[%381, %c0_102, %c0_103] : memref<8x2x512xbf16, #tpu.memory_space<vmem>>, vector<1x2x512xbf16>
    %383 = vector.shape_cast %382 : vector<1x2x512xbf16> to vector<2x512xbf16>
    %384 = arith.extf %383 : vector<2x512xbf16> to vector<2x512xf32>
    %385 = arith.truncf %346 : vector<2x128xf32> to vector<2x128xbf16>
    %cst_104 = arith.constant dense<0.000000e+00> : vector<2x512xf32>
    %386 = tpu.matmul %385, %4, %cst_104 {dimension_numbers = #tpu.dot_dimension_numbers<[1], [0], [0], [1], [0, 0, 1, 1], [], []>} : vector<2x128xbf16>, vector<128x512xbf16>, vector<2x512xf32> -> vector<2x512xf32>
    %387 = arith.addf %384, %386 : vector<2x512xf32>
    %388 = arith.index_cast %380 : i32 to index
    %c0_105 = arith.constant 0 : index
    %c0_106 = arith.constant 0 : index
    %389 = vector.load %arg2[%388, %c0_105, %c0_106] : memref<8x2x512xbf16, #tpu.memory_space<vmem>>, vector<1x2x512xbf16>
    %390 = vector.shape_cast %389 : vector<1x2x512xbf16> to vector<2x512xbf16>
    %391 = arith.extf %390 : vector<2x512xbf16> to vector<2x512xf32>
    %392 = arith.truncf %371 : vector<2x128xf32> to vector<2x128xbf16>
    %cst_107 = arith.constant dense<0.000000e+00> : vector<2x512xf32>
    %393 = tpu.matmul %392, %6, %cst_107 {dimension_numbers = #tpu.dot_dimension_numbers<[1], [0], [0], [1], [0, 0, 1, 1], [], []>} : vector<2x128xbf16>, vector<128x512xbf16>, vector<2x512xf32> -> vector<2x512xf32>
    %394 = arith.addf %391, %393 : vector<2x512xf32>
    %395 = vector.extract_strided_slice %387 {offsets = [0, 0], sizes = [2, 128], strides = [1, 1]} : vector<2x512xf32> to vector<2x128xf32>
    %396 = arith.negf %395 : vector<2x128xf32>
    %397 = math.exp %396 : vector<2x128xf32>
    %cst_108 = arith.constant 1.000000e+00 : f32
    %398 = vector.broadcast %cst_108 : f32 to vector<2x128xf32>
    %399 = arith.addf %398, %397 : vector<2x128xf32>
    %400 = arith.divf %398, %399 : vector<2x128xf32>
    %401 = vector.extract_strided_slice %387 {offsets = [0, 128], sizes = [2, 128], strides = [1, 1]} : vector<2x512xf32> to vector<2x128xf32>
    %402 = arith.negf %401 : vector<2x128xf32>
    %403 = math.exp %402 : vector<2x128xf32>
    %cst_109 = arith.constant 1.000000e+00 : f32
    %404 = vector.broadcast %cst_109 : f32 to vector<2x128xf32>
    %405 = arith.addf %404, %403 : vector<2x128xf32>
    %406 = arith.divf %404, %405 : vector<2x128xf32>
    %407 = vector.extract_strided_slice %387 {offsets = [0, 256], sizes = [2, 128], strides = [1, 1]} : vector<2x512xf32> to vector<2x128xf32>
    %408 = math.tanh %407 : vector<2x128xf32>
    %409 = vector.extract_strided_slice %387 {offsets = [0, 384], sizes = [2, 128], strides = [1, 1]} : vector<2x512xf32> to vector<2x128xf32>
    %410 = arith.negf %409 : vector<2x128xf32>
    %411 = math.exp %410 : vector<2x128xf32>
    %cst_110 = arith.constant 1.000000e+00 : f32
    %412 = vector.broadcast %cst_110 : f32 to vector<2x128xf32>
    %413 = arith.addf %412, %411 : vector<2x128xf32>
    %414 = arith.divf %412, %413 : vector<2x128xf32>
    %415 = arith.mulf %406, %344 : vector<2x128xf32>
    %416 = arith.mulf %400, %408 : vector<2x128xf32>
    %417 = arith.addf %415, %416 : vector<2x128xf32>
    %418 = math.tanh %417 : vector<2x128xf32>
    %419 = arith.mulf %414, %418 : vector<2x128xf32>
    %420 = vector.extract_strided_slice %394 {offsets = [0, 0], sizes = [2, 128], strides = [1, 1]} : vector<2x512xf32> to vector<2x128xf32>
    %421 = arith.negf %420 : vector<2x128xf32>
    %422 = math.exp %421 : vector<2x128xf32>
    %cst_111 = arith.constant 1.000000e+00 : f32
    %423 = vector.broadcast %cst_111 : f32 to vector<2x128xf32>
    %424 = arith.addf %423, %422 : vector<2x128xf32>
    %425 = arith.divf %423, %424 : vector<2x128xf32>
    %426 = vector.extract_strided_slice %394 {offsets = [0, 128], sizes = [2, 128], strides = [1, 1]} : vector<2x512xf32> to vector<2x128xf32>
    %427 = arith.negf %426 : vector<2x128xf32>
    %428 = math.exp %427 : vector<2x128xf32>
    %cst_112 = arith.constant 1.000000e+00 : f32
    %429 = vector.broadcast %cst_112 : f32 to vector<2x128xf32>
    %430 = arith.addf %429, %428 : vector<2x128xf32>
    %431 = arith.divf %429, %430 : vector<2x128xf32>
    %432 = vector.extract_strided_slice %394 {offsets = [0, 256], sizes = [2, 128], strides = [1, 1]} : vector<2x512xf32> to vector<2x128xf32>
    %433 = math.tanh %432 : vector<2x128xf32>
    %434 = vector.extract_strided_slice %394 {offsets = [0, 384], sizes = [2, 128], strides = [1, 1]} : vector<2x512xf32> to vector<2x128xf32>
    %435 = arith.negf %434 : vector<2x128xf32>
    %436 = math.exp %435 : vector<2x128xf32>
    %cst_113 = arith.constant 1.000000e+00 : f32
    %437 = vector.broadcast %cst_113 : f32 to vector<2x128xf32>
    %438 = arith.addf %437, %436 : vector<2x128xf32>
    %439 = arith.divf %437, %438 : vector<2x128xf32>
    %440 = arith.mulf %431, %369 : vector<2x128xf32>
    %441 = arith.mulf %425, %433 : vector<2x128xf32>
    %442 = arith.addf %440, %441 : vector<2x128xf32>
    %443 = math.tanh %442 : vector<2x128xf32>
    %444 = arith.mulf %439, %443 : vector<2x128xf32>
    %445 = arith.index_cast %c5_i32 : i32 to index
    %c0_114 = arith.constant 0 : index
    %c0_115 = arith.constant 0 : index
    %446 = vector.load %arg4[%445, %c0_114, %c0_115] : memref<8x2x128xf32, #tpu.memory_space<vmem>>, vector<1x2x128xf32>
    %447 = vector.shape_cast %446 : vector<1x2x128xf32> to vector<2x128xf32>
    %448 = vector.shape_cast %419 : vector<2x128xf32> to vector<1x2x128xf32>
    tpu.vector_store %arg4[%445, %c0_114, %c0_115], %448 {strides = array<i32>} : memref<8x2x128xf32, #tpu.memory_space<vmem>>, vector<1x2x128xf32>,
    %449 = arith.index_cast %380 : i32 to index
    %c0_116 = arith.constant 0 : index
    %c0_117 = arith.constant 0 : index
    %450 = vector.load %arg5[%449, %c0_116, %c0_117] : memref<8x2x128xf32, #tpu.memory_space<vmem>>, vector<1x2x128xf32>
    %451 = vector.shape_cast %450 : vector<1x2x128xf32> to vector<2x128xf32>
    %452 = vector.shape_cast %444 : vector<2x128xf32> to vector<1x2x128xf32>
    tpu.vector_store %arg5[%449, %c0_116, %c0_117], %452 {strides = array<i32>} : memref<8x2x128xf32, #tpu.memory_space<vmem>>, vector<1x2x128xf32>,
    %c6_i32 = arith.constant 6 : i32
    %c7_i32_118 = arith.constant 7 : i32
    %453 = arith.subi %c7_i32_118, %c6_i32 : i32
    %454 = arith.index_cast %c6_i32 : i32 to index
    %c0_119 = arith.constant 0 : index
    %c0_120 = arith.constant 0 : index
    %455 = vector.load %arg1[%454, %c0_119, %c0_120] : memref<8x2x512xbf16, #tpu.memory_space<vmem>>, vector<1x2x512xbf16>
    %456 = vector.shape_cast %455 : vector<1x2x512xbf16> to vector<2x512xbf16>
    %457 = arith.extf %456 : vector<2x512xbf16> to vector<2x512xf32>
    %458 = arith.truncf %419 : vector<2x128xf32> to vector<2x128xbf16>
    %cst_121 = arith.constant dense<0.000000e+00> : vector<2x512xf32>
    %459 = tpu.matmul %458, %4, %cst_121 {dimension_numbers = #tpu.dot_dimension_numbers<[1], [0], [0], [1], [0, 0, 1, 1], [], []>} : vector<2x128xbf16>, vector<128x512xbf16>, vector<2x512xf32> -> vector<2x512xf32>
    %460 = arith.addf %457, %459 : vector<2x512xf32>
    %461 = arith.index_cast %453 : i32 to index
    %c0_122 = arith.constant 0 : index
    %c0_123 = arith.constant 0 : index
    %462 = vector.load %arg2[%461, %c0_122, %c0_123] : memref<8x2x512xbf16, #tpu.memory_space<vmem>>, vector<1x2x512xbf16>
    %463 = vector.shape_cast %462 : vector<1x2x512xbf16> to vector<2x512xbf16>
    %464 = arith.extf %463 : vector<2x512xbf16> to vector<2x512xf32>
    %465 = arith.truncf %444 : vector<2x128xf32> to vector<2x128xbf16>
    %cst_124 = arith.constant dense<0.000000e+00> : vector<2x512xf32>
    %466 = tpu.matmul %465, %6, %cst_124 {dimension_numbers = #tpu.dot_dimension_numbers<[1], [0], [0], [1], [0, 0, 1, 1], [], []>} : vector<2x128xbf16>, vector<128x512xbf16>, vector<2x512xf32> -> vector<2x512xf32>
    %467 = arith.addf %464, %466 : vector<2x512xf32>
    %468 = vector.extract_strided_slice %460 {offsets = [0, 0], sizes = [2, 128], strides = [1, 1]} : vector<2x512xf32> to vector<2x128xf32>
    %469 = arith.negf %468 : vector<2x128xf32>
    %470 = math.exp %469 : vector<2x128xf32>
    %cst_125 = arith.constant 1.000000e+00 : f32
    %471 = vector.broadcast %cst_125 : f32 to vector<2x128xf32>
    %472 = arith.addf %471, %470 : vector<2x128xf32>
    %473 = arith.divf %471, %472 : vector<2x128xf32>
    %474 = vector.extract_strided_slice %460 {offsets = [0, 128], sizes = [2, 128], strides = [1, 1]} : vector<2x512xf32> to vector<2x128xf32>
    %475 = arith.negf %474 : vector<2x128xf32>
    %476 = math.exp %475 : vector<2x128xf32>
    %cst_126 = arith.constant 1.000000e+00 : f32
    %477 = vector.broadcast %cst_126 : f32 to vector<2x128xf32>
    %478 = arith.addf %477, %476 : vector<2x128xf32>
    %479 = arith.divf %477, %478 : vector<2x128xf32>
    %480 = vector.extract_strided_slice %460 {offsets = [0, 256], sizes = [2, 128], strides = [1, 1]} : vector<2x512xf32> to vector<2x128xf32>
    %481 = math.tanh %480 : vector<2x128xf32>
    %482 = vector.extract_strided_slice %460 {offsets = [0, 384], sizes = [2, 128], strides = [1, 1]} : vector<2x512xf32> to vector<2x128xf32>
    %483 = arith.negf %482 : vector<2x128xf32>
    %484 = math.exp %483 : vector<2x128xf32>
    %cst_127 = arith.constant 1.000000e+00 : f32
    %485 = vector.broadcast %cst_127 : f32 to vector<2x128xf32>
    %486 = arith.addf %485, %484 : vector<2x128xf32>
    %487 = arith.divf %485, %486 : vector<2x128xf32>
    %488 = arith.mulf %479, %417 : vector<2x128xf32>
    %489 = arith.mulf %473, %481 : vector<2x128xf32>
    %490 = arith.addf %488, %489 : vector<2x128xf32>
    %491 = math.tanh %490 : vector<2x128xf32>
    %492 = arith.mulf %487, %491 : vector<2x128xf32>
    %493 = vector.extract_strided_slice %467 {offsets = [0, 0], sizes = [2, 128], strides = [1, 1]} : vector<2x512xf32> to vector<2x128xf32>
    %494 = arith.negf %493 : vector<2x128xf32>
    %495 = math.exp %494 : vector<2x128xf32>
    %cst_128 = arith.constant 1.000000e+00 : f32
    %496 = vector.broadcast %cst_128 : f32 to vector<2x128xf32>
    %497 = arith.addf %496, %495 : vector<2x128xf32>
    %498 = arith.divf %496, %497 : vector<2x128xf32>
    %499 = vector.extract_strided_slice %467 {offsets = [0, 128], sizes = [2, 128], strides = [1, 1]} : vector<2x512xf32> to vector<2x128xf32>
    %500 = arith.negf %499 : vector<2x128xf32>
    %501 = math.exp %500 : vector<2x128xf32>
    %cst_129 = arith.constant 1.000000e+00 : f32
    %502 = vector.broadcast %cst_129 : f32 to vector<2x128xf32>
    %503 = arith.addf %502, %501 : vector<2x128xf32>
    %504 = arith.divf %502, %503 : vector<2x128xf32>
    %505 = vector.extract_strided_slice %467 {offsets = [0, 256], sizes = [2, 128], strides = [1, 1]} : vector<2x512xf32> to vector<2x128xf32>
    %506 = math.tanh %505 : vector<2x128xf32>
    %507 = vector.extract_strided_slice %467 {offsets = [0, 384], sizes = [2, 128], strides = [1, 1]} : vector<2x512xf32> to vector<2x128xf32>
    %508 = arith.negf %507 : vector<2x128xf32>
    %509 = math.exp %508 : vector<2x128xf32>
    %cst_130 = arith.constant 1.000000e+00 : f32
    %510 = vector.broadcast %cst_130 : f32 to vector<2x128xf32>
    %511 = arith.addf %510, %509 : vector<2x128xf32>
    %512 = arith.divf %510, %511 : vector<2x128xf32>
    %513 = arith.mulf %504, %442 : vector<2x128xf32>
    %514 = arith.mulf %498, %506 : vector<2x128xf32>
    %515 = arith.addf %513, %514 : vector<2x128xf32>
    %516 = math.tanh %515 : vector<2x128xf32>
    %517 = arith.mulf %512, %516 : vector<2x128xf32>
    %518 = arith.index_cast %c6_i32 : i32 to index
    %c0_131 = arith.constant 0 : index
    %c0_132 = arith.constant 0 : index
    %519 = vector.load %arg4[%518, %c0_131, %c0_132] : memref<8x2x128xf32, #tpu.memory_space<vmem>>, vector<1x2x128xf32>
    %520 = vector.shape_cast %519 : vector<1x2x128xf32> to vector<2x128xf32>
    %521 = vector.shape_cast %492 : vector<2x128xf32> to vector<1x2x128xf32>
    tpu.vector_store %arg4[%518, %c0_131, %c0_132], %521 {strides = array<i32>} : memref<8x2x128xf32, #tpu.memory_space<vmem>>, vector<1x2x128xf32>,
    %522 = arith.index_cast %453 : i32 to index
    %c0_133 = arith.constant 0 : index
    %c0_134 = arith.constant 0 : index
    %523 = vector.load %arg5[%522, %c0_133, %c0_134] : memref<8x2x128xf32, #tpu.memory_space<vmem>>, vector<1x2x128xf32>
    %524 = vector.shape_cast %523 : vector<1x2x128xf32> to vector<2x128xf32>
    %525 = vector.shape_cast %517 : vector<2x128xf32> to vector<1x2x128xf32>
    tpu.vector_store %arg5[%522, %c0_133, %c0_134], %525 {strides = array<i32>} : memref<8x2x128xf32, #tpu.memory_space<vmem>>, vector<1x2x128xf32>,
    %c7_i32_135 = arith.constant 7 : i32
    %c7_i32_136 = arith.constant 7 : i32
    %526 = arith.subi %c7_i32_136, %c7_i32_135 : i32
    %527 = arith.index_cast %c7_i32_135 : i32 to index
    %c0_137 = arith.constant 0 : index
    %c0_138 = arith.constant 0 : index
    %528 = vector.load %arg1[%527, %c0_137, %c0_138] : memref<8x2x512xbf16, #tpu.memory_space<vmem>>, vector<1x2x512xbf16>
    %529 = vector.shape_cast %528 : vector<1x2x512xbf16> to vector<2x512xbf16>
    %530 = arith.extf %529 : vector<2x512xbf16> to vector<2x512xf32>
    %531 = arith.truncf %492 : vector<2x128xf32> to vector<2x128xbf16>
    %cst_139 = arith.constant dense<0.000000e+00> : vector<2x512xf32>
    %532 = tpu.matmul %531, %4, %cst_139 {dimension_numbers = #tpu.dot_dimension_numbers<[1], [0], [0], [1], [0, 0, 1, 1], [], []>} : vector<2x128xbf16>, vector<128x512xbf16>, vector<2x512xf32> -> vector<2x512xf32>
    %533 = arith.addf %530, %532 : vector<2x512xf32>
    %534 = arith.index_cast %526 : i32 to index
    %c0_140 = arith.constant 0 : index
    %c0_141 = arith.constant 0 : index
    %535 = vector.load %arg2[%534, %c0_140, %c0_141] : memref<8x2x512xbf16, #tpu.memory_space<vmem>>, vector<1x2x512xbf16>
    %536 = vector.shape_cast %535 : vector<1x2x512xbf16> to vector<2x512xbf16>
    %537 = arith.extf %536 : vector<2x512xbf16> to vector<2x512xf32>
    %538 = arith.truncf %517 : vector<2x128xf32> to vector<2x128xbf16>
    %cst_142 = arith.constant dense<0.000000e+00> : vector<2x512xf32>
    %539 = tpu.matmul %538, %6, %cst_142 {dimension_numbers = #tpu.dot_dimension_numbers<[1], [0], [0], [1], [0, 0, 1, 1], [], []>} : vector<2x128xbf16>, vector<128x512xbf16>, vector<2x512xf32> -> vector<2x512xf32>
    %540 = arith.addf %537, %539 : vector<2x512xf32>
    %541 = vector.extract_strided_slice %533 {offsets = [0, 0], sizes = [2, 128], strides = [1, 1]} : vector<2x512xf32> to vector<2x128xf32>
    %542 = arith.negf %541 : vector<2x128xf32>
    %543 = math.exp %542 : vector<2x128xf32>
    %cst_143 = arith.constant 1.000000e+00 : f32
    %544 = vector.broadcast %cst_143 : f32 to vector<2x128xf32>
    %545 = arith.addf %544, %543 : vector<2x128xf32>
    %546 = arith.divf %544, %545 : vector<2x128xf32>
    %547 = vector.extract_strided_slice %533 {offsets = [0, 128], sizes = [2, 128], strides = [1, 1]} : vector<2x512xf32> to vector<2x128xf32>
    %548 = arith.negf %547 : vector<2x128xf32>
    %549 = math.exp %548 : vector<2x128xf32>
    %cst_144 = arith.constant 1.000000e+00 : f32
    %550 = vector.broadcast %cst_144 : f32 to vector<2x128xf32>
    %551 = arith.addf %550, %549 : vector<2x128xf32>
    %552 = arith.divf %550, %551 : vector<2x128xf32>
    %553 = vector.extract_strided_slice %533 {offsets = [0, 256], sizes = [2, 128], strides = [1, 1]} : vector<2x512xf32> to vector<2x128xf32>
    %554 = math.tanh %553 : vector<2x128xf32>
    %555 = vector.extract_strided_slice %533 {offsets = [0, 384], sizes = [2, 128], strides = [1, 1]} : vector<2x512xf32> to vector<2x128xf32>
    %556 = arith.negf %555 : vector<2x128xf32>
    %557 = math.exp %556 : vector<2x128xf32>
    %cst_145 = arith.constant 1.000000e+00 : f32
    %558 = vector.broadcast %cst_145 : f32 to vector<2x128xf32>
    %559 = arith.addf %558, %557 : vector<2x128xf32>
    %560 = arith.divf %558, %559 : vector<2x128xf32>
    %561 = arith.mulf %552, %490 : vector<2x128xf32>
    %562 = arith.mulf %546, %554 : vector<2x128xf32>
    %563 = arith.addf %561, %562 : vector<2x128xf32>
    %564 = math.tanh %563 : vector<2x128xf32>
    %565 = arith.mulf %560, %564 : vector<2x128xf32>
    %566 = vector.extract_strided_slice %540 {offsets = [0, 0], sizes = [2, 128], strides = [1, 1]} : vector<2x512xf32> to vector<2x128xf32>
    %567 = arith.negf %566 : vector<2x128xf32>
    %568 = math.exp %567 : vector<2x128xf32>
    %cst_146 = arith.constant 1.000000e+00 : f32
    %569 = vector.broadcast %cst_146 : f32 to vector<2x128xf32>
    %570 = arith.addf %569, %568 : vector<2x128xf32>
    %571 = arith.divf %569, %570 : vector<2x128xf32>
    %572 = vector.extract_strided_slice %540 {offsets = [0, 128], sizes = [2, 128], strides = [1, 1]} : vector<2x512xf32> to vector<2x128xf32>
    %573 = arith.negf %572 : vector<2x128xf32>
    %574 = math.exp %573 : vector<2x128xf32>
    %cst_147 = arith.constant 1.000000e+00 : f32
    %575 = vector.broadcast %cst_147 : f32 to vector<2x128xf32>
    %576 = arith.addf %575, %574 : vector<2x128xf32>
    %577 = arith.divf %575, %576 : vector<2x128xf32>
    %578 = vector.extract_strided_slice %540 {offsets = [0, 256], sizes = [2, 128], strides = [1, 1]} : vector<2x512xf32> to vector<2x128xf32>
    %579 = math.tanh %578 : vector<2x128xf32>
    %580 = vector.extract_strided_slice %540 {offsets = [0, 384], sizes = [2, 128], strides = [1, 1]} : vector<2x512xf32> to vector<2x128xf32>
    %581 = arith.negf %580 : vector<2x128xf32>
    %582 = math.exp %581 : vector<2x128xf32>
    %cst_148 = arith.constant 1.000000e+00 : f32
    %583 = vector.broadcast %cst_148 : f32 to vector<2x128xf32>
    %584 = arith.addf %583, %582 : vector<2x128xf32>
    %585 = arith.divf %583, %584 : vector<2x128xf32>
    %586 = arith.mulf %577, %515 : vector<2x128xf32>
    %587 = arith.mulf %571, %579 : vector<2x128xf32>
    %588 = arith.addf %586, %587 : vector<2x128xf32>
    %589 = math.tanh %588 : vector<2x128xf32>
    %590 = arith.mulf %585, %589 : vector<2x128xf32>
    %591 = arith.index_cast %c7_i32_135 : i32 to index
    %c0_149 = arith.constant 0 : index
    %c0_150 = arith.constant 0 : index
    %592 = vector.load %arg4[%591, %c0_149, %c0_150] : memref<8x2x128xf32, #tpu.memory_space<vmem>>, vector<1x2x128xf32>
    %593 = vector.shape_cast %592 : vector<1x2x128xf32> to vector<2x128xf32>
    %594 = vector.shape_cast %565 : vector<2x128xf32> to vector<1x2x128xf32>
    tpu.vector_store %arg4[%591, %c0_149, %c0_150], %594 {strides = array<i32>} : memref<8x2x128xf32, #tpu.memory_space<vmem>>, vector<1x2x128xf32>,
    %595 = arith.index_cast %526 : i32 to index
    %c0_151 = arith.constant 0 : index
    %c0_152 = arith.constant 0 : index
    %596 = vector.load %arg5[%595, %c0_151, %c0_152] : memref<8x2x128xf32, #tpu.memory_space<vmem>>, vector<1x2x128xf32>
    %597 = vector.shape_cast %596 : vector<1x2x128xf32> to vector<2x128xf32>
    %598 = vector.shape_cast %590 : vector<2x128xf32> to vector<1x2x128xf32>
    tpu.vector_store %arg5[%595, %c0_151, %c0_152], %598 {strides = array<i32>} : memref<8x2x128xf32, #tpu.memory_space<vmem>>, vector<1x2x128xf32>,
    %c8_i32 = arith.constant 8 : i32
    %c0_153 = arith.constant 0 : index
    %c0_154 = arith.constant 0 : index
    %c0_155 = arith.constant 0 : index
    %599 = vector.load %arg6[%c0_153, %c0_154, %c0_155] : memref<2x2x128xf32, #tpu.memory_space<vmem>>, vector<1x2x128xf32>
    %600 = vector.shape_cast %599 : vector<1x2x128xf32> to vector<2x128xf32>
    %601 = vector.shape_cast %565 : vector<2x128xf32> to vector<1x2x128xf32>
    tpu.vector_store %arg6[%c0_153, %c0_154, %c0_155], %601 {strides = array<i32>} : memref<2x2x128xf32, #tpu.memory_space<vmem>>, vector<1x2x128xf32>,
    %c0_156 = arith.constant 0 : index
    %c0_157 = arith.constant 0 : index
    %c0_158 = arith.constant 0 : index
    %602 = vector.load %arg7[%c0_156, %c0_157, %c0_158] : memref<2x2x128xf32, #tpu.memory_space<vmem>>, vector<1x2x128xf32>
    %603 = vector.shape_cast %602 : vector<1x2x128xf32> to vector<2x128xf32>
    %604 = vector.shape_cast %563 : vector<2x128xf32> to vector<1x2x128xf32>
    tpu.vector_store %arg7[%c0_156, %c0_157, %c0_158], %604 {strides = array<i32>} : memref<2x2x128xf32, #tpu.memory_space<vmem>>, vector<1x2x128xf32>,
    %c1_159 = arith.constant 1 : index
    %c0_160 = arith.constant 0 : index
    %c0_161 = arith.constant 0 : index
    %605 = vector.load %arg6[%c1_159, %c0_160, %c0_161] : memref<2x2x128xf32, #tpu.memory_space<vmem>>, vector<1x2x128xf32>
    %606 = vector.shape_cast %605 : vector<1x2x128xf32> to vector<2x128xf32>
    %607 = vector.shape_cast %590 : vector<2x128xf32> to vector<1x2x128xf32>
    tpu.vector_store %arg6[%c1_159, %c0_160, %c0_161], %607 {strides = array<i32>} : memref<2x2x128xf32, #tpu.memory_space<vmem>>, vector<1x2x128xf32>,
    %c1_162 = arith.constant 1 : index
    %c0_163 = arith.constant 0 : index
    %c0_164 = arith.constant 0 : index
    %608 = vector.load %arg7[%c1_162, %c0_163, %c0_164] : memref<2x2x128xf32, #tpu.memory_space<vmem>>, vector<1x2x128xf32>
    %609 = vector.shape_cast %608 : vector<1x2x128xf32> to vector<2x128xf32>
    %610 = vector.shape_cast %588 : vector<2x128xf32> to vector<1x2x128xf32>
    tpu.vector_store %arg7[%c1_162, %c0_163, %c0_164], %610 {strides = array<i32>} : memref<2x2x128xf32, #tpu.memory_space<vmem>>, vector<1x2x128xf32>,
    return
  }
  func.func @transform_0(%arg0: i32) -> (i32, i32, i32) {
    %c0_i32 = arith.constant 0 : i32
    %c0_i32_0 = arith.constant 0 : i32
    %c0_i32_1 = arith.constant 0 : i32
    return %arg0, %c0_i32, %c0_i32_0 : i32, i32, i32
  }
  func.func @transform_1(%arg0: i32) -> (i32, i32, i32) {
    %c0_i32 = arith.constant 0 : i32
    %0 = arith.subi %c0_i32, %arg0 : i32
    %c0_i32_0 = arith.constant 0 : i32
    %c0_i32_1 = arith.constant 0 : i32
    %c0_i32_2 = arith.constant 0 : i32
    return %0, %c0_i32_0, %c0_i32_1 : i32, i32, i32
  }
  func.func @transform_2(%arg0: i32) -> (i32, i32, i32) {
    %c0_i32 = arith.constant 0 : i32
    %c0_i32_0 = arith.constant 0 : i32
    %c0_i32_1 = arith.constant 0 : i32
    %c0_i32_2 = arith.constant 0 : i32
    return %c0_i32, %c0_i32_0, %c0_i32_1 : i32, i32, i32
  }
  func.func @transform_3(%arg0: i32) -> (i32, i32, i32) {
    %c0_i32 = arith.constant 0 : i32
    %c0_i32_0 = arith.constant 0 : i32
    %c0_i32_1 = arith.constant 0 : i32
    return %arg0, %c0_i32, %c0_i32_0 : i32, i32, i32
  }
  func.func @transform_4(%arg0: i32) -> (i32, i32, i32) {
    %c0_i32 = arith.constant 0 : i32
    %0 = arith.subi %c0_i32, %arg0 : i32
    %c0_i32_0 = arith.constant 0 : i32
    %c0_i32_1 = arith.constant 0 : i32
    %c0_i32_2 = arith.constant 0 : i32
    return %0, %c0_i32_0, %c0_i32_1 : i32, i32, i32
  }
}

module attributes {stable_mosaic.version = 11 : i64} {
  func.func @_join_kernel(%arg0: i32, %arg1: memref<8x2x128xf32, #tpu.memory_space<vmem>>, %arg2: memref<8x2x128xf32, #tpu.memory_space<vmem>>, %arg3: memref<8x2x32xf32, #tpu.memory_space<vmem>>) attributes {dimension_semantics = [#tpu.dimension_semantics<parallel>], iteration_bounds = array<i64: 1>, scalar_prefetch = 0 : i64, scratch_operands = 0 : i64, tpu.core_type = #tpu.core_type<tc>, window_params = [{transform_indices = @transform_0, window_bounds = array<i64: 8, 2, 128>}, {transform_indices = @transform_1, window_bounds = array<i64: 8, 2, 128>}, {transform_indices = @transform_2, window_bounds = array<i64: 8, 2, 32>}]} {
    %c0 = arith.constant 0 : index
    %c0_0 = arith.constant 0 : index
    %c0_1 = arith.constant 0 : index
    %0 = vector.load %arg1[%c0, %c0_0, %c0_1] : memref<8x2x128xf32, #tpu.memory_space<vmem>>, vector<8x2x128xf32>
    %c0_2 = arith.constant 0 : index
    %c0_3 = arith.constant 0 : index
    %c0_4 = arith.constant 0 : index
    %1 = vector.load %arg2[%c0_2, %c0_3, %c0_4] : memref<8x2x128xf32, #tpu.memory_space<vmem>>, vector<8x2x128xf32>
    %2 = arith.addf %0, %1 : vector<8x2x128xf32>
    %3 = vector.extract_strided_slice %2 {offsets = [0, 0, 0], sizes = [8, 2, 32], strides = [1, 1, 1]} : vector<8x2x128xf32> to vector<8x2x32xf32>
    %c0_5 = arith.constant 0 : index
    %c0_6 = arith.constant 0 : index
    %c0_7 = arith.constant 0 : index
    %4 = vector.load %arg3[%c0_5, %c0_6, %c0_7] : memref<8x2x32xf32, #tpu.memory_space<vmem>>, vector<8x2x32xf32>
    tpu.vector_store %arg3[%c0_5, %c0_6, %c0_7], %3 {strides = array<i32>} : memref<8x2x32xf32, #tpu.memory_space<vmem>>, vector<8x2x32xf32>,
    return
  }
  func.func @transform_0(%arg0: i32) -> (i32, i32, i32) {
    %c0_i32 = arith.constant 0 : i32
    %c0_i32_0 = arith.constant 0 : i32
    %c0_i32_1 = arith.constant 0 : i32
    return %arg0, %c0_i32, %c0_i32_0 : i32, i32, i32
  }
  func.func @transform_1(%arg0: i32) -> (i32, i32, i32) {
    %c0_i32 = arith.constant 0 : i32
    %c0_i32_0 = arith.constant 0 : i32
    %c0_i32_1 = arith.constant 0 : i32
    return %arg0, %c0_i32, %c0_i32_0 : i32, i32, i32
  }
  func.func @transform_2(%arg0: i32) -> (i32, i32, i32) {
    %c0_i32 = arith.constant 0 : i32
    %c0_i32_0 = arith.constant 0 : i32
    %c0_i32_1 = arith.constant 0 : i32
    return %arg0, %c0_i32, %c0_i32_0 : i32, i32, i32
  }
}

</mosaic_0001>

<llo_original>
// kernel: squeeze.1
$region0: #{squeeze.1}
  %s0 = inlined_call_operand.vmem [shape: bf16[128,1,32], index: 0, kind: input, shape index: {}]
  %s1 = inlined_call_operand.vmem [shape: bf16[4,32,32], index: 1, kind: output, shape index: {}]
  $region1: #{squeeze.1} parent=0
    #allocation0 [shape = 'u8[131072]{0}', space=vmem, size = 0x20000, scoped, tag = 'scoped mem for output reshape']
    #allocation1 [shape = 'u8[16384]{0}', space=vmem, size = 0x4000, scoped, tag = 'scoped mem for input reshape']
    %s3 = smul.u32 4, 2
    %s4 = sshllo.u32 0, %s3
    %s5 = smul.addr 4, 3
    %s6 = scalar_lea.vmem %s0, %s5
    %s7 = sshrl.u32 %s4, 1
    %s8 = sor.u32 %s4, %s7
    %s9 = sand.u32 %s8, 85
    %s10 = sshrl.u32 %s9, 1
    %s11 = sor.u32 %s9, %s10
    %s12 = sand.u32 51, %s11
    %s13 = sshrl.u32 %s12, 2
    %s14 = sor.u32 %s12, %s13
    %s15 = sand.u32 15, %s14
    %v16 = vld [vmem:[%s6] sm:%s15]
    %v17 = vunpack.c.l.bf16 %v16
    %v18 = vunpack.c.h.bf16 %v16
    %s19 = scalar_lea.vmem [#allocation1], 24
    %20 = vst [vmem:[%s19] sm:%s4] %v17
    %s21 = smul.addr 4, 2
    %s22 = scalar_lea.vmem %s0, %s21
    %s23 = sshrl.u32 %s4, 1
    %s24 = sor.u32 %s4, %s23
    %s25 = sand.u32 %s24, 85
    %s26 = sshrl.u32 %s25, 1
    %s27 = sor.u32 %s25, %s26
    %s28 = sand.u32 51, %s27
    %s29 = sshrl.u32 %s28, 2
    %s30 = sor.u32 %s28, %s29
    %s31 = sand.u32 15, %s30
    %v32 = vld [vmem:[%s22] sm:%s31]
    %v33 = vunpack.c.l.bf16 %v32
    %v34 = vunpack.c.h.bf16 %v32
    %s35 = scalar_lea.vmem [#allocation1], 16
    %36 = vst [vmem:[%s35] sm:%s4] %v33
    %s37 = scalar_lea.vmem %s0, 4
    %s38 = sshrl.u32 %s4, 1
    %s39 = sor.u32 %s4, %s38
    %s40 = sand.u32 %s39, 85
    %s41 = sshrl.u32 %s40, 1
    %s42 = sor.u32 %s40, %s41
    %s43 = sand.u32 51, %s42
    %s44 = sshrl.u32 %s43, 2
    %s45 = sor.u32 %s43, %s44
    %s46 = sand.u32 15, %s45
    %v47 = vld [vmem:[%s37] sm:%s46]
    %v48 = vunpack.c.l.bf16 %v47
    %v49 = vunpack.c.h.bf16 %v47
    %s50 = scalar_lea.vmem [#allocation1], 8
    %51 = vst [vmem:[%s50] sm:%s4] %v48
    %s52 = sshrl.u32 %s4, 1
    %s53 = sor.u32 %s4, %s52
    %s54 = sand.u32 %s53, 85
    %s55 = sshrl.u32 %s54, 1
    %s56 = sor.u32 %s54, %s55
    %s57 = sand.u32 51, %s56
    %s58 = sshrl.u32 %s57, 2
    %s59 = sor.u32 %s57, %s58
    %s60 = sand.u32 15, %s59
    %v61 = vld [vmem:[%s0] sm:%s60]
    %v62 = vunpack.c.l.bf16 %v61
    %v63 = vunpack.c.h.bf16 %v61
    %64 = vst [vmem:[#allocation1] sm:%s4] %v62
    %v65 = vld [vmem:[#allocation1] sm:$0xff]
    %vm66 = vcmask 261120
    %67 = vst.msk [vmem:[#allocation0] ss:$8 sm:$0xf] %vm66, %v65
    %68 = vst.msk [vmem:[#allocation0] ss:$8 sm:$0xf0] %vm66, %v65
    %s69 = scalar_lea.vmem [#allocation1], 8
    %v70 = vld [vmem:[%s69] sm:$0xff]
    %vm71 = vcmask 261120
    %s72 = scalar_lea.vmem [#allocation0], 64
    %73 = vst.msk [vmem:[%s72] ss:$8 sm:$0xf] %vm71, %v70
    %s74 = scalar_lea.vmem [#allocation0], 64
    %75 = vst.msk [vmem:[%s74] ss:$8 sm:$0xf0] %vm71, %v70
    %s76 = scalar_lea.vmem [#allocation1], 16
    %v77 = vld [vmem:[%s76] sm:$0xff]
    %vm78 = vcmask 261120
    %s79 = scalar_lea.vmem [#allocation0], 128
    %80 = vst.msk [vmem:[%s79] ss:$8 sm:$0xf] %vm78, %v77
    %s81 = scalar_lea.vmem [#allocation0], 128
    %82 = vst.msk [vmem:[%s81] ss:$8 sm:$0xf0] %vm78, %v77
    %s83 = scalar_lea.vmem [#allocation1], 24
    %v84 = vld [vmem:[%s83] sm:$0xff]
    %vm85 = vcmask 261120
    %s86 = scalar_lea.vmem [#allocation0], 192
    %87 = vst.msk [vmem:[%s86] ss:$8 sm:$0xf] %vm85, %v84
    %s88 = scalar_lea.vmem [#allocation0], 192
    %89 = vst.msk [vmem:[%s88] ss:$8 sm:$0xf0] %vm85, %v84
    %v90 = vld [vmem:[#allocation1] sm:$0xff]
    %91 = vrot.lane.b32.xlu0 %v90, 96
    %v92 = vpop.permute.xlu0 %91
    %vm93 = vcmask 261120
    %s94 = scalar_lea.vmem [#allocation0], 1
    %95 = vst.msk [vmem:[%s94] ss:$8 sm:$0xf] %vm93, %v92
    %s96 = scalar_lea.vmem [#allocation0], 1
    %97 = vst.msk [vmem:[%s96] ss:$8 sm:$0xf0] %vm93, %v92
    %s98 = scalar_lea.vmem [#allocation1], 8
    %v99 = vld [vmem:[%s98] sm:$0xff]
    %100 = vrot.lane.b32.xlu0 %v99, 96
    %v101 = vpop.permute.xlu0 %100
    %vm102 = vcmask 261120
    %s103 = scalar_lea.vmem [#allocation0], 65
    %104 = vst.msk [vmem:[%s103] ss:$8 sm:$0xf] %vm102, %v101
    %s105 = scalar_lea.vmem [#allocation0], 65
    %106 = vst.msk [vmem:[%s105] ss:$8 sm:$0xf0] %vm102, %v101
    %s107 = scalar_lea.vmem [#allocation1], 16
    %v108 = vld [vmem:[%s107] sm:$0xff]
    %109 = vrot.lane.b32.xlu0 %v108, 96
    %v110 = vpop.permute.xlu0 %109
    %vm111 = vcmask 261120
    %s112 = scalar_lea.vmem [#allocation0], 129
    %113 = vst.msk [vmem:[%s112] ss:$8 sm:$0xf] %vm111, %v110
    %s114 = scalar_lea.vmem [#allocation0], 129
    %115 = vst.msk [vmem:[%s114] ss:$8 sm:$0xf0] %vm111, %v110
    %s116 = scalar_lea.vmem [#allocation1], 24
    %v117 = vld [vmem:[%s116] sm:$0xff]
    %118 = vrot.lane.b32.xlu0 %v117, 96
    %v119 = vpop.permute.xlu0 %118
    %vm120 = vcmask 261120
    %s121 = scalar_lea.vmem [#allocation0], 193
    %122 = vst.msk [vmem:[%s121] ss:$8 sm:$0xf] %vm120, %v119
    %s123 = scalar_lea.vmem [#allocation0], 193
    %124 = vst.msk [vmem:[%s123] ss:$8 sm:$0xf0] %vm120, %v119
    %v125 = vld [vmem:[#allocation1] sm:$0xff]
    %126 = vrot.lane.b32.xlu0 %v125, 64
    %v127 = vpop.permute.xlu0 %126
    %vm128 = vcmask 261120
    %s129 = scalar_lea.vmem [#allocation0], 2
    %130 = vst.msk [vmem:[%s129] ss:$8 sm:$0xf] %vm128, %v127
    %s131 = scalar_lea.vmem [#allocation0], 2
    %132 = vst.msk [vmem:[%s131] ss:$8 sm:$0xf0] %vm128, %v127
    %s133 = scalar_lea.vmem [#allocation1], 8
    %v134 = vld [vmem:[%s133] sm:$0xff]
    %135 = vrot.lane.b32.xlu0 %v134, 64
    %v136 = vpop.permute.xlu0 %135
    %vm137 = vcmask 261120
    %s138 = scalar_lea.vmem [#allocation0], 66
    %139 = vst.msk [vmem:[%s138] ss:$8 sm:$0xf] %vm137, %v136
    %s140 = scalar_lea.vmem [#allocation0], 66
    %141 = vst.msk [vmem:[%s140] ss:$8 sm:$0xf0] %vm137, %v136
    %s142 = scalar_lea.vmem [#allocation1], 16
    %v143 = vld [vmem:[%s142] sm:$0xff]
    %144 = vrot.lane.b32.xlu0 %v143, 64
    %v145 = vpop.permute.xlu0 %144
    %vm146 = vcmask 261120
    %s147 = scalar_lea.vmem [#allocation0], 130
    %148 = vst.msk [vmem:[%s147] ss:$8 sm:$0xf] %vm146, %v145
    %s149 = scalar_lea.vmem [#allocation0], 130
    %150 = vst.msk [vmem:[%s149] ss:$8 sm:$0xf0] %vm146, %v145
    %s151 = scalar_lea.vmem [#allocation1], 24
    %v152 = vld [vmem:[%s151] sm:$0xff]
    %153 = vrot.lane.b32.xlu0 %v152, 64
    %v154 = vpop.permute.xlu0 %153
    %vm155 = vcmask 261120
    %s156 = scalar_lea.vmem [#allocation0], 194
    %157 = vst.msk [vmem:[%s156] ss:$8 sm:$0xf] %vm155, %v154
    %s158 = scalar_lea.vmem [#allocation0], 194
    %159 = vst.msk [vmem:[%s158] ss:$8 sm:$0xf0] %vm155, %v154
    %v160 = vld [vmem:[#allocation1] sm:$0xff]
    %161 = vrot.lane.b32.xlu0 %v160, 32
    %v162 = vpop.permute.xlu0 %161
    %vm163 = vcmask 261120
    %s164 = scalar_lea.vmem [#allocation0], 3
    %165 = vst.msk [vmem:[%s164] ss:$8 sm:$0xf] %vm163, %v162
    %s166 = scalar_lea.vmem [#allocation0], 3
    %167 = vst.msk [vmem:[%s166] ss:$8 sm:$0xf0] %vm163, %v162
    %s168 = scalar_lea.vmem [#allocation1], 8
    %v169 = vld [vmem:[%s168] sm:$0xff]
    %170 = vrot.lane.b32.xlu0 %v169, 32
    %v171 = vpop.permute.xlu0 %170
    %vm172 = vcmask 261120
    %s173 = scalar_lea.vmem [#allocation0], 67
    %174 = vst.msk [vmem:[%s173] ss:$8 sm:$0xf] %vm172, %v171
    %s175 = scalar_lea.vmem [#allocation0], 67
    %176 = vst.msk [vmem:[%s175] ss:$8 sm:$0xf0] %vm172, %v171
    %s177 = scalar_lea.vmem [#allocation1], 16
    %v178 = vld [vmem:[%s177] sm:$0xff]
    %179 = vrot.lane.b32.xlu0 %v178, 32
    %v180 = vpop.permute.xlu0 %179
    %vm181 = vcmask 261120
    %s182 = scalar_lea.vmem [#allocation0], 131
    %183 = vst.msk [vmem:[%s182] ss:$8 sm:$0xf] %vm181, %v180
    %s184 = scalar_lea.vmem [#allocation0], 131
    %185 = vst.msk [vmem:[%s184] ss:$8 sm:$0xf0] %vm181, %v180
    %s186 = scalar_lea.vmem [#allocation1], 24
    %v187 = vld [vmem:[%s186] sm:$0xff]
    %188 = vrot.lane.b32.xlu0 %v187, 32
    %v189 = vpop.permute.xlu0 %188
    %vm190 = vcmask 261120
    %s191 = scalar_lea.vmem [#allocation0], 195
    %192 = vst.msk [vmem:[%s191] ss:$8 sm:$0xf] %vm190, %v189
    %s193 = scalar_lea.vmem [#allocation0], 195
    %194 = vst.msk [vmem:[%s193] ss:$8 sm:$0xf0] %vm190, %v189
    %s196 = smul.u32 2, 2
    %s197 = sshllo.u32 0, %s196
    %s198 = sshrl.u32 %s196, 1
    %v199 = vld [vmem:[#allocation0] sm:%s197]
    %v200 = vpack.c.bf16 0.0, %v199
    %s201 = sshllo.u32 0, %s198
    %202 = vst [vmem:[%s1] sm:%s201] %v200
    %s203 = scalar_lea.vmem [#allocation0], 8
    %v204 = vld [vmem:[%s203] sm:%s197]
    %v205 = vpack.c.bf16 0.0, %v204
    %s206 = sshllo.u32 0, %s198
    %s207 = scalar_lea.vmem %s1, 2
    %208 = vst [vmem:[%s207] sm:%s206] %v205
    %s209 = scalar_lea.vmem [#allocation0], 16
    %v210 = vld [vmem:[%s209] sm:%s197]
    %v211 = vpack.c.bf16 0.0, %v210
    %s212 = sshllo.u32 0, %s198
    %s213 = smul.addr 2, 2
    %s214 = scalar_lea.vmem %s1, %s213
    %215 = vst [vmem:[%s214] sm:%s212] %v211
    %s216 = scalar_lea.vmem [#allocation0], 24
    %v217 = vld [vmem:[%s216] sm:%s197]
    %v218 = vpack.c.bf16 0.0, %v217
    %s219 = sshllo.u32 0, %s198
    %s220 = smul.addr 2, 3
    %s221 = scalar_lea.vmem %s1, %s220
    %222 = vst [vmem:[%s221] sm:%s219] %v218
    %s223 = scalar_lea.vmem [#allocation0], 32
    %v224 = vld [vmem:[%s223] sm:%s197]
    %v225 = vpack.c.bf16 0.0, %v224
    %s226 = sshllo.u32 0, %s198
    %s227 = smul.addr 2, 4
    %s228 = scalar_lea.vmem %s1, %s227
    %229 = vst [vmem:[%s228] sm:%s226] %v225
    %s230 = scalar_lea.vmem [#allocation0], 40
    %v231 = vld [vmem:[%s230] sm:%s197]
    %v232 = vpack.c.bf16 0.0, %v231
    %s233 = sshllo.u32 0, %s198
    %s234 = smul.addr 2, 5
    %s235 = scalar_lea.vmem %s1, %s234
    %236 = vst [vmem:[%s235] sm:%s233] %v232
    %s237 = scalar_lea.vmem [#allocation0], 48
    %v238 = vld [vmem:[%s237] sm:%s197]
    %v239 = vpack.c.bf16 0.0, %v238
    %s240 = sshllo.u32 0, %s198
    %s241 = smul.addr 2, 6
    %s242 = scalar_lea.vmem %s1, %s241
    %243 = vst [vmem:[%s242] sm:%s240] %v239
    %s244 = scalar_lea.vmem [#allocation0], 56
    %v245 = vld [vmem:[%s244] sm:%s197]
    %v246 = vpack.c.bf16 0.0, %v245
    %s247 = sshllo.u32 0, %s198
    %s248 = smul.addr 2, 7
    %s249 = scalar_lea.vmem %s1, %s248
    %250 = vst [vmem:[%s249] sm:%s247] %v246
    %s251 = scalar_lea.vmem [#allocation0], 64
    %v252 = vld [vmem:[%s251] sm:%s197]
    %v253 = vpack.c.bf16 0.0, %v252
    %s254 = sshllo.u32 0, %s198
    %s255 = smul.addr 2, 8
    %s256 = scalar_lea.vmem %s1, %s255
    %257 = vst [vmem:[%s256] sm:%s254] %v253
    %s258 = scalar_lea.vmem [#allocation0], 72
    %v259 = vld [vmem:[%s258] sm:%s197]
    %v260 = vpack.c.bf16 0.0, %v259
    %s261 = sshllo.u32 0, %s198
    %s262 = smul.addr 2, 9
    %s263 = scalar_lea.vmem %s1, %s262
    %264 = vst [vmem:[%s263] sm:%s261] %v260
    %s265 = scalar_lea.vmem [#allocation0], 80
    %v266 = vld [vmem:[%s265] sm:%s197]
    %v267 = vpack.c.bf16 0.0, %v266
    %s268 = sshllo.u32 0, %s198
    %s269 = smul.addr 2, 10
    %s270 = scalar_lea.vmem %s1, %s269
    %271 = vst [vmem:[%s270] sm:%s268] %v267
    %s272 = scalar_lea.vmem [#allocation0], 88
    %v273 = vld [vmem:[%s272] sm:%s197]
    %v274 = vpack.c.bf16 0.0, %v273
    %s275 = sshllo.u32 0, %s198
    %s276 = smul.addr 2, 11
    %s277 = scalar_lea.vmem %s1, %s276
    %278 = vst [vmem:[%s277] sm:%s275] %v274
    %s279 = scalar_lea.vmem [#allocation0], 96
    %v280 = vld [vmem:[%s279] sm:%s197]
    %v281 = vpack.c.bf16 0.0, %v280
    %s282 = sshllo.u32 0, %s198
    %s283 = smul.addr 2, 12
    %s284 = scalar_lea.vmem %s1, %s283
    %285 = vst [vmem:[%s284] sm:%s282] %v281
    %s286 = scalar_lea.vmem [#allocation0], 104
    %v287 = vld [vmem:[%s286] sm:%s197]
    %v288 = vpack.c.bf16 0.0, %v287
    %s289 = sshllo.u32 0, %s198
    %s290 = smul.addr 2, 13
    %s291 = scalar_lea.vmem %s1, %s290
    %292 = vst [vmem:[%s291] sm:%s289] %v288
    %s293 = scalar_lea.vmem [#allocation0], 112
    %v294 = vld [vmem:[%s293] sm:%s197]
    %v295 = vpack.c.bf16 0.0, %v294
    %s296 = sshllo.u32 0, %s198
    %s297 = smul.addr 2, 14
    %s298 = scalar_lea.vmem %s1, %s297
    %299 = vst [vmem:[%s298] sm:%s296] %v295
    %s300 = scalar_lea.vmem [#allocation0], 120
    %v301 = vld [vmem:[%s300] sm:%s197]
    %v302 = vpack.c.bf16 0.0, %v301
    %s303 = sshllo.u32 0, %s198
    %s304 = smul.addr 2, 15
    %s305 = scalar_lea.vmem %s1, %s304
    %306 = vst [vmem:[%s305] sm:%s303] %v302
    %s307 = scalar_lea.vmem [#allocation0], 128
    %v308 = vld [vmem:[%s307] sm:%s197]
    %v309 = vpack.c.bf16 0.0, %v308
    %s310 = sshllo.u32 0, %s198
    %s311 = smul.addr 2, 16
    %s312 = scalar_lea.vmem %s1, %s311
    %313 = vst [vmem:[%s312] sm:%s310] %v309
    %s314 = scalar_lea.vmem [#allocation0], 136
    %v315 = vld [vmem:[%s314] sm:%s197]
    %v316 = vpack.c.bf16 0.0, %v315
    %s317 = sshllo.u32 0, %s198
    %s318 = smul.addr 2, 17
    %s319 = scalar_lea.vmem %s1, %s318
    %320 = vst [vmem:[%s319] sm:%s317] %v316
    %s321 = scalar_lea.vmem [#allocation0], 144
    %v322 = vld [vmem:[%s321] sm:%s197]
    %v323 = vpack.c.bf16 0.0, %v322
    %s324 = sshllo.u32 0, %s198
    %s325 = smul.addr 2, 18
    %s326 = scalar_lea.vmem %s1, %s325
    %327 = vst [vmem:[%s326] sm:%s324] %v323
    %s328 = scalar_lea.vmem [#allocation0], 152
    %v329 = vld [vmem:[%s328] sm:%s197]
    %v330 = vpack.c.bf16 0.0, %v329
    %s331 = sshllo.u32 0, %s198
    %s332 = smul.addr 2, 19
    %s333 = scalar_lea.vmem %s1, %s332
    %334 = vst [vmem:[%s333] sm:%s331] %v330
    %s335 = scalar_lea.vmem [#allocation0], 160
    %v336 = vld [vmem:[%s335] sm:%s197]
    %v337 = vpack.c.bf16 0.0, %v336
    %s338 = sshllo.u32 0, %s198
    %s339 = smul.addr 2, 20
    %s340 = scalar_lea.vmem %s1, %s339
    %341 = vst [vmem:[%s340] sm:%s338] %v337
    %s342 = scalar_lea.vmem [#allocation0], 168
    %v343 = vld [vmem:[%s342] sm:%s197]
    %v344 = vpack.c.bf16 0.0, %v343
    %s345 = sshllo.u32 0, %s198
    %s346 = smul.addr 2, 21
    %s347 = scalar_lea.vmem %s1, %s346
    %348 = vst [vmem:[%s347] sm:%s345] %v344
    %s349 = scalar_lea.vmem [#allocation0], 176
    %v350 = vld [vmem:[%s349] sm:%s197]
    %v351 = vpack.c.bf16 0.0, %v350
    %s352 = sshllo.u32 0, %s198
    %s353 = smul.addr 2, 22
    %s354 = scalar_lea.vmem %s1, %s353
    %355 = vst [vmem:[%s354] sm:%s352] %v351
    %s356 = scalar_lea.vmem [#allocation0], 184
    %v357 = vld [vmem:[%s356] sm:%s197]
    %v358 = vpack.c.bf16 0.0, %v357
    %s359 = sshllo.u32 0, %s198
    %s360 = smul.addr 2, 23
    %s361 = scalar_lea.vmem %s1, %s360
    %362 = vst [vmem:[%s361] sm:%s359] %v358
    %s363 = scalar_lea.vmem [#allocation0], 192
    %v364 = vld [vmem:[%s363] sm:%s197]
    %v365 = vpack.c.bf16 0.0, %v364
    %s366 = sshllo.u32 0, %s198
    %s367 = smul.addr 2, 24
    %s368 = scalar_lea.vmem %s1, %s367
    %369 = vst [vmem:[%s368] sm:%s366] %v365
    %s370 = scalar_lea.vmem [#allocation0], 200
    %v371 = vld [vmem:[%s370] sm:%s197]
    %v372 = vpack.c.bf16 0.0, %v371
    %s373 = sshllo.u32 0, %s198
    %s374 = smul.addr 2, 25
    %s375 = scalar_lea.vmem %s1, %s374
    %376 = vst [vmem:[%s375] sm:%s373] %v372
    %s377 = scalar_lea.vmem [#allocation0], 208
    %v378 = vld [vmem:[%s377] sm:%s197]
    %v379 = vpack.c.bf16 0.0, %v378
    %s380 = sshllo.u32 0, %s198
    %s381 = smul.addr 2, 26
    %s382 = scalar_lea.vmem %s1, %s381
    %383 = vst [vmem:[%s382] sm:%s380] %v379
    %s384 = scalar_lea.vmem [#allocation0], 216
    %v385 = vld [vmem:[%s384] sm:%s197]
    %v386 = vpack.c.bf16 0.0, %v385
    %s387 = sshllo.u32 0, %s198
    %s388 = smul.addr 2, 27
    %s389 = scalar_lea.vmem %s1, %s388
    %390 = vst [vmem:[%s389] sm:%s387] %v386
    %s391 = scalar_lea.vmem [#allocation0], 224
    %v392 = vld [vmem:[%s391] sm:%s197]
    %v393 = vpack.c.bf16 0.0, %v392
    %s394 = sshllo.u32 0, %s198
    %s395 = smul.addr 2, 28
    %s396 = scalar_lea.vmem %s1, %s395
    %397 = vst [vmem:[%s396] sm:%s394] %v393
    %s398 = scalar_lea.vmem [#allocation0], 232
    %v399 = vld [vmem:[%s398] sm:%s197]
    %v400 = vpack.c.bf16 0.0, %v399
    %s401 = sshllo.u32 0, %s198
    %s402 = smul.addr 2, 29
    %s403 = scalar_lea.vmem %s1, %s402
    %404 = vst [vmem:[%s403] sm:%s401] %v400
    %s405 = scalar_lea.vmem [#allocation0], 240
    %v406 = vld [vmem:[%s405] sm:%s197]
    %v407 = vpack.c.bf16 0.0, %v406
    %s408 = sshllo.u32 0, %s198
    %s409 = smul.addr 2, 30
    %s410 = scalar_lea.vmem %s1, %s409
    %411 = vst [vmem:[%s410] sm:%s408] %v407
    %s412 = scalar_lea.vmem [#allocation0], 248
    %v413 = vld [vmem:[%s412] sm:%s197]
    %v414 = vpack.c.bf16 0.0, %v413
    %s415 = sshllo.u32 0, %s198
    %s416 = smul.addr 2, 31
    %s417 = scalar_lea.vmem %s1, %s416
    %418 = vst [vmem:[%s417] sm:%s415] %v414

// kernel: encoder_forward.5
$region0: #{encoder_forward.5}
  #allocation0 [shape = 'u32[]', space=smem, size = 0x4, offset = 0x4, fixed_abs, tag = 'smem constant byte address 0x4 - core index']
  #allocation1 [shape = 'u32[144,128]{1,0:T(1,128)}', space=vmem, size = 0x12000, scoped, tag = 'internal scratch']
  %s0 = inlined_call_operand.vmem [shape: f32[8,2,128], index: 0, kind: input, shape index: {}]
  %s1 = inlined_call_operand.vmem [shape: f32[8,2,128], index: 1, kind: input, shape index: {}]
  %s2 = inlined_call_operand.hbm [shape: f32[8,2,32], index: 2, kind: output, shape index: {}]
  %s3 = sld [smem:[#allocation0]]
  $region18: #{encoder_forward.5} parent=0
    _
  %s5 = ssub.s32 1, %s3
  %s6 = scalar_select 0, %s5, %s3
  $region1: #{encoder_forward.5} parent=0
    #allocation2 [shape = 'u8[8192]{0}', space=vmem, size = 0x2000, scoped, tag = 'output window, operand 0, single buffered']
    #allocation3 [shape = 's32[1]{0}', space=sflag, size = 0x4, scoped, tag = 'scoped memory for encoder_forward.5']
    %7 = vsyncpa [#allocation3], 0
    // Predicated region
    $region2: #{encoder_forward.5} parent=1 // pred_check
      _
    $region3: #{encoder_forward.5} parent=1 // pred_check_branch
      %9 = sbr.rel (0) target = $region5
    $region4: #{encoder_forward.5} parent=1 // pred_region
      _
    $region5: #{encoder_forward.5} parent=1 // pred_fallthru
      _
    // Predicated region
    $region6: #{encoder_forward.5} parent=1 // pred_check
      _
    $region7: #{encoder_forward.5} parent=1 // pred_check_branch
      %11 = sbr.rel (0) target = $region9
    $region8: #{encoder_forward.5} parent=1 // pred_region
      _
    $region9: #{encoder_forward.5} parent=1 // pred_fallthru
      _
    %v12 = vld [vmem:[%s0] sm:$0x3]
    %v13 = vld [vmem:[%s0 + $0x2] sm:$0x3]
    %v14 = vld [vmem:[%s0 + $0x4] sm:$0x3]
    %v15 = vld [vmem:[%s0 + $0x6] sm:$0x3]
    %v16 = vld [vmem:[%s0 + $0x8] sm:$0x3]
    %v17 = vld [vmem:[%s0 + $0xa] sm:$0x3]
    %v18 = vld [vmem:[%s0 + $0xc] sm:$0x3]
    %v19 = vld [vmem:[%s0 + $0xe] sm:$0x3]
    %v20 = vld [vmem:[%s1] sm:$0x3]
    %v21 = vld [vmem:[%s1 + $0x2] sm:$0x3]
    %v22 = vld [vmem:[%s1 + $0x4] sm:$0x3]
    %v23 = vld [vmem:[%s1 + $0x6] sm:$0x3]
    %v24 = vld [vmem:[%s1 + $0x8] sm:$0x3]
    %v25 = vld [vmem:[%s1 + $0xa] sm:$0x3]
    %v26 = vld [vmem:[%s1 + $0xc] sm:$0x3]
    %v27 = vld [vmem:[%s1 + $0xe] sm:$0x3]
    %v28 = vadd.f32 %v12, %v20
    %v29 = vadd.f32 %v13, %v21
    %v30 = vadd.f32 %v14, %v22
    %v31 = vadd.f32 %v15, %v23
    %v32 = vadd.f32 %v16, %v24
    %v33 = vadd.f32 %v17, %v25
    %v34 = vadd.f32 %v18, %v26
    %v35 = vadd.f32 %v19, %v27
    %vm36 = vcmask 254976
    %37 = vst.msk [vmem:[#allocation2] sm:$0x3] %vm36, %v28
    %38 = vst.msk [vmem:[#allocation2 + $0x2] sm:$0x3] %vm36, %v29
    %39 = vst.msk [vmem:[#allocation2 + $0x4] sm:$0x3] %vm36, %v30
    %40 = vst.msk [vmem:[#allocation2 + $0x6] sm:$0x3] %vm36, %v31
    %41 = vst.msk [vmem:[#allocation2 + $0x8] sm:$0x3] %vm36, %v32
    %42 = vst.msk [vmem:[#allocation2 + $0xa] sm:$0x3] %vm36, %v33
    %43 = vst.msk [vmem:[#allocation2 + $0xc] sm:$0x3] %vm36, %v34
    %44 = vst.msk [vmem:[#allocation2 + $0xe] sm:$0x3] %vm36, %v35
    // Predicated region
    $region10: #{encoder_forward.5} parent=1 // pred_check
      _
    $region11: #{encoder_forward.5} parent=1 // pred_check_branch
      %46 = sbr.rel (0) target = $region13
    $region12: #{encoder_forward.5} parent=1 // pred_region
      %s48 = ssub.s32 256, 256
      %49 = vsyncadd [#allocation3], %s48
      %s50 = sshll.u32 [#allocation2], 4
      %s51 = int_to_ptr.vmem [resolvable:$true] %s50
      %56 = dma.vmem_to_hbm [thread:$0]  %s51, 256, %s2, [#allocation3], 32, 32, 2
    $region13: #{encoder_forward.5} parent=1 // pred_fallthru
      _
    // Predicated region
    $region14: #{encoder_forward.5} parent=1 // pred_check
      _
    $region15: #{encoder_forward.5} parent=1 // pred_check_branch
      %58 = sbr.rel (0) target = $region17
    $region16: #{encoder_forward.5} parent=1 // pred_region
      %59 = dma.done [#allocation3], 256
    $region17: #{encoder_forward.5} parent=1 // pred_fallthru
      _
    %60 = vsyncpa [#allocation3], 1

// kernel: encoder_forward.3
$region0: #{encoder_forward.3}
  #allocation0 [shape = 'u32[]', space=smem, size = 0x4, offset = 0x4, fixed_abs, tag = 'smem constant byte address 0x4 - core index']
  #allocation1 [shape = 'u32[144,128]{1,0:T(1,128)}', space=vmem, size = 0x12000, scoped, tag = 'internal scratch']
  #allocation2 [shape = 'f32[2,2,128]{2,1,0:T(2,128)}', space=vmem, size = 0x800, scoped, tag = 'scratch operand']
  #allocation3 [shape = 'f32[2,2,128]{2,1,0:T(2,128)}', space=vmem, size = 0x800, scoped, tag = 'scratch operand']
  %s0 = inlined_call_operand.vmem [shape: bf16[8,2,512], index: 0, kind: input, shape index: {}]
  %s1 = inlined_call_operand.vmem [shape: bf16[8,2,512], index: 1, kind: input, shape index: {}]
  %s2 = inlined_call_operand.vmem [shape: bf16[2,128,512], index: 2, kind: input, shape index: {}]
  %s3 = inlined_call_operand.vmem [shape: f32[8,2,128], index: 3, kind: output, shape index: {0}]
  %s4 = inlined_call_operand.vmem [shape: f32[8,2,128], index: 4, kind: output, shape index: {1}]
  %5 = xla_tuple %s3, %s4
  %s6 = sld [smem:[#allocation0]]
  $region34: #{encoder_forward.3} parent=0
    _
  %s8 = ssub.s32 1, %s6
  %s9 = scalar_select 0, %s8, %s6
  // Predicated region
  $region2: #{encoder_forward.3} parent=0 // pred_check
    _
  $region3: #{encoder_forward.3} parent=0 // pred_check_branch
    %11 = sbr.rel (0) target = $region5
  $region4: #{encoder_forward.3} parent=0 // pred_region
    _
  $region5: #{encoder_forward.3} parent=0 // pred_fallthru
    _
  // Predicated region
  $region6: #{encoder_forward.3} parent=0 // pred_check
    _
  $region7: #{encoder_forward.3} parent=0 // pred_check_branch
    %13 = sbr.rel (0) target = $region9
  $region8: #{encoder_forward.3} parent=0 // pred_region
    %s14 = ssub.s32 0, 0
    %s15 = smul.u32 8, %s14
    %p16 = scmp.lt.s32.totalorder %s15, 7
    %s17 = scalar_select %p16, %s15, 7
    %s18 = smul.addr %s17, 4
    %s19 = scalar_lea.vmem %s1, %s18
    %s20 = ssub.s32 0, 0
    %s21 = smul.u32 8, %s20
  $region9: #{encoder_forward.3} parent=0 // pred_fallthru
    _
  // Predicated region
  $region10: #{encoder_forward.3} parent=0 // pred_check
    _
  $region11: #{encoder_forward.3} parent=0 // pred_check_branch
    %23 = sbr.rel (0) target = $region13
  $region12: #{encoder_forward.3} parent=0 // pred_region
    _
  $region13: #{encoder_forward.3} parent=0 // pred_fallthru
    _
  %s24 = ssub.s32 0, 0
  %s25 = smul.u32 8, %s24
  %p26 = scmp.lt.s32.totalorder %s25, 7
  %s27 = scalar_select %p26, %s25, 7
  %s28 = smul.addr %s27, 4
  %s29 = scalar_lea.vmem %s1, %s28
  %s30 = ssub.s32 0, 0
  %s31 = smul.u32 8, %s30
  %p32 = scmp.lt.s32.totalorder %s31, 7
  %s33 = scalar_select %p32, %s31, 7
  %s34 = smul.addr %s33, 2
  %s35 = scalar_lea.vmem %s4, %s34
  %s36 = ssub.s32 0, 0
  %s37 = smul.u32 8, %s36
  %p38 = scmp.lt.s32.totalorder %s37, 7
  %s39 = scalar_select %p38, %s37, 7
  %s40 = smul.addr %s39, 4
  %s41 = scalar_lea.vmem %s1, %s40
  %s42 = ssub.s32 0, 0
  %s43 = smul.u32 8, %s42
  %s44 = ssub.s32 0, 0
  %s45 = smul.u32 8, %s44
  %p46 = scmp.lt.s32.totalorder %s45, 7
  %s47 = scalar_select %p46, %s45, 7
  %s48 = smul.addr %s47, 2
  %s49 = scalar_lea.vmem %s4, %s48
  %s50 = ssub.s32 0, 0
  %s51 = smul.u32 8, %s50
  %p53 = scmp.eq.s32.totalorder 0, 0
  // Predicated region
  $region14: #{encoder_forward.3} parent=0 // pred_check
    %p54 = pneg %p53
  $region15: #{encoder_forward.3} parent=0 // pred_check_branch
    %56 = sbr.rel (%p54) target = $region17
  $region16: #{encoder_forward.3} parent=0 // pred_region
    %57 = vst [vmem:[#allocation2] sm:$0x3] 0.0
    %58 = vst [vmem:[#allocation2 + $0x2] sm:$0x3] 0.0
    %59 = vst [vmem:[#allocation3] sm:$0x3] 0.0
    %60 = vst [vmem:[#allocation3 + $0x2] sm:$0x3] 0.0
  $region17: #{encoder_forward.3} parent=0 // pred_fallthru
    _
  %v61 = vld [vmem:[%s2] sm:$0xff]
  %v62 = vld [vmem:[%s2 + $0x8] sm:$0xff]
  %v63 = vld [vmem:[%s2 + $0x10] sm:$0xff]
  %v64 = vld [vmem:[%s2 + $0x18] sm:$0xff]
  %v65 = vld [vmem:[%s2 + $0x20] sm:$0xff]
  %v66 = vld [vmem:[%s2 + $0x28] sm:$0xff]
  %v67 = vld [vmem:[%s2 + $0x30] sm:$0xff]
  %v68 = vld [vmem:[%s2 + $0x38] sm:$0xff]
  %v69 = vld [vmem:[%s2 + $0x40] sm:$0xff]
  %v70 = vld [vmem:[%s2 + $0x48] sm:$0xff]
  %v71 = vld [vmem:[%s2 + $0x50] sm:$0xff]
  %v72 = vld [vmem:[%s2 + $0x58] sm:$0xff]
  %v73 = vld [vmem:[%s2 + $0x60] sm:$0xff]
  %v74 = vld [vmem:[%s2 + $0x68] sm:$0xff]
  %v75 = vld [vmem:[%s2 + $0x70] sm:$0xff]
  %v76 = vld [vmem:[%s2 + $0x78] sm:$0xff]
  %v77 = vld [vmem:[%s2 + $0x80] sm:$0xff]
  %v78 = vld [vmem:[%s2 + $0x88] sm:$0xff]
  %v79 = vld [vmem:[%s2 + $0x90] sm:$0xff]
  %v80 = vld [vmem:[%s2 + $0x98] sm:$0xff]
  %v81 = vld [vmem:[%s2 + $0xa0] sm:$0xff]
  %v82 = vld [vmem:[%s2 + $0xa8] sm:$0xff]
  %v83 = vld [vmem:[%s2 + $0xb0] sm:$0xff]
  %v84 = vld [vmem:[%s2 + $0xb8] sm:$0xff]
  %v85 = vld [vmem:[%s2 + $0xc0] sm:$0xff]
  %v86 = vld [vmem:[%s2 + $0xc8] sm:$0xff]
  %v87 = vld [vmem:[%s2 + $0xd0] sm:$0xff]
  %v88 = vld [vmem:[%s2 + $0xd8] sm:$0xff]
  %v89 = vld [vmem:[%s2 + $0xe0] sm:$0xff]
  %v90 = vld [vmem:[%s2 + $0xe8] sm:$0xff]
  %v91 = vld [vmem:[%s2 + $0xf0] sm:$0xff]
  %v92 = vld [vmem:[%s2 + $0xf8] sm:$0xff]
  %s93 = scalar_lea.vmem %s2, 256
  %v94 = vld [vmem:[%s93] sm:$0xff]
  %v95 = vld [vmem:[%s93 + $0x8] sm:$0xff]
  %v96 = vld [vmem:[%s93 + $0x10] sm:$0xff]
  %v97 = vld [vmem:[%s93 + $0x18] sm:$0xff]
  %v98 = vld [vmem:[%s93 + $0x20] sm:$0xff]
  %v99 = vld [vmem:[%s93 + $0x28] sm:$0xff]
  %v100 = vld [vmem:[%s93 + $0x30] sm:$0xff]
  %v101 = vld [vmem:[%s93 + $0x38] sm:$0xff]
  %v102 = vld [vmem:[%s93 + $0x40] sm:$0xff]
  %v103 = vld [vmem:[%s93 + $0x48] sm:$0xff]
  %v104 = vld [vmem:[%s93 + $0x50] sm:$0xff]
  %v105 = vld [vmem:[%s93 + $0x58] sm:$0xff]
  %v106 = vld [vmem:[%s93 + $0x60] sm:$0xff]
  %v107 = vld [vmem:[%s93 + $0x68] sm:$0xff]
  %v108 = vld [vmem:[%s93 + $0x70] sm:$0xff]
  %v109 = vld [vmem:[%s93 + $0x78] sm:$0xff]
  %v110 = vld [vmem:[%s93 + $0x80] sm:$0xff]
  %v111 = vld [vmem:[%s93 + $0x88] sm:$0xff]
  %v112 = vld [vmem:[%s93 + $0x90] sm:$0xff]
  %v113 = vld [vmem:[%s93 + $0x98] sm:$0xff]
  %v114 = vld [vmem:[%s93 + $0xa0] sm:$0xff]
  %v115 = vld [vmem:[%s93 + $0xa8] sm:$0xff]
  %v116 = vld [vmem:[%s93 + $0xb0] sm:$0xff]
  %v117 = vld [vmem:[%s93 + $0xb8] sm:$0xff]
  %v118 = vld [vmem:[%s93 + $0xc0] sm:$0xff]
  %v119 = vld [vmem:[%s93 + $0xc8] sm:$0xff]
  %v120 = vld [vmem:[%s93 + $0xd0] sm:$0xff]
  %v121 = vld [vmem:[%s93 + $0xd8] sm:$0xff]
  %v122 = vld [vmem:[%s93 + $0xe0] sm:$0xff]
  %v123 = vld [vmem:[%s93 + $0xe8] sm:$0xff]
  %v124 = vld [vmem:[%s93 + $0xf0] sm:$0xff]
  %v125 = vld [vmem:[%s93 + $0xf8] sm:$0xff]
  %v126 = vld [vmem:[#allocation2] sm:$0x3]
  %v127 = vld [vmem:[#allocation3] sm:$0x3]
  %s128 = scalar_lea.vmem [#allocation2], 2
  %v129 = vld [vmem:[%s128] sm:$0x3]
  %s130 = scalar_lea.vmem [#allocation3], 2
  %v131 = vld [vmem:[%s130] sm:$0x3]
  %v132 = vld [vmem:[%s0] sm:$0xf]
  %v133 = vunpack.c.l.bf16 %v132
  %v134 = vpack.c.bf16 %v126, %v126
  %v167 = vunpack.c.l.b16 %v61
  %v168 = vunpack.c.h.b16 %v61
  %v169 = vunpack.c.l.b16 %v62
  %v170 = vunpack.c.h.b16 %v62
  %v171 = vunpack.c.l.b16 %v63
  %v172 = vunpack.c.h.b16 %v63
  %v173 = vunpack.c.l.b16 %v64
  %v174 = vunpack.c.h.b16 %v64
  %v175 = vunpack.c.l.b16 %v65
  %v176 = vunpack.c.h.b16 %v65
  %v177 = vunpack.c.l.b16 %v66
  %v178 = vunpack.c.h.b16 %v66
  %v179 = vunpack.c.l.b16 %v67
  %v180 = vunpack.c.h.b16 %v67
  %v181 = vunpack.c.l.b16 %v68
  %v182 = vunpack.c.h.b16 %v68
  %v183 = vunpack.c.l.b16 %v69
  %v184 = vunpack.c.h.b16 %v69
  %v185 = vunpack.c.l.b16 %v70
  %v186 = vunpack.c.h.b16 %v70
  %v187 = vunpack.c.l.b16 %v71
  %v188 = vunpack.c.h.b16 %v71
  %v189 = vunpack.c.l.b16 %v72
  %v190 = vunpack.c.h.b16 %v72
  %v191 = vunpack.c.l.b16 %v73
  %v192 = vunpack.c.h.b16 %v73
  %v193 = vunpack.c.l.b16 %v74
  %v194 = vunpack.c.h.b16 %v74
  %v195 = vunpack.c.l.b16 %v75
  %v196 = vunpack.c.h.b16 %v75
  %v197 = vunpack.c.l.b16 %v76
  %v198 = vunpack.c.h.b16 %v76
  %v199 = vunpack.c.l.b16 %v77
  %v200 = vunpack.c.h.b16 %v77
  %v201 = vunpack.c.l.b16 %v78
  %v202 = vunpack.c.h.b16 %v78
  %v203 = vunpack.c.l.b16 %v79
  %v204 = vunpack.c.h.b16 %v79
  %v205 = vunpack.c.l.b16 %v80
  %v206 = vunpack.c.h.b16 %v80
  %v207 = vunpack.c.l.b16 %v81
  %v208 = vunpack.c.h.b16 %v81
  %v209 = vunpack.c.l.b16 %v82
  %v210 = vunpack.c.h.b16 %v82
  %v211 = vunpack.c.l.b16 %v83
  %v212 = vunpack.c.h.b16 %v83
  %v213 = vunpack.c.l.b16 %v84
  %v214 = vunpack.c.h.b16 %v84
  %v215 = vunpack.c.l.b16 %v85
  %v216 = vunpack.c.h.b16 %v85
  %v217 = vunpack.c.l.b16 %v86
  %v218 = vunpack.c.h.b16 %v86
  %v219 = vunpack.c.l.b16 %v87
  %v220 = vunpack.c.h.b16 %v87
  %v221 = vunpack.c.l.b16 %v88
  %v222 = vunpack.c.h.b16 %v88
  %v223 = vunpack.c.l.b16 %v89
  %v224 = vunpack.c.h.b16 %v89
  %v225 = vunpack.c.l.b16 %v90
  %v226 = vunpack.c.h.b16 %v90
  %v227 = vunpack.c.l.b16 %v91
  %v228 = vunpack.c.h.b16 %v91
  %v229 = vunpack.c.l.b16 %v92
  %v230 = vunpack.c.h.b16 %v92
  %v231 = vpack.c.b16 %v171, %v167
  %v232 = vpack.c.b16 %v172, %v168
  %v233 = vpack.c.b16 %v173, %v169
  %v234 = vpack.c.b16 %v174, %v170
  %v235 = vpack.c.b16 %v179, %v175
  %v236 = vpack.c.b16 %v180, %v176
  %v237 = vpack.c.b16 %v181, %v177
  %v238 = vpack.c.b16 %v182, %v178
  %v239 = vpack.c.b16 %v187, %v183
  %v240 = vpack.c.b16 %v188, %v184
  %v241 = vpack.c.b16 %v189, %v185
  %v242 = vpack.c.b16 %v190, %v186
  %v243 = vpack.c.b16 %v195, %v191
  %v244 = vpack.c.b16 %v196, %v192
  %v245 = vpack.c.b16 %v197, %v193
  %v246 = vpack.c.b16 %v198, %v194
  %v247 = vpack.c.b16 %v203, %v199
  %v248 = vpack.c.b16 %v204, %v200
  %v249 = vpack.c.b16 %v205, %v201
  %v250 = vpack.c.b16 %v206, %v202
  %v251 = vpack.c.b16 %v211, %v207
  %v252 = vpack.c.b16 %v212, %v208
  %v253 = vpack.c.b16 %v213, %v209
  %v254 = vpack.c.b16 %v214, %v210
  %v255 = vpack.c.b16 %v219, %v215
  %v256 = vpack.c.b16 %v220, %v216
  %v257 = vpack.c.b16 %v221, %v217
  %v258 = vpack.c.b16 %v222, %v218
  %v259 = vpack.c.b16 %v227, %v223
  %v260 = vpack.c.b16 %v228, %v224
  %v261 = vpack.c.b16 %v229, %v225
  %v262 = vpack.c.b16 %v230, %v226
  %295 = vmatprep.subr.bf16.mxu0 %v232
  %296 = vmatpush1.bf16.msra.mxu0 %v231
  %297 = vmatprep.subr.bf16.mxu0 %v236
  %298 = vmatpush1.bf16.msra.mxu0 %v235
  %299 = vmatprep.subr.bf16.mxu0 %v240
  %300 = vmatpush1.bf16.msra.mxu0 %v239
  %301 = vmatprep.subr.bf16.mxu0 %v244
  %302 = vmatpush1.bf16.msra.mxu0 %v243
  %303 = vmatprep.subr.bf16.mxu0 %v248
  %304 = vmatpush1.bf16.msra.mxu0 %v247
  %305 = vmatprep.subr.bf16.mxu0 %v252
  %306 = vmatpush1.bf16.msra.mxu0 %v251
  %307 = vmatprep.subr.bf16.mxu0 %v256
  %308 = vmatpush1.bf16.msra.mxu0 %v255
  %309 = vmatprep.subr.bf16.mxu0 %v260
  %310 = vmatpush1.bf16.msra.mxu0 %v259
  %311 = vmatprep.subr.bf16.mxu0 0
  %312 = vmatpush1.bf16.msra.mxu0 0
  %313 = vmatprep.subr.bf16.mxu0 0
  %314 = vmatpush1.bf16.msra.mxu0 0
  %315 = vmatprep.subr.bf16.mxu0 0
  %316 = vmatpush1.bf16.msra.mxu0 0
  %317 = vmatprep.subr.bf16.mxu0 0
  %318 = vmatpush1.bf16.msra.mxu0 0
  %319 = vmatprep.subr.bf16.mxu0 0
  %320 = vmatpush1.bf16.msra.mxu0 0
  %321 = vmatprep.subr.bf16.mxu0 0
  %322 = vmatpush1.bf16.msra.mxu0 0
  %323 = vmatprep.subr.bf16.mxu0 0
  %324 = vmatpush1.bf16.msra.mxu0 0
  %325 = vmatprep.subr.bf16.mxu0 0
  %326 = vmatpush1.bf16.msra.mxu0 0
  %327 = vmatprep.mubr.bf16.mxu0 0
  %328 = vmatmul.mubr.bf16.gmra.mrb[0].mxu0 %v134
  %v329 = vpop.f32.mrb[0].mxu0
  %v330 = vadd.f32 0.0, %v329
  %v331 = vpop.f32.mrb[0].mxu0
  %v332 = vadd.f32 0.0, %v331
  %v333 = vpop.f32.mrb[0].mxu0
  %v334 = vpop.f32.mrb[0].mxu0
  %335 = vdwg.mxu0
  %336 = vmatprep.subr.bf16.mxu0 %v234
  %337 = vmatpush1.bf16.msra.mxu0 %v233
  %338 = vmatprep.subr.bf16.mxu0 %v238
  %339 = vmatpush1.bf16.msra.mxu0 %v237
  %340 = vmatprep.subr.bf16.mxu0 %v242
  %341 = vmatpush1.bf16.msra.mxu0 %v241
  %342 = vmatprep.subr.bf16.mxu0 %v246
  %343 = vmatpush1.bf16.msra.mxu0 %v245
  %344 = vmatprep.subr.bf16.mxu0 %v250
  %345 = vmatpush1.bf16.msra.mxu0 %v249
  %346 = vmatprep.subr.bf16.mxu0 %v254
  %347 = vmatpush1.bf16.msra.mxu0 %v253
  %348 = vmatprep.subr.bf16.mxu0 %v258
  %349 = vmatpush1.bf16.msra.mxu0 %v257
  %350 = vmatprep.subr.bf16.mxu0 %v262
  %351 = vmatpush1.bf16.msra.mxu0 %v261
  %352 = vmatprep.subr.bf16.mxu0 0
  %353 = vmatpush1.bf16.msra.mxu0 0
  %354 = vmatprep.subr.bf16.mxu0 0
  %355 = vmatpush1.bf16.msra.mxu0 0
  %356 = vmatprep.subr.bf16.mxu0 0
  %357 = vmatpush1.bf16.msra.mxu0 0
  %358 = vmatprep.subr.bf16.mxu0 0
  %359 = vmatpush1.bf16.msra.mxu0 0
  %360 = vmatprep.subr.bf16.mxu0 0
  %361 = vmatpush1.bf16.msra.mxu0 0
  %362 = vmatprep.subr.bf16.mxu0 0
  %363 = vmatpush1.bf16.msra.mxu0 0
  %364 = vmatprep.subr.bf16.mxu0 0
  %365 = vmatpush1.bf16.msra.mxu0 0
  %366 = vmatprep.subr.bf16.mxu0 0
  %367 = vmatpush1.bf16.msra.mxu0 0
  %368 = vmatprep.mubr.bf16.mxu0 0
  %369 = vmatmul.mubr.bf16.gmra.mrb[0].mxu0 %v134
  %v370 = vpop.f32.mrb[0].mxu0
  %v371 = vadd.f32 0.0, %v370
  %v372 = vpop.f32.mrb[0].mxu0
  %v373 = vadd.f32 0.0, %v372
  %v374 = vpop.f32.mrb[0].mxu0
  %v375 = vpop.f32.mrb[0].mxu0
  %376 = vdwg.mxu0
  %v381 = vcombine.low %v330, %v332
  %v382 = vcombine.low %v371, %v373
  %v384 = vunpack.c.l.s4 1983009808
  %v385 = vunpack.c.0.s8 %v384
  %v386 = vlaneseq
  %v387 = vshrl.u32 %v386, 7
  %v388 = vsub.s32 %v385, %v387
  %v389 = vrot.slane %v381, %v388
  %v391 = vunpack.c.l.s4 1983009808
  %v392 = vunpack.c.0.s8 %v391
  %v393 = vlaneseq
  %v394 = vshrl.u32 %v393, 7
  %v395 = vsub.s32 %v392, %v394
  %v396 = vrot.slane %v382, %v395
  %v397 = vcombine.low %v389, %v396
  %v399 = vadd.f32 %v133, %v397
  %s400 = scalar_lea.vmem %s41, 28
  %v401 = vld [vmem:[%s400] sm:$0xf]
  %v402 = vunpack.c.l.bf16 %v401
  %v403 = vpack.c.bf16 %v129, %v129
  %v436 = vunpack.c.l.b16 %v94
  %v437 = vunpack.c.h.b16 %v94
  %v438 = vunpack.c.l.b16 %v95
  %v439 = vunpack.c.h.b16 %v95
  %v440 = vunpack.c.l.b16 %v96
  %v441 = vunpack.c.h.b16 %v96
  %v442 = vunpack.c.l.b16 %v97
  %v443 = vunpack.c.h.b16 %v97
  %v444 = vunpack.c.l.b16 %v98
  %v445 = vunpack.c.h.b16 %v98
  %v446 = vunpack.c.l.b16 %v99
  %v447 = vunpack.c.h.b16 %v99
  %v448 = vunpack.c.l.b16 %v100
  %v449 = vunpack.c.h.b16 %v100
  %v450 = vunpack.c.l.b16 %v101
  %v451 = vunpack.c.h.b16 %v101
  %v452 = vunpack.c.l.b16 %v102
  %v453 = vunpack.c.h.b16 %v102
  %v454 = vunpack.c.l.b16 %v103
  %v455 = vunpack.c.h.b16 %v103
  %v456 = vunpack.c.l.b16 %v104
  %v457 = vunpack.c.h.b16 %v104
  %v458 = vunpack.c.l.b16 %v105
  %v459 = vunpack.c.h.b16 %v105
  %v460 = vunpack.c.l.b16 %v106
  %v461 = vunpack.c.h.b16 %v106
  %v462 = vunpack.c.l.b16 %v107
  %v463 = vunpack.c.h.b16 %v107
  %v464 = vunpack.c.l.b16 %v108
  %v465 = vunpack.c.h.b16 %v108
  %v466 = vunpack.c.l.b16 %v109
  %v467 = vunpack.c.h.b16 %v109
  %v468 = vunpack.c.l.b16 %v110
  %v469 = vunpack.c.h.b16 %v110
  %v470 = vunpack.c.l.b16 %v111
  %v471 = vunpack.c.h.b16 %v111
  %v472 = vunpack.c.l.b16 %v112
  %v473 = vunpack.c.h.b16 %v112
  %v474 = vunpack.c.l.b16 %v113
  %v475 = vunpack.c.h.b16 %v113
  %v476 = vunpack.c.l.b16 %v114
  %v477 = vunpack.c.h.b16 %v114
  %v478 = vunpack.c.l.b16 %v115
  %v479 = vunpack.c.h.b16 %v115
  %v480 = vunpack.c.l.b16 %v116
  %v481 = vunpack.c.h.b16 %v116
  %v482 = vunpack.c.l.b16 %v117
  %v483 = vunpack.c.h.b16 %v117
  %v484 = vunpack.c.l.b16 %v118
  %v485 = vunpack.c.h.b16 %v118
  %v486 = vunpack.c.l.b16 %v119
  %v487 = vunpack.c.h.b16 %v119
  %v488 = vunpack.c.l.b16 %v120
  %v489 = vunpack.c.h.b16 %v120
  %v490 = vunpack.c.l.b16 %v121
  %v491 = vunpack.c.h.b16 %v121
  %v492 = vunpack.c.l.b16 %v122
  %v493 = vunpack.c.h.b16 %v122
  %v494 = vunpack.c.l.b16 %v123
  %v495 = vunpack.c.h.b16 %v123
  %v496 = vunpack.c.l.b16 %v124
  %v497 = vunpack.c.h.b16 %v124
  %v498 = vunpack.c.l.b16 %v125
  %v499 = vunpack.c.h.b16 %v125
  %v500 = vpack.c.b16 %v440, %v436
  %v501 = vpack.c.b16 %v441, %v437
  %v502 = vpack.c.b16 %v442, %v438
  %v503 = vpack.c.b16 %v443, %v439
  %v504 = vpack.c.b16 %v448, %v444
  %v505 = vpack.c.b16 %v449, %v445
  %v506 = vpack.c.b16 %v450, %v446
  %v507 = vpack.c.b16 %v451, %v447
  %v508 = vpack.c.b16 %v456, %v452
  %v509 = vpack.c.b16 %v457, %v453
  %v510 = vpack.c.b16 %v458, %v454
  %v511 = vpack.c.b16 %v459, %v455
  %v512 = vpack.c.b16 %v464, %v460
  %v513 = vpack.c.b16 %v465, %v461
  %v514 = vpack.c.b16 %v466, %v462
  %v515 = vpack.c.b16 %v467, %v463
  %v516 = vpack.c.b16 %v472, %v468
  %v517 = vpack.c.b16 %v473, %v469
  %v518 = vpack.c.b16 %v474, %v470
  %v519 = vpack.c.b16 %v475, %v471
  %v520 = vpack.c.b16 %v480, %v476
  %v521 = vpack.c.b16 %v481, %v477
  %v522 = vpack.c.b16 %v482, %v478
  %v523 = vpack.c.b16 %v483, %v479
  %v524 = vpack.c.b16 %v488, %v484
  %v525 = vpack.c.b16 %v489, %v485
  %v526 = vpack.c.b16 %v490, %v486
  %v527 = vpack.c.b16 %v491, %v487
  %v528 = vpack.c.b16 %v496, %v492
  %v529 = vpack.c.b16 %v497, %v493
  %v530 = vpack.c.b16 %v498, %v494
  %v531 = vpack.c.b16 %v499, %v495
  %564 = vmatprep.subr.bf16.mxu0 %v501
  %565 = vmatpush1.bf16.msra.mxu0 %v500
  %566 = vmatprep.subr.bf16.mxu0 %v505
  %567 = vmatpush1.bf16.msra.mxu0 %v504
  %568 = vmatprep.subr.bf16.mxu0 %v509
  %569 = vmatpush1.bf16.msra.mxu0 %v508
  %570 = vmatprep.subr.bf16.mxu0 %v513
  %571 = vmatpush1.bf16.msra.mxu0 %v512
  %572 = vmatprep.subr.bf16.mxu0 %v517
  %573 = vmatpush1.bf16.msra.mxu0 %v516
  %574 = vmatprep.subr.bf16.mxu0 %v521
  %575 = vmatpush1.bf16.msra.mxu0 %v520
  %576 = vmatprep.subr.bf16.mxu0 %v525
  %577 = vmatpush1.bf16.msra.mxu0 %v524
  %578 = vmatprep.subr.bf16.mxu0 %v529
  %579 = vmatpush1.bf16.msra.mxu0 %v528
  %580 = vmatprep.subr.bf16.mxu0 0
  %581 = vmatpush1.bf16.msra.mxu0 0
  %582 = vmatprep.subr.bf16.mxu0 0
  %583 = vmatpush1.bf16.msra.mxu0 0
  %584 = vmatprep.subr.bf16.mxu0 0
  %585 = vmatpush1.bf16.msra.mxu0 0
  %586 = vmatprep.subr.bf16.mxu0 0
  %587 = vmatpush1.bf16.msra.mxu0 0
  %588 = vmatprep.subr.bf16.mxu0 0
  %589 = vmatpush1.bf16.msra.mxu0 0
  %590 = vmatprep.subr.bf16.mxu0 0
  %591 = vmatpush1.bf16.msra.mxu0 0
  %592 = vmatprep.subr.bf16.mxu0 0
  %593 = vmatpush1.bf16.msra.mxu0 0
  %594 = vmatprep.subr.bf16.mxu0 0
  %595 = vmatpush1.bf16.msra.mxu0 0
  %596 = vmatprep.mubr.bf16.mxu0 0
  %597 = vmatmul.mubr.bf16.gmra.mrb[0].mxu0 %v403
  %v598 = vpop.f32.mrb[0].mxu0
  %v599 = vadd.f32 0.0, %v598
  %v600 = vpop.f32.mrb[0].mxu0
  %v601 = vadd.f32 0.0, %v600
  %v602 = vpop.f32.mrb[0].mxu0
  %v603 = vpop.f32.mrb[0].mxu0
  %604 = vdwg.mxu0
  %605 = vmatprep.subr.bf16.mxu0 %v503
  %606 = vmatpush1.bf16.msra.mxu0 %v502
  %607 = vmatprep.subr.bf16.mxu0 %v507
  %608 = vmatpush1.bf16.msra.mxu0 %v506
  %609 = vmatprep.subr.bf16.mxu0 %v511
  %610 = vmatpush1.bf16.msra.mxu0 %v510
  %611 = vmatprep.subr.bf16.mxu0 %v515
  %612 = vmatpush1.bf16.msra.mxu0 %v514
  %613 = vmatprep.subr.bf16.mxu0 %v519
  %614 = vmatpush1.bf16.msra.mxu0 %v518
  %615 = vmatprep.subr.bf16.mxu0 %v523
  %616 = vmatpush1.bf16.msra.mxu0 %v522
  %617 = vmatprep.subr.bf16.mxu0 %v527
  %618 = vmatpush1.bf16.msra.mxu0 %v526
  %619 = vmatprep.subr.bf16.mxu0 %v531
  %620 = vmatpush1.bf16.msra.mxu0 %v530
  %621 = vmatprep.subr.bf16.mxu0 0
  %622 = vmatpush1.bf16.msra.mxu0 0
  %623 = vmatprep.subr.bf16.mxu0 0
  %624 = vmatpush1.bf16.msra.mxu0 0
  %625 = vmatprep.subr.bf16.mxu0 0
  %626 = vmatpush1.bf16.msra.mxu0 0
  %627 = vmatprep.subr.bf16.mxu0 0
  %628 = vmatpush1.bf16.msra.mxu0 0
  %629 = vmatprep.subr.bf16.mxu0 0
  %630 = vmatpush1.bf16.msra.mxu0 0
  %631 = vmatprep.subr.bf16.mxu0 0
  %632 = vmatpush1.bf16.msra.mxu0 0
  %633 = vmatprep.subr.bf16.mxu0 0
  %634 = vmatpush1.bf16.msra.mxu0 0
  %635 = vmatprep.subr.bf16.mxu0 0
  %636 = vmatpush1.bf16.msra.mxu0 0
  %637 = vmatprep.mubr.bf16.mxu0 0
  %638 = vmatmul.mubr.bf16.gmra.mrb[0].mxu0 %v403
  %v639 = vpop.f32.mrb[0].mxu0
  %v640 = vadd.f32 0.0, %v639
  %v641 = vpop.f32.mrb[0].mxu0
  %v642 = vadd.f32 0.0, %v641
  %v643 = vpop.f32.mrb[0].mxu0
  %v644 = vpop.f32.mrb[0].mxu0
  %645 = vdwg.mxu0
  %v650 = vcombine.low %v599, %v601
  %v651 = vcombine.low %v640, %v642
  %v653 = vunpack.c.l.s4 1983009808
  %v654 = vunpack.c.0.s8 %v653
  %v655 = vlaneseq
  %v656 = vshrl.u32 %v655, 7
  %v657 = vsub.s32 %v654, %v656
  %v658 = vrot.slane %v650, %v657
  %v660 = vunpack.c.l.s4 1983009808
  %v661 = vunpack.c.0.s8 %v660
  %v662 = vlaneseq
  %v663 = vshrl.u32 %v662, 7
  %v664 = vsub.s32 %v661, %v663
  %v665 = vrot.slane %v651, %v664
  %v666 = vcombine.low %v658, %v665
  %v668 = vadd.f32 %v402, %v666
  %v669 = vxor.u32 %v399, 2147483648
  %v670 = vmul.f32 %v669, 1.442695
  %v671 = vpow.pop %v670
  %v672 = vadd.f32 %v671, 1.0
  %v673 = vrcp.pop %v672
  %v674 = vmul.f32 1.0, %v673
  %v676 = vrot.slane %v399, 2
  %v678 = vxor.u32 %v676, 2147483648
  %v679 = vmul.f32 %v678, 1.442695
  %v680 = vpow.pop %v679
  %v681 = vadd.f32 %v680, 1.0
  %v682 = vrcp.pop %v681
  %v683 = vmul.f32 1.0, %v682
  %v684 = vrot.slane %v399, 4
  %v686 = vtanh.pop %v684
  %v687 = vrot.slane %v399, 6
  %v689 = vxor.u32 %v687, 2147483648
  %v690 = vmul.f32 %v689, 1.442695
  %v691 = vpow.pop %v690
  %v692 = vadd.f32 %v691, 1.0
  %v693 = vrcp.pop %v692
  %v694 = vmul.f32 1.0, %v693
  %v695 = vmul.f32 %v683, %v127
  %v696 = vmul.f32 %v674, %v686
  %v697 = vadd.f32 %v695, %v696
  %v698 = vtanh.pop %v697
  %v699 = vmul.f32 %v694, %v698
  %v700 = vxor.u32 %v668, 2147483648
  %v701 = vmul.f32 %v700, 1.442695
  %v702 = vpow.pop %v701
  %v703 = vadd.f32 %v702, 1.0
  %v704 = vrcp.pop %v703
  %v705 = vmul.f32 1.0, %v704
  %v707 = vrot.slane %v668, 2
  %v709 = vxor.u32 %v707, 2147483648
  %v710 = vmul.f32 %v709, 1.442695
  %v711 = vpow.pop %v710
  %v712 = vadd.f32 %v711, 1.0
  %v713 = vrcp.pop %v712
  %v714 = vmul.f32 1.0, %v713
  %v715 = vrot.slane %v668, 4
  %v717 = vtanh.pop %v715
  %v718 = vrot.slane %v668, 6
  %v720 = vxor.u32 %v718, 2147483648
  %v721 = vmul.f32 %v720, 1.442695
  %v722 = vpow.pop %v721
  %v723 = vadd.f32 %v722, 1.0
  %v724 = vrcp.pop %v723
  %v725 = vmul.f32 1.0, %v724
  %v726 = vmul.f32 %v714, %v131
  %v727 = vmul.f32 %v705, %v717
  %v728 = vadd.f32 %v726, %v727
  %v729 = vtanh.pop %v728
  %v730 = vmul.f32 %v725, %v729
  %731 = vst [vmem:[%s3] sm:$0x3] %v699
  %s732 = scalar_lea.vmem %s49, 14
  %733 = vst [vmem:[%s732] sm:$0x3] %v730
  %s734 = scalar_lea.vmem %s0, 4
  %v735 = vld [vmem:[%s734] sm:$0xf]
  %v736 = vunpack.c.l.bf16 %v735
  %v737 = vpack.c.bf16 %v699, %v699
  %738 = vmatprep.subr.bf16.mxu0 %v232
  %739 = vmatpush1.bf16.msra.mxu0 %v231
  %740 = vmatprep.subr.bf16.mxu0 %v236
  %741 = vmatpush1.bf16.msra.mxu0 %v235
  %742 = vmatprep.subr.bf16.mxu0 %v240
  %743 = vmatpush1.bf16.msra.mxu0 %v239
  %744 = vmatprep.subr.bf16.mxu0 %v244
  %745 = vmatpush1.bf16.msra.mxu0 %v243
  %746 = vmatprep.subr.bf16.mxu0 %v248
  %747 = vmatpush1.bf16.msra.mxu0 %v247
  %748 = vmatprep.subr.bf16.mxu0 %v252
  %749 = vmatpush1.bf16.msra.mxu0 %v251
  %750 = vmatprep.subr.bf16.mxu0 %v256
  %751 = vmatpush1.bf16.msra.mxu0 %v255
  %752 = vmatprep.subr.bf16.mxu0 %v260
  %753 = vmatpush1.bf16.msra.mxu0 %v259
  %754 = vmatprep.subr.bf16.mxu0 0
  %755 = vmatpush1.bf16.msra.mxu0 0
  %756 = vmatprep.subr.bf16.mxu0 0
  %757 = vmatpush1.bf16.msra.mxu0 0
  %758 = vmatprep.subr.bf16.mxu0 0
  %759 = vmatpush1.bf16.msra.mxu0 0
  %760 = vmatprep.subr.bf16.mxu0 0
  %761 = vmatpush1.bf16.msra.mxu0 0
  %762 = vmatprep.subr.bf16.mxu0 0
  %763 = vmatpush1.bf16.msra.mxu0 0
  %764 = vmatprep.subr.bf16.mxu0 0
  %765 = vmatpush1.bf16.msra.mxu0 0
  %766 = vmatprep.subr.bf16.mxu0 0
  %767 = vmatpush1.bf16.msra.mxu0 0
  %768 = vmatprep.subr.bf16.mxu0 0
  %769 = vmatpush1.bf16.msra.mxu0 0
  %770 = vmatprep.mubr.bf16.mxu0 0
  %771 = vmatmul.mubr.bf16.gmra.mrb[0].mxu0 %v737
  %v772 = vpop.f32.mrb[0].mxu0
  %v773 = vadd.f32 0.0, %v772
  %v774 = vpop.f32.mrb[0].mxu0
  %v775 = vadd.f32 0.0, %v774
  %v776 = vpop.f32.mrb[0].mxu0
  %v777 = vpop.f32.mrb[0].mxu0
  %778 = vdwg.mxu0
  %779 = vmatprep.subr.bf16.mxu0 %v234
  %780 = vmatpush1.bf16.msra.mxu0 %v233
  %781 = vmatprep.subr.bf16.mxu0 %v238
  %782 = vmatpush1.bf16.msra.mxu0 %v237
  %783 = vmatprep.subr.bf16.mxu0 %v242
  %784 = vmatpush1.bf16.msra.mxu0 %v241
  %785 = vmatprep.subr.bf16.mxu0 %v246
  %786 = vmatpush1.bf16.msra.mxu0 %v245
  %787 = vmatprep.subr.bf16.mxu0 %v250
  %788 = vmatpush1.bf16.msra.mxu0 %v249
  %789 = vmatprep.subr.bf16.mxu0 %v254
  %790 = vmatpush1.bf16.msra.mxu0 %v253
  %791 = vmatprep.subr.bf16.mxu0 %v258
  %792 = vmatpush1.bf16.msra.mxu0 %v257
  %793 = vmatprep.subr.bf16.mxu0 %v262
  %794 = vmatpush1.bf16.msra.mxu0 %v261
  %795 = vmatprep.subr.bf16.mxu0 0
  %796 = vmatpush1.bf16.msra.mxu0 0
  %797 = vmatprep.subr.bf16.mxu0 0
  %798 = vmatpush1.bf16.msra.mxu0 0
  %799 = vmatprep.subr.bf16.mxu0 0
  %800 = vmatpush1.bf16.msra.mxu0 0
  %801 = vmatprep.subr.bf16.mxu0 0
  %802 = vmatpush1.bf16.msra.mxu0 0
  %803 = vmatprep.subr.bf16.mxu0 0
  %804 = vmatpush1.bf16.msra.mxu0 0
  %805 = vmatprep.subr.bf16.mxu0 0
  %806 = vmatpush1.bf16.msra.mxu0 0
  %807 = vmatprep.subr.bf16.mxu0 0
  %808 = vmatpush1.bf16.msra.mxu0 0
  %809 = vmatprep.subr.bf16.mxu0 0
  %810 = vmatpush1.bf16.msra.mxu0 0
  %811 = vmatprep.mubr.bf16.mxu0 0
  %812 = vmatmul.mubr.bf16.gmra.mrb[0].mxu0 %v737
  %v813 = vpop.f32.mrb[0].mxu0
  %v814 = vadd.f32 0.0, %v813
  %v815 = vpop.f32.mrb[0].mxu0
  %v816 = vadd.f32 0.0, %v815
  %v817 = vpop.f32.mrb[0].mxu0
  %v818 = vpop.f32.mrb[0].mxu0
  %819 = vdwg.mxu0
  %v824 = vcombine.low %v773, %v775
  %v825 = vcombine.low %v814, %v816
  %v827 = vunpack.c.l.s4 1983009808
  %v828 = vunpack.c.0.s8 %v827
  %v829 = vlaneseq
  %v830 = vshrl.u32 %v829, 7
  %v831 = vsub.s32 %v828, %v830
  %v832 = vrot.slane %v824, %v831
  %v834 = vunpack.c.l.s4 1983009808
  %v835 = vunpack.c.0.s8 %v834
  %v836 = vlaneseq
  %v837 = vshrl.u32 %v836, 7
  %v838 = vsub.s32 %v835, %v837
  %v839 = vrot.slane %v825, %v838
  %v840 = vcombine.low %v832, %v839
  %v842 = vadd.f32 %v736, %v840
  %s843 = scalar_lea.vmem %s41, 24
  %v844 = vld [vmem:[%s843] sm:$0xf]
  %v845 = vunpack.c.l.bf16 %v844
  %v846 = vpack.c.bf16 %v730, %v730
  %847 = vmatprep.subr.bf16.mxu0 %v501
  %848 = vmatpush1.bf16.msra.mxu0 %v500
  %849 = vmatprep.subr.bf16.mxu0 %v505
  %850 = vmatpush1.bf16.msra.mxu0 %v504
  %851 = vmatprep.subr.bf16.mxu0 %v509
  %852 = vmatpush1.bf16.msra.mxu0 %v508
  %853 = vmatprep.subr.bf16.mxu0 %v513
  %854 = vmatpush1.bf16.msra.mxu0 %v512
  %855 = vmatprep.subr.bf16.mxu0 %v517
  %856 = vmatpush1.bf16.msra.mxu0 %v516
  %857 = vmatprep.subr.bf16.mxu0 %v521
  %858 = vmatpush1.bf16.msra.mxu0 %v520
  %859 = vmatprep.subr.bf16.mxu0 %v525
  %860 = vmatpush1.bf16.msra.mxu0 %v524
  %861 = vmatprep.subr.bf16.mxu0 %v529
  %862 = vmatpush1.bf16.msra.mxu0 %v528
  %863 = vmatprep.subr.bf16.mxu0 0
  %864 = vmatpush1.bf16.msra.mxu0 0
  %865 = vmatprep.subr.bf16.mxu0 0
  %866 = vmatpush1.bf16.msra.mxu0 0
  %867 = vmatprep.subr.bf16.mxu0 0
  %868 = vmatpush1.bf16.msra.mxu0 0
  %869 = vmatprep.subr.bf16.mxu0 0
  %870 = vmatpush1.bf16.msra.mxu0 0
  %871 = vmatprep.subr.bf16.mxu0 0
  %872 = vmatpush1.bf16.msra.mxu0 0
  %873 = vmatprep.subr.bf16.mxu0 0
  %874 = vmatpush1.bf16.msra.mxu0 0
  %875 = vmatprep.subr.bf16.mxu0 0
  %876 = vmatpush1.bf16.msra.mxu0 0
  %877 = vmatprep.subr.bf16.mxu0 0
  %878 = vmatpush1.bf16.msra.mxu0 0
  %879 = vmatprep.mubr.bf16.mxu0 0
  %880 = vmatmul.mubr.bf16.gmra.mrb[0].mxu0 %v846
  %v881 = vpop.f32.mrb[0].mxu0
  %v882 = vadd.f32 0.0, %v881
  %v883 = vpop.f32.mrb[0].mxu0
  %v884 = vadd.f32 0.0, %v883
  %v885 = vpop.f32.mrb[0].mxu0
  %v886 = vpop.f32.mrb[0].mxu0
  %887 = vdwg.mxu0
  %888 = vmatprep.subr.bf16.mxu0 %v503
  %889 = vmatpush1.bf16.msra.mxu0 %v502
  %890 = vmatprep.subr.bf16.mxu0 %v507
  %891 = vmatpush1.bf16.msra.mxu0 %v506
  %892 = vmatprep.subr.bf16.mxu0 %v511
  %893 = vmatpush1.bf16.msra.mxu0 %v510
  %894 = vmatprep.subr.bf16.mxu0 %v515
  %895 = vmatpush1.bf16.msra.mxu0 %v514
  %896 = vmatprep.subr.bf16.mxu0 %v519
  %897 = vmatpush1.bf16.msra.mxu0 %v518
  %898 = vmatprep.subr.bf16.mxu0 %v523
  %899 = vmatpush1.bf16.msra.mxu0 %v522
  %900 = vmatprep.subr.bf16.mxu0 %v527
  %901 = vmatpush1.bf16.msra.mxu0 %v526
  %902 = vmatprep.subr.bf16.mxu0 %v531
  %903 = vmatpush1.bf16.msra.mxu0 %v530
  %904 = vmatprep.subr.bf16.mxu0 0
  %905 = vmatpush1.bf16.msra.mxu0 0
  %906 = vmatprep.subr.bf16.mxu0 0
  %907 = vmatpush1.bf16.msra.mxu0 0
  %908 = vmatprep.subr.bf16.mxu0 0
  %909 = vmatpush1.bf16.msra.mxu0 0
  %910 = vmatprep.subr.bf16.mxu0 0
  %911 = vmatpush1.bf16.msra.mxu0 0
  %912 = vmatprep.subr.bf16.mxu0 0
  %913 = vmatpush1.bf16.msra.mxu0 0
  %914 = vmatprep.subr.bf16.mxu0 0
  %915 = vmatpush1.bf16.msra.mxu0 0
  %916 = vmatprep.subr.bf16.mxu0 0
  %917 = vmatpush1.bf16.msra.mxu0 0
  %918 = vmatprep.subr.bf16.mxu0 0
  %919 = vmatpush1.bf16.msra.mxu0 0
  %920 = vmatprep.mubr.bf16.mxu0 0
  %921 = vmatmul.mubr.bf16.gmra.mrb[0].mxu0 %v846
  %v922 = vpop.f32.mrb[0].mxu0
  %v923 = vadd.f32 0.0, %v922
  %v924 = vpop.f32.mrb[0].mxu0
  %v925 = vadd.f32 0.0, %v924
  %v926 = vpop.f32.mrb[0].mxu0
  %v927 = vpop.f32.mrb[0].mxu0
  %928 = vdwg.mxu0
  %v933 = vcombine.low %v882, %v884
  %v934 = vcombine.low %v923, %v925
  %v936 = vunpack.c.l.s4 1983009808
  %v937 = vunpack.c.0.s8 %v936
  %v938 = vlaneseq
  %v939 = vshrl.u32 %v938, 7
  %v940 = vsub.s32 %v937, %v939
  %v941 = vrot.slane %v933, %v940
  %v943 = vunpack.c.l.s4 1983009808
  %v944 = vunpack.c.0.s8 %v943
  %v945 = vlaneseq
  %v946 = vshrl.u32 %v945, 7
  %v947 = vsub.s32 %v944, %v946
  %v948 = vrot.slane %v934, %v947
  %v949 = vcombine.low %v941, %v948
  %v951 = vadd.f32 %v845, %v949
  %v952 = vxor.u32 %v842, 2147483648
  %v953 = vmul.f32 %v952, 1.442695
  %v954 = vpow.pop %v953
  %v955 = vadd.f32 %v954, 1.0
  %v956 = vrcp.pop %v955
  %v957 = vmul.f32 1.0, %v956
  %v959 = vrot.slane %v842, 2
  %v961 = vxor.u32 %v959, 2147483648
  %v962 = vmul.f32 %v961, 1.442695
  %v963 = vpow.pop %v962
  %v964 = vadd.f32 %v963, 1.0
  %v965 = vrcp.pop %v964
  %v966 = vmul.f32 1.0, %v965
  %v967 = vrot.slane %v842, 4
  %v969 = vtanh.pop %v967
  %v970 = vrot.slane %v842, 6
  %v972 = vxor.u32 %v970, 2147483648
  %v973 = vmul.f32 %v972, 1.442695
  %v974 = vpow.pop %v973
  %v975 = vadd.f32 %v974, 1.0
  %v976 = vrcp.pop %v975
  %v977 = vmul.f32 1.0, %v976
  %v978 = vmul.f32 %v966, %v697
  %v979 = vmul.f32 %v957, %v969
  %v980 = vadd.f32 %v978, %v979
  %v981 = vtanh.pop %v980
  %v982 = vmul.f32 %v977, %v981
  %v983 = vxor.u32 %v951, 2147483648
  %v984 = vmul.f32 %v983, 1.442695
  %v985 = vpow.pop %v984
  %v986 = vadd.f32 %v985, 1.0
  %v987 = vrcp.pop %v986
  %v988 = vmul.f32 1.0, %v987
  %v990 = vrot.slane %v951, 2
  %v992 = vxor.u32 %v990, 2147483648
  %v993 = vmul.f32 %v992, 1.442695
  %v994 = vpow.pop %v993
  %v995 = vadd.f32 %v994, 1.0
  %v996 = vrcp.pop %v995
  %v997 = vmul.f32 1.0, %v996
  %v998 = vrot.slane %v951, 4
  %v1000 = vtanh.pop %v998
  %v1001 = vrot.slane %v951, 6
  %v1003 = vxor.u32 %v1001, 2147483648
  %v1004 = vmul.f32 %v1003, 1.442695
  %v1005 = vpow.pop %v1004
  %v1006 = vadd.f32 %v1005, 1.0
  %v1007 = vrcp.pop %v1006
  %v1008 = vmul.f32 1.0, %v1007
  %v1009 = vmul.f32 %v997, %v728
  %v1010 = vmul.f32 %v988, %v1000
  %v1011 = vadd.f32 %v1009, %v1010
  %v1012 = vtanh.pop %v1011
  %v1013 = vmul.f32 %v1008, %v1012
  %s1014 = scalar_lea.vmem %s3, 2
  %1015 = vst [vmem:[%s1014] sm:$0x3] %v982
  %s1016 = scalar_lea.vmem %s49, 12
  %1017 = vst [vmem:[%s1016] sm:$0x3] %v1013
  %s1018 = scalar_lea.vmem %s0, 8
  %v1019 = vld [vmem:[%s1018] sm:$0xf]
  %v1020 = vunpack.c.l.bf16 %v1019
  %v1021 = vpack.c.bf16 %v982, %v982
  %1022 = vmatprep.subr.bf16.mxu0 %v232
  %1023 = vmatpush1.bf16.msra.mxu0 %v231
  %1024 = vmatprep.subr.bf16.mxu0 %v236
  %1025 = vmatpush1.bf16.msra.mxu0 %v235
  %1026 = vmatprep.subr.bf16.mxu0 %v240
  %1027 = vmatpush1.bf16.msra.mxu0 %v239
  %1028 = vmatprep.subr.bf16.mxu0 %v244
  %1029 = vmatpush1.bf16.msra.mxu0 %v243
  %1030 = vmatprep.subr.bf16.mxu0 %v248
  %1031 = vmatpush1.bf16.msra.mxu0 %v247
  %1032 = vmatprep.subr.bf16.mxu0 %v252
  %1033 = vmatpush1.bf16.msra.mxu0 %v251
  %1034 = vmatprep.subr.bf16.mxu0 %v256
  %1035 = vmatpush1.bf16.msra.mxu0 %v255
  %1036 = vmatprep.subr.bf16.mxu0 %v260
  %1037 = vmatpush1.bf16.msra.mxu0 %v259
  %1038 = vmatprep.subr.bf16.mxu0 0
  %1039 = vmatpush1.bf16.msra.mxu0 0
  %1040 = vmatprep.subr.bf16.mxu0 0
  %1041 = vmatpush1.bf16.msra.mxu0 0
  %1042 = vmatprep.subr.bf16.mxu0 0
  %1043 = vmatpush1.bf16.msra.mxu0 0
  %1044 = vmatprep.subr.bf16.mxu0 0
  %1045 = vmatpush1.bf16.msra.mxu0 0
  %1046 = vmatprep.subr.bf16.mxu0 0
  %1047 = vmatpush1.bf16.msra.mxu0 0
  %1048 = vmatprep.subr.bf16.mxu0 0
  %1049 = vmatpush1.bf16.msra.mxu0 0
  %1050 = vmatprep.subr.bf16.mxu0 0
  %1051 = vmatpush1.bf16.msra.mxu0 0
  %1052 = vmatprep.subr.bf16.mxu0 0
  %1053 = vmatpush1.bf16.msra.mxu0 0
  %1054 = vmatprep.mubr.bf16.mxu0 0
  %1055 = vmatmul.mubr.bf16.gmra.mrb[0].mxu0 %v1021
  %v1056 = vpop.f32.mrb[0].mxu0
  %v1057 = vadd.f32 0.0, %v1056
  %v1058 = vpop.f32.mrb[0].mxu0
  %v1059 = vadd.f32 0.0, %v1058
  %v1060 = vpop.f32.mrb[0].mxu0
  %v1061 = vpop.f32.mrb[0].mxu0
  %1062 = vdwg.mxu0
  %1063 = vmatprep.subr.bf16.mxu0 %v234
  %1064 = vmatpush1.bf16.msra.mxu0 %v233
  %1065 = vmatprep.subr.bf16.mxu0 %v238
  %1066 = vmatpush1.bf16.msra.mxu0 %v237
  %1067 = vmatprep.subr.bf16.mxu0 %v242
  %1068 = vmatpush1.bf16.msra.mxu0 %v241
  %1069 = vmatprep.subr.bf16.mxu0 %v246
  %1070 = vmatpush1.bf16.msra.mxu0 %v245
  %1071 = vmatprep.subr.bf16.mxu0 %v250
  %1072 = vmatpush1.bf16.msra.mxu0 %v249
  %1073 = vmatprep.subr.bf16.mxu0 %v254
  %1074 = vmatpush1.bf16.msra.mxu0 %v253
  %1075 = vmatprep.subr.bf16.mxu0 %v258
  %1076 = vmatpush1.bf16.msra.mxu0 %v257
  %1077 = vmatprep.subr.bf16.mxu0 %v262
  %1078 = vmatpush1.bf16.msra.mxu0 %v261
  %1079 = vmatprep.subr.bf16.mxu0 0
  %1080 = vmatpush1.bf16.msra.mxu0 0
  %1081 = vmatprep.subr.bf16.mxu0 0
  %1082 = vmatpush1.bf16.msra.mxu0 0
  %1083 = vmatprep.subr.bf16.mxu0 0
  %1084 = vmatpush1.bf16.msra.mxu0 0
  %1085 = vmatprep.subr.bf16.mxu0 0
  %1086 = vmatpush1.bf16.msra.mxu0 0
  %1087 = vmatprep.subr.bf16.mxu0 0
  %1088 = vmatpush1.bf16.msra.mxu0 0
  %1089 = vmatprep.subr.bf16.mxu0 0
  %1090 = vmatpush1.bf16.msra.mxu0 0
  %1091 = vmatprep.subr.bf16.mxu0 0
  %1092 = vmatpush1.bf16.msra.mxu0 0
  %1093 = vmatprep.subr.bf16.mxu0 0
  %1094 = vmatpush1.bf16.msra.mxu0 0
  %1095 = vmatprep.mubr.bf16.mxu0 0
  %1096 = vmatmul.mubr.bf16.gmra.mrb[0].mxu0 %v1021
  %v1097 = vpop.f32.mrb[0].mxu0
  %v1098 = vadd.f32 0.0, %v1097
  %v1099 = vpop.f32.mrb[0].mxu0
  %v1100 = vadd.f32 0.0, %v1099
  %v1101 = vpop.f32.mrb[0].mxu0
  %v1102 = vpop.f32.mrb[0].mxu0
  %1103 = vdwg.mxu0
  %v1108 = vcombine.low %v1057, %v1059
  %v1109 = vcombine.low %v1098, %v1100
  %v1111 = vunpack.c.l.s4 1983009808
  %v1112 = vunpack.c.0.s8 %v1111
  %v1113 = vlaneseq
  %v1114 = vshrl.u32 %v1113, 7
  %v1115 = vsub.s32 %v1112, %v1114
  %v1116 = vrot.slane %v1108, %v1115
  %v1118 = vunpack.c.l.s4 1983009808
  %v1119 = vunpack.c.0.s8 %v1118
  %v1120 = vlaneseq
  %v1121 = vshrl.u32 %v1120, 7
  %v1122 = vsub.s32 %v1119, %v1121
  %v1123 = vrot.slane %v1109, %v1122
  %v1124 = vcombine.low %v1116, %v1123
  %v1126 = vadd.f32 %v1020, %v1124
  %s1127 = scalar_lea.vmem %s41, 20
  %v1128 = vld [vmem:[%s1127] sm:$0xf]
  %v1129 = vunpack.c.l.bf16 %v1128
  %v1130 = vpack.c.bf16 %v1013, %v1013
  %1131 = vmatprep.subr.bf16.mxu0 %v501
  %1132 = vmatpush1.bf16.msra.mxu0 %v500
  %1133 = vmatprep.subr.bf16.mxu0 %v505
  %1134 = vmatpush1.bf16.msra.mxu0 %v504
  %1135 = vmatprep.subr.bf16.mxu0 %v509
  %1136 = vmatpush1.bf16.msra.mxu0 %v508
  %1137 = vmatprep.subr.bf16.mxu0 %v513
  %1138 = vmatpush1.bf16.msra.mxu0 %v512
  %1139 = vmatprep.subr.bf16.mxu0 %v517
  %1140 = vmatpush1.bf16.msra.mxu0 %v516
  %1141 = vmatprep.subr.bf16.mxu0 %v521
  %1142 = vmatpush1.bf16.msra.mxu0 %v520
  %1143 = vmatprep.subr.bf16.mxu0 %v525
  %1144 = vmatpush1.bf16.msra.mxu0 %v524
  %1145 = vmatprep.subr.bf16.mxu0 %v529
  %1146 = vmatpush1.bf16.msra.mxu0 %v528
  %1147 = vmatprep.subr.bf16.mxu0 0
  %1148 = vmatpush1.bf16.msra.mxu0 0
  %1149 = vmatprep.subr.bf16.mxu0 0
  %1150 = vmatpush1.bf16.msra.mxu0 0
  %1151 = vmatprep.subr.bf16.mxu0 0
  %1152 = vmatpush1.bf16.msra.mxu0 0
  %1153 = vmatprep.subr.bf16.mxu0 0
  %1154 = vmatpush1.bf16.msra.mxu0 0
  %1155 = vmatprep.subr.bf16.mxu0 0
  %1156 = vmatpush1.bf16.msra.mxu0 0
  %1157 = vmatprep.subr.bf16.mxu0 0
  %1158 = vmatpush1.bf16.msra.mxu0 0
  %1159 = vmatprep.subr.bf16.mxu0 0
  %1160 = vmatpush1.bf16.msra.mxu0 0
  %1161 = vmatprep.subr.bf16.mxu0 0
  %1162 = vmatpush1.bf16.msra.mxu0 0
  %1163 = vmatprep.mubr.bf16.mxu0 0
  %1164 = vmatmul.mubr.bf16.gmra.mrb[0].mxu0 %v1130
  %v1165 = vpop.f32.mrb[0].mxu0
  %v1166 = vadd.f32 0.0, %v1165
  %v1167 = vpop.f32.mrb[0].mxu0
  %v1168 = vadd.f32 0.0, %v1167
  %v1169 = vpop.f32.mrb[0].mxu0
  %v1170 = vpop.f32.mrb[0].mxu0
  %1171 = vdwg.mxu0
  %1172 = vmatprep.subr.bf16.mxu0 %v503
  %1173 = vmatpush1.bf16.msra.mxu0 %v502
  %1174 = vmatprep.subr.bf16.mxu0 %v507
  %1175 = vmatpush1.bf16.msra.mxu0 %v506
  %1176 = vmatprep.subr.bf16.mxu0 %v511
  %1177 = vmatpush1.bf16.msra.mxu0 %v510
  %1178 = vmatprep.subr.bf16.mxu0 %v515
  %1179 = vmatpush1.bf16.msra.mxu0 %v514
  %1180 = vmatprep.subr.bf16.mxu0 %v519
  %1181 = vmatpush1.bf16.msra.mxu0 %v518
  %1182 = vmatprep.subr.bf16.mxu0 %v523
  %1183 = vmatpush1.bf16.msra.mxu0 %v522
  %1184 = vmatprep.subr.bf16.mxu0 %v527
  %1185 = vmatpush1.bf16.msra.mxu0 %v526
  %1186 = vmatprep.subr.bf16.mxu0 %v531
  %1187 = vmatpush1.bf16.msra.mxu0 %v530
  %1188 = vmatprep.subr.bf16.mxu0 0
  %1189 = vmatpush1.bf16.msra.mxu0 0
  %1190 = vmatprep.subr.bf16.mxu0 0
  %1191 = vmatpush1.bf16.msra.mxu0 0
  %1192 = vmatprep.subr.bf16.mxu0 0
  %1193 = vmatpush1.bf16.msra.mxu0 0
  %1194 = vmatprep.subr.bf16.mxu0 0
  %1195 = vmatpush1.bf16.msra.mxu0 0
  %1196 = vmatprep.subr.bf16.mxu0 0
  %1197 = vmatpush1.bf16.msra.mxu0 0
  %1198 = vmatprep.subr.bf16.mxu0 0
  %1199 = vmatpush1.bf16.msra.mxu0 0
  %1200 = vmatprep.subr.bf16.mxu0 0
  %1201 = vmatpush1.bf16.msra.mxu0 0
  %1202 = vmatprep.subr.bf16.mxu0 0
  %1203 = vmatpush1.bf16.msra.mxu0 0
  %1204 = vmatprep.mubr.bf16.mxu0 0
  %1205 = vmatmul.mubr.bf16.gmra.mrb[0].mxu0 %v1130
  %v1206 = vpop.f32.mrb[0].mxu0
  %v1207 = vadd.f32 0.0, %v1206
  %v1208 = vpop.f32.mrb[0].mxu0
  %v1209 = vadd.f32 0.0, %v1208
  %v1210 = vpop.f32.mrb[0].mxu0
  %v1211 = vpop.f32.mrb[0].mxu0
  %1212 = vdwg.mxu0
  %v1217 = vcombine.low %v1166, %v1168
  %v1218 = vcombine.low %v1207, %v1209
  %v1220 = vunpack.c.l.s4 1983009808
  %v1221 = vunpack.c.0.s8 %v1220
  %v1222 = vlaneseq
  %v1223 = vshrl.u32 %v1222, 7
  %v1224 = vsub.s32 %v1221, %v1223
  %v1225 = vrot.slane %v1217, %v1224
  %v1227 = vunpack.c.l.s4 1983009808
  %v1228 = vunpack.c.0.s8 %v1227
  %v1229 = vlaneseq
  %v1230 = vshrl.u32 %v1229, 7
  %v1231 = vsub.s32 %v1228, %v1230
  %v1232 = vrot.slane %v1218, %v1231
  %v1233 = vcombine.low %v1225, %v1232
  %v1235 = vadd.f32 %v1129, %v1233
  %v1236 = vxor.u32 %v1126, 2147483648
  %v1237 = vmul.f32 %v1236, 1.442695
  %v1238 = vpow.pop %v1237
  %v1239 = vadd.f32 %v1238, 1.0
  %v1240 = vrcp.pop %v1239
  %v1241 = vmul.f32 1.0, %v1240
  %v1243 = vrot.slane %v1126, 2
  %v1245 = vxor.u32 %v1243, 2147483648
  %v1246 = vmul.f32 %v1245, 1.442695
  %v1247 = vpow.pop %v1246
  %v1248 = vadd.f32 %v1247, 1.0
  %v1249 = vrcp.pop %v1248
  %v1250 = vmul.f32 1.0, %v1249
  %v1251 = vrot.slane %v1126, 4
  %v1253 = vtanh.pop %v1251
  %v1254 = vrot.slane %v1126, 6
  %v1256 = vxor.u32 %v1254, 2147483648
  %v1257 = vmul.f32 %v1256, 1.442695
  %v1258 = vpow.pop %v1257
  %v1259 = vadd.f32 %v1258, 1.0
  %v1260 = vrcp.pop %v1259
  %v1261 = vmul.f32 1.0, %v1260
  %v1262 = vmul.f32 %v1250, %v980
  %v1263 = vmul.f32 %v1241, %v1253
  %v1264 = vadd.f32 %v1262, %v1263
  %v1265 = vtanh.pop %v1264
  %v1266 = vmul.f32 %v1261, %v1265
  %v1267 = vxor.u32 %v1235, 2147483648
  %v1268 = vmul.f32 %v1267, 1.442695
  %v1269 = vpow.pop %v1268
  %v1270 = vadd.f32 %v1269, 1.0
  %v1271 = vrcp.pop %v1270
  %v1272 = vmul.f32 1.0, %v1271
  %v1274 = vrot.slane %v1235, 2
  %v1276 = vxor.u32 %v1274, 2147483648
  %v1277 = vmul.f32 %v1276, 1.442695
  %v1278 = vpow.pop %v1277
  %v1279 = vadd.f32 %v1278, 1.0
  %v1280 = vrcp.pop %v1279
  %v1281 = vmul.f32 1.0, %v1280
  %v1282 = vrot.slane %v1235, 4
  %v1284 = vtanh.pop %v1282
  %v1285 = vrot.slane %v1235, 6
  %v1287 = vxor.u32 %v1285, 2147483648
  %v1288 = vmul.f32 %v1287, 1.442695
  %v1289 = vpow.pop %v1288
  %v1290 = vadd.f32 %v1289, 1.0
  %v1291 = vrcp.pop %v1290
  %v1292 = vmul.f32 1.0, %v1291
  %v1293 = vmul.f32 %v1281, %v1011
  %v1294 = vmul.f32 %v1272, %v1284
  %v1295 = vadd.f32 %v1293, %v1294
  %v1296 = vtanh.pop %v1295
  %v1297 = vmul.f32 %v1292, %v1296
  %s1298 = scalar_lea.vmem %s3, 4
  %1299 = vst [vmem:[%s1298] sm:$0x3] %v1266
  %s1300 = scalar_lea.vmem %s49, 10
  %1301 = vst [vmem:[%s1300] sm:$0x3] %v1297
  %s1302 = scalar_lea.vmem %s0, 12
  %v1303 = vld [vmem:[%s1302] sm:$0xf]
  %v1304 = vunpack.c.l.bf16 %v1303
  %v1305 = vpack.c.bf16 %v1266, %v1266
  %1306 = vmatprep.subr.bf16.mxu0 %v232
  %1307 = vmatpush1.bf16.msra.mxu0 %v231
  %1308 = vmatprep.subr.bf16.mxu0 %v236
  %1309 = vmatpush1.bf16.msra.mxu0 %v235
  %1310 = vmatprep.subr.bf16.mxu0 %v240
  %1311 = vmatpush1.bf16.msra.mxu0 %v239
  %1312 = vmatprep.subr.bf16.mxu0 %v244
  %1313 = vmatpush1.bf16.msra.mxu0 %v243
  %1314 = vmatprep.subr.bf16.mxu0 %v248
  %1315 = vmatpush1.bf16.msra.mxu0 %v247
  %1316 = vmatprep.subr.bf16.mxu0 %v252
  %1317 = vmatpush1.bf16.msra.mxu0 %v251
  %1318 = vmatprep.subr.bf16.mxu0 %v256
  %1319 = vmatpush1.bf16.msra.mxu0 %v255
  %1320 = vmatprep.subr.bf16.mxu0 %v260
  %1321 = vmatpush1.bf16.msra.mxu0 %v259
  %1322 = vmatprep.subr.bf16.mxu0 0
  %1323 = vmatpush1.bf16.msra.mxu0 0
  %1324 = vmatprep.subr.bf16.mxu0 0
  %1325 = vmatpush1.bf16.msra.mxu0 0
  %1326 = vmatprep.subr.bf16.mxu0 0
  %1327 = vmatpush1.bf16.msra.mxu0 0
  %1328 = vmatprep.subr.bf16.mxu0 0
  %1329 = vmatpush1.bf16.msra.mxu0 0
  %1330 = vmatprep.subr.bf16.mxu0 0
  %1331 = vmatpush1.bf16.msra.mxu0 0
  %1332 = vmatprep.subr.bf16.mxu0 0
  %1333 = vmatpush1.bf16.msra.mxu0 0
  %1334 = vmatprep.subr.bf16.mxu0 0
  %1335 = vmatpush1.bf16.msra.mxu0 0
  %1336 = vmatprep.subr.bf16.mxu0 0
  %1337 = vmatpush1.bf16.msra.mxu0 0
  %1338 = vmatprep.mubr.bf16.mxu0 0
  %1339 = vmatmul.mubr.bf16.gmra.mrb[0].mxu0 %v1305
  %v1340 = vpop.f32.mrb[0].mxu0
  %v1341 = vadd.f32 0.0, %v1340
  %v1342 = vpop.f32.mrb[0].mxu0
  %v1343 = vadd.f32 0.0, %v1342
  %v1344 = vpop.f32.mrb[0].mxu0
  %v1345 = vpop.f32.mrb[0].mxu0
  %1346 = vdwg.mxu0
  %1347 = vmatprep.subr.bf16.mxu0 %v234
  %1348 = vmatpush1.bf16.msra.mxu0 %v233
  %1349 = vmatprep.subr.bf16.mxu0 %v238
  %1350 = vmatpush1.bf16.msra.mxu0 %v237
  %1351 = vmatprep.subr.bf16.mxu0 %v242
  %1352 = vmatpush1.bf16.msra.mxu0 %v241
  %1353 = vmatprep.subr.bf16.mxu0 %v246
  %1354 = vmatpush1.bf16.msra.mxu0 %v245
  %1355 = vmatprep.subr.bf16.mxu0 %v250
  %1356 = vmatpush1.bf16.msra.mxu0 %v249
  %1357 = vmatprep.subr.bf16.mxu0 %v254
  %1358 = vmatpush1.bf16.msra.mxu0 %v253
  %1359 = vmatprep.subr.bf16.mxu0 %v258
  %1360 = vmatpush1.bf16.msra.mxu0 %v257
  %1361 = vmatprep.subr.bf16.mxu0 %v262
  %1362 = vmatpush1.bf16.msra.mxu0 %v261
  %1363 = vmatprep.subr.bf16.mxu0 0
  %1364 = vmatpush1.bf16.msra.mxu0 0
  %1365 = vmatprep.subr.bf16.mxu0 0
  %1366 = vmatpush1.bf16.msra.mxu0 0
  %1367 = vmatprep.subr.bf16.mxu0 0
  %1368 = vmatpush1.bf16.msra.mxu0 0
  %1369 = vmatprep.subr.bf16.mxu0 0
  %1370 = vmatpush1.bf16.msra.mxu0 0
  %1371 = vmatprep.subr.bf16.mxu0 0
  %1372 = vmatpush1.bf16.msra.mxu0 0
  %1373 = vmatprep.subr.bf16.mxu0 0
  %1374 = vmatpush1.bf16.msra.mxu0 0
  %1375 = vmatprep.subr.bf16.mxu0 0
  %1376 = vmatpush1.bf16.msra.mxu0 0
  %1377 = vmatprep.subr.bf16.mxu0 0
  %1378 = vmatpush1.bf16.msra.mxu0 0
  %1379 = vmatprep.mubr.bf16.mxu0 0
  %1380 = vmatmul.mubr.bf16.gmra.mrb[0].mxu0 %v1305
  %v1381 = vpop.f32.mrb[0].mxu0
  %v1382 = vadd.f32 0.0, %v1381
  %v1383 = vpop.f32.mrb[0].mxu0
  %v1384 = vadd.f32 0.0, %v1383
  %v1385 = vpop.f32.mrb[0].mxu0
  %v1386 = vpop.f32.mrb[0].mxu0
  %1387 = vdwg.mxu0
  %v1392 = vcombine.low %v1341, %v1343
  %v1393 = vcombine.low %v1382, %v1384
  %v1395 = vunpack.c.l.s4 1983009808
  %v1396 = vunpack.c.0.s8 %v1395
  %v1397 = vlaneseq
  %v1398 = vshrl.u32 %v1397, 7
  %v1399 = vsub.s32 %v1396, %v1398
  %v1400 = vrot.slane %v1392, %v1399
  %v1402 = vunpack.c.l.s4 1983009808
  %v1403 = vunpack.c.0.s8 %v1402
  %v1404 = vlaneseq
  %v1405 = vshrl.u32 %v1404, 7
  %v1406 = vsub.s32 %v1403, %v1405
  %v1407 = vrot.slane %v1393, %v1406
  %v1408 = vcombine.low %v1400, %v1407
  %v1410 = vadd.f32 %v1304, %v1408
  %s1411 = scalar_lea.vmem %s41, 16
  %v1412 = vld [vmem:[%s1411] sm:$0xf]
  %v1413 = vunpack.c.l.bf16 %v1412
  %v1414 = vpack.c.bf16 %v1297, %v1297
  %1415 = vmatprep.subr.bf16.mxu0 %v501
  %1416 = vmatpush1.bf16.msra.mxu0 %v500
  %1417 = vmatprep.subr.bf16.mxu0 %v505
  %1418 = vmatpush1.bf16.msra.mxu0 %v504
  %1419 = vmatprep.subr.bf16.mxu0 %v509
  %1420 = vmatpush1.bf16.msra.mxu0 %v508
  %1421 = vmatprep.subr.bf16.mxu0 %v513
  %1422 = vmatpush1.bf16.msra.mxu0 %v512
  %1423 = vmatprep.subr.bf16.mxu0 %v517
  %1424 = vmatpush1.bf16.msra.mxu0 %v516
  %1425 = vmatprep.subr.bf16.mxu0 %v521
  %1426 = vmatpush1.bf16.msra.mxu0 %v520
  %1427 = vmatprep.subr.bf16.mxu0 %v525
  %1428 = vmatpush1.bf16.msra.mxu0 %v524
  %1429 = vmatprep.subr.bf16.mxu0 %v529
  %1430 = vmatpush1.bf16.msra.mxu0 %v528
  %1431 = vmatprep.subr.bf16.mxu0 0
  %1432 = vmatpush1.bf16.msra.mxu0 0
  %1433 = vmatprep.subr.bf16.mxu0 0
  %1434 = vmatpush1.bf16.msra.mxu0 0
  %1435 = vmatprep.subr.bf16.mxu0 0
  %1436 = vmatpush1.bf16.msra.mxu0 0
  %1437 = vmatprep.subr.bf16.mxu0 0
  %1438 = vmatpush1.bf16.msra.mxu0 0
  %1439 = vmatprep.subr.bf16.mxu0 0
  %1440 = vmatpush1.bf16.msra.mxu0 0
  %1441 = vmatprep.subr.bf16.mxu0 0
  %1442 = vmatpush1.bf16.msra.mxu0 0
  %1443 = vmatprep.subr.bf16.mxu0 0
  %1444 = vmatpush1.bf16.msra.mxu0 0
  %1445 = vmatprep.subr.bf16.mxu0 0
  %1446 = vmatpush1.bf16.msra.mxu0 0
  %1447 = vmatprep.mubr.bf16.mxu0 0
  %1448 = vmatmul.mubr.bf16.gmra.mrb[0].mxu0 %v1414
  %v1449 = vpop.f32.mrb[0].mxu0
  %v1450 = vadd.f32 0.0, %v1449
  %v1451 = vpop.f32.mrb[0].mxu0
  %v1452 = vadd.f32 0.0, %v1451
  %v1453 = vpop.f32.mrb[0].mxu0
  %v1454 = vpop.f32.mrb[0].mxu0
  %1455 = vdwg.mxu0
  %1456 = vmatprep.subr.bf16.mxu0 %v503
  %1457 = vmatpush1.bf16.msra.mxu0 %v502
  %1458 = vmatprep.subr.bf16.mxu0 %v507
  %1459 = vmatpush1.bf16.msra.mxu0 %v506
  %1460 = vmatprep.subr.bf16.mxu0 %v511
  %1461 = vmatpush1.bf16.msra.mxu0 %v510
  %1462 = vmatprep.subr.bf16.mxu0 %v515
  %1463 = vmatpush1.bf16.msra.mxu0 %v514
  %1464 = vmatprep.subr.bf16.mxu0 %v519
  %1465 = vmatpush1.bf16.msra.mxu0 %v518
  %1466 = vmatprep.subr.bf16.mxu0 %v523
  %1467 = vmatpush1.bf16.msra.mxu0 %v522
  %1468 = vmatprep.subr.bf16.mxu0 %v527
  %1469 = vmatpush1.bf16.msra.mxu0 %v526
  %1470 = vmatprep.subr.bf16.mxu0 %v531
  %1471 = vmatpush1.bf16.msra.mxu0 %v530
  %1472 = vmatprep.subr.bf16.mxu0 0
  %1473 = vmatpush1.bf16.msra.mxu0 0
  %1474 = vmatprep.subr.bf16.mxu0 0
  %1475 = vmatpush1.bf16.msra.mxu0 0
  %1476 = vmatprep.subr.bf16.mxu0 0
  %1477 = vmatpush1.bf16.msra.mxu0 0
  %1478 = vmatprep.subr.bf16.mxu0 0
  %1479 = vmatpush1.bf16.msra.mxu0 0
  %1480 = vmatprep.subr.bf16.mxu0 0
  %1481 = vmatpush1.bf16.msra.mxu0 0
  %1482 = vmatprep.subr.bf16.mxu0 0
  %1483 = vmatpush1.bf16.msra.mxu0 0
  %1484 = vmatprep.subr.bf16.mxu0 0
  %1485 = vmatpush1.bf16.msra.mxu0 0
  %1486 = vmatprep.subr.bf16.mxu0 0
  %1487 = vmatpush1.bf16.msra.mxu0 0
  %1488 = vmatprep.mubr.bf16.mxu0 0
  %1489 = vmatmul.mubr.bf16.gmra.mrb[0].mxu0 %v1414
  %v1490 = vpop.f32.mrb[0].mxu0
  %v1491 = vadd.f32 0.0, %v1490
  %v1492 = vpop.f32.mrb[0].mxu0
  %v1493 = vadd.f32 0.0, %v1492
  %v1494 = vpop.f32.mrb[0].mxu0
  %v1495 = vpop.f32.mrb[0].mxu0
  %1496 = vdwg.mxu0
  %v1501 = vcombine.low %v1450, %v1452
  %v1502 = vcombine.low %v1491, %v1493
  %v1504 = vunpack.c.l.s4 1983009808
  %v1505 = vunpack.c.0.s8 %v1504
  %v1506 = vlaneseq
  %v1507 = vshrl.u32 %v1506, 7
  %v1508 = vsub.s32 %v1505, %v1507
  %v1509 = vrot.slane %v1501, %v1508
  %v1511 = vunpack.c.l.s4 1983009808
  %v1512 = vunpack.c.0.s8 %v1511
  %v1513 = vlaneseq
  %v1514 = vshrl.u32 %v1513, 7
  %v1515 = vsub.s32 %v1512, %v1514
  %v1516 = vrot.slane %v1502, %v1515
  %v1517 = vcombine.low %v1509, %v1516
  %v1519 = vadd.f32 %v1413, %v1517
  %v1520 = vxor.u32 %v1410, 2147483648
  %v1521 = vmul.f32 %v1520, 1.442695
  %v1522 = vpow.pop %v1521
  %v1523 = vadd.f32 %v1522, 1.0
  %v1524 = vrcp.pop %v1523
  %v1525 = vmul.f32 1.0, %v1524
  %v1527 = vrot.slane %v1410, 2
  %v1529 = vxor.u32 %v1527, 2147483648
  %v1530 = vmul.f32 %v1529, 1.442695
  %v1531 = vpow.pop %v1530
  %v1532 = vadd.f32 %v1531, 1.0
  %v1533 = vrcp.pop %v1532
  %v1534 = vmul.f32 1.0, %v1533
  %v1535 = vrot.slane %v1410, 4
  %v1537 = vtanh.pop %v1535
  %v1538 = vrot.slane %v1410, 6
  %v1540 = vxor.u32 %v1538, 2147483648
  %v1541 = vmul.f32 %v1540, 1.442695
  %v1542 = vpow.pop %v1541
  %v1543 = vadd.f32 %v1542, 1.0
  %v1544 = vrcp.pop %v1543
  %v1545 = vmul.f32 1.0, %v1544
  %v1546 = vmul.f32 %v1534, %v1264
  %v1547 = vmul.f32 %v1525, %v1537
  %v1548 = vadd.f32 %v1546, %v1547
  %v1549 = vtanh.pop %v1548
  %v1550 = vmul.f32 %v1545, %v1549
  %v1551 = vxor.u32 %v1519, 2147483648
  %v1552 = vmul.f32 %v1551, 1.442695
  %v1553 = vpow.pop %v1552
  %v1554 = vadd.f32 %v1553, 1.0
  %v1555 = vrcp.pop %v1554
  %v1556 = vmul.f32 1.0, %v1555
  %v1558 = vrot.slane %v1519, 2
  %v1560 = vxor.u32 %v1558, 2147483648
  %v1561 = vmul.f32 %v1560, 1.442695
  %v1562 = vpow.pop %v1561
  %v1563 = vadd.f32 %v1562, 1.0
  %v1564 = vrcp.pop %v1563
  %v1565 = vmul.f32 1.0, %v1564
  %v1566 = vrot.slane %v1519, 4
  %v1568 = vtanh.pop %v1566
  %v1569 = vrot.slane %v1519, 6
  %v1571 = vxor.u32 %v1569, 2147483648
  %v1572 = vmul.f32 %v1571, 1.442695
  %v1573 = vpow.pop %v1572
  %v1574 = vadd.f32 %v1573, 1.0
  %v1575 = vrcp.pop %v1574
  %v1576 = vmul.f32 1.0, %v1575
  %v1577 = vmul.f32 %v1565, %v1295
  %v1578 = vmul.f32 %v1556, %v1568
  %v1579 = vadd.f32 %v1577, %v1578
  %v1580 = vtanh.pop %v1579
  %v1581 = vmul.f32 %v1576, %v1580
  %s1582 = scalar_lea.vmem %s3, 6
  %1583 = vst [vmem:[%s1582] sm:$0x3] %v1550
  %s1584 = scalar_lea.vmem %s49, 8
  %1585 = vst [vmem:[%s1584] sm:$0x3] %v1581
  %s1586 = scalar_lea.vmem %s0, 16
  %v1587 = vld [vmem:[%s1586] sm:$0xf]
  %v1588 = vunpack.c.l.bf16 %v1587
  %v1589 = vpack.c.bf16 %v1550, %v1550
  %1590 = vmatprep.subr.bf16.mxu0 %v232
  %1591 = vmatpush1.bf16.msra.mxu0 %v231
  %1592 = vmatprep.subr.bf16.mxu0 %v236
  %1593 = vmatpush1.bf16.msra.mxu0 %v235
  %1594 = vmatprep.subr.bf16.mxu0 %v240
  %1595 = vmatpush1.bf16.msra.mxu0 %v239
  %1596 = vmatprep.subr.bf16.mxu0 %v244
  %1597 = vmatpush1.bf16.msra.mxu0 %v243
  %1598 = vmatprep.subr.bf16.mxu0 %v248
  %1599 = vmatpush1.bf16.msra.mxu0 %v247
  %1600 = vmatprep.subr.bf16.mxu0 %v252
  %1601 = vmatpush1.bf16.msra.mxu0 %v251
  %1602 = vmatprep.subr.bf16.mxu0 %v256
  %1603 = vmatpush1.bf16.msra.mxu0 %v255
  %1604 = vmatprep.subr.bf16.mxu0 %v260
  %1605 = vmatpush1.bf16.msra.mxu0 %v259
  %1606 = vmatprep.subr.bf16.mxu0 0
  %1607 = vmatpush1.bf16.msra.mxu0 0
  %1608 = vmatprep.subr.bf16.mxu0 0
  %1609 = vmatpush1.bf16.msra.mxu0 0
  %1610 = vmatprep.subr.bf16.mxu0 0
  %1611 = vmatpush1.bf16.msra.mxu0 0
  %1612 = vmatprep.subr.bf16.mxu0 0
  %1613 = vmatpush1.bf16.msra.mxu0 0
  %1614 = vmatprep.subr.bf16.mxu0 0
  %1615 = vmatpush1.bf16.msra.mxu0 0
  %1616 = vmatprep.subr.bf16.mxu0 0
  %1617 = vmatpush1.bf16.msra.mxu0 0
  %1618 = vmatprep.subr.bf16.mxu0 0
  %1619 = vmatpush1.bf16.msra.mxu0 0
  %1620 = vmatprep.subr.bf16.mxu0 0
  %1621 = vmatpush1.bf16.msra.mxu0 0
  %1622 = vmatprep.mubr.bf16.mxu0 0
  %1623 = vmatmul.mubr.bf16.gmra.mrb[0].mxu0 %v1589
  %v1624 = vpop.f32.mrb[0].mxu0
  %v1625 = vadd.f32 0.0, %v1624
  %v1626 = vpop.f32.mrb[0].mxu0
  %v1627 = vadd.f32 0.0, %v1626
  %v1628 = vpop.f32.mrb[0].mxu0
  %v1629 = vpop.f32.mrb[0].mxu0
  %1630 = vdwg.mxu0
  %1631 = vmatprep.subr.bf16.mxu0 %v234
  %1632 = vmatpush1.bf16.msra.mxu0 %v233
  %1633 = vmatprep.subr.bf16.mxu0 %v238
  %1634 = vmatpush1.bf16.msra.mxu0 %v237
  %1635 = vmatprep.subr.bf16.mxu0 %v242
  %1636 = vmatpush1.bf16.msra.mxu0 %v241
  %1637 = vmatprep.subr.bf16.mxu0 %v246
  %1638 = vmatpush1.bf16.msra.mxu0 %v245
  %1639 = vmatprep.subr.bf16.mxu0 %v250
  %1640 = vmatpush1.bf16.msra.mxu0 %v249
  %1641 = vmatprep.subr.bf16.mxu0 %v254
  %1642 = vmatpush1.bf16.msra.mxu0 %v253
  %1643 = vmatprep.subr.bf16.mxu0 %v258
  %1644 = vmatpush1.bf16.msra.mxu0 %v257
  %1645 = vmatprep.subr.bf16.mxu0 %v262
  %1646 = vmatpush1.bf16.msra.mxu0 %v261
  %1647 = vmatprep.subr.bf16.mxu0 0
  %1648 = vmatpush1.bf16.msra.mxu0 0
  %1649 = vmatprep.subr.bf16.mxu0 0
  %1650 = vmatpush1.bf16.msra.mxu0 0
  %1651 = vmatprep.subr.bf16.mxu0 0
  %1652 = vmatpush1.bf16.msra.mxu0 0
  %1653 = vmatprep.subr.bf16.mxu0 0
  %1654 = vmatpush1.bf16.msra.mxu0 0
  %1655 = vmatprep.subr.bf16.mxu0 0
  %1656 = vmatpush1.bf16.msra.mxu0 0
  %1657 = vmatprep.subr.bf16.mxu0 0
  %1658 = vmatpush1.bf16.msra.mxu0 0
  %1659 = vmatprep.subr.bf16.mxu0 0
  %1660 = vmatpush1.bf16.msra.mxu0 0
  %1661 = vmatprep.subr.bf16.mxu0 0
  %1662 = vmatpush1.bf16.msra.mxu0 0
  %1663 = vmatprep.mubr.bf16.mxu0 0
  %1664 = vmatmul.mubr.bf16.gmra.mrb[0].mxu0 %v1589
  %v1665 = vpop.f32.mrb[0].mxu0
  %v1666 = vadd.f32 0.0, %v1665
  %v1667 = vpop.f32.mrb[0].mxu0
  %v1668 = vadd.f32 0.0, %v1667
  %v1669 = vpop.f32.mrb[0].mxu0
  %v1670 = vpop.f32.mrb[0].mxu0
  %1671 = vdwg.mxu0
  %v1676 = vcombine.low %v1625, %v1627
  %v1677 = vcombine.low %v1666, %v1668
  %v1679 = vunpack.c.l.s4 1983009808
  %v1680 = vunpack.c.0.s8 %v1679
  %v1681 = vlaneseq
  %v1682 = vshrl.u32 %v1681, 7
  %v1683 = vsub.s32 %v1680, %v1682
  %v1684 = vrot.slane %v1676, %v1683
  %v1686 = vunpack.c.l.s4 1983009808
  %v1687 = vunpack.c.0.s8 %v1686
  %v1688 = vlaneseq
  %v1689 = vshrl.u32 %v1688, 7
  %v1690 = vsub.s32 %v1687, %v1689
  %v1691 = vrot.slane %v1677, %v1690
  %v1692 = vcombine.low %v1684, %v1691
  %v1694 = vadd.f32 %v1588, %v1692
  %s1695 = scalar_lea.vmem %s41, 12
  %v1696 = vld [vmem:[%s1695] sm:$0xf]
  %v1697 = vunpack.c.l.bf16 %v1696
  %v1698 = vpack.c.bf16 %v1581, %v1581
  %1699 = vmatprep.subr.bf16.mxu0 %v501
  %1700 = vmatpush1.bf16.msra.mxu0 %v500
  %1701 = vmatprep.subr.bf16.mxu0 %v505
  %1702 = vmatpush1.bf16.msra.mxu0 %v504
  %1703 = vmatprep.subr.bf16.mxu0 %v509
  %1704 = vmatpush1.bf16.msra.mxu0 %v508
  %1705 = vmatprep.subr.bf16.mxu0 %v513
  %1706 = vmatpush1.bf16.msra.mxu0 %v512
  %1707 = vmatprep.subr.bf16.mxu0 %v517
  %1708 = vmatpush1.bf16.msra.mxu0 %v516
  %1709 = vmatprep.subr.bf16.mxu0 %v521
  %1710 = vmatpush1.bf16.msra.mxu0 %v520
  %1711 = vmatprep.subr.bf16.mxu0 %v525
  %1712 = vmatpush1.bf16.msra.mxu0 %v524
  %1713 = vmatprep.subr.bf16.mxu0 %v529
  %1714 = vmatpush1.bf16.msra.mxu0 %v528
  %1715 = vmatprep.subr.bf16.mxu0 0
  %1716 = vmatpush1.bf16.msra.mxu0 0
  %1717 = vmatprep.subr.bf16.mxu0 0
  %1718 = vmatpush1.bf16.msra.mxu0 0
  %1719 = vmatprep.subr.bf16.mxu0 0
  %1720 = vmatpush1.bf16.msra.mxu0 0
  %1721 = vmatprep.subr.bf16.mxu0 0
  %1722 = vmatpush1.bf16.msra.mxu0 0
  %1723 = vmatprep.subr.bf16.mxu0 0
  %1724 = vmatpush1.bf16.msra.mxu0 0
  %1725 = vmatprep.subr.bf16.mxu0 0
  %1726 = vmatpush1.bf16.msra.mxu0 0
  %1727 = vmatprep.subr.bf16.mxu0 0
  %1728 = vmatpush1.bf16.msra.mxu0 0
  %1729 = vmatprep.subr.bf16.mxu0 0
  %1730 = vmatpush1.bf16.msra.mxu0 0
  %1731 = vmatprep.mubr.bf16.mxu0 0
  %1732 = vmatmul.mubr.bf16.gmra.mrb[0].mxu0 %v1698
  %v1733 = vpop.f32.mrb[0].mxu0
  %v1734 = vadd.f32 0.0, %v1733
  %v1735 = vpop.f32.mrb[0].mxu0
  %v1736 = vadd.f32 0.0, %v1735
  %v1737 = vpop.f32.mrb[0].mxu0
  %v1738 = vpop.f32.mrb[0].mxu0
  %1739 = vdwg.mxu0
  %1740 = vmatprep.subr.bf16.mxu0 %v503
  %1741 = vmatpush1.bf16.msra.mxu0 %v502
  %1742 = vmatprep.subr.bf16.mxu0 %v507
  %1743 = vmatpush1.bf16.msra.mxu0 %v506
  %1744 = vmatprep.subr.bf16.mxu0 %v511
  %1745 = vmatpush1.bf16.msra.mxu0 %v510
  %1746 = vmatprep.subr.bf16.mxu0 %v515
  %1747 = vmatpush1.bf16.msra.mxu0 %v514
  %1748 = vmatprep.subr.bf16.mxu0 %v519
  %1749 = vmatpush1.bf16.msra.mxu0 %v518
  %1750 = vmatprep.subr.bf16.mxu0 %v523
  %1751 = vmatpush1.bf16.msra.mxu0 %v522
  %1752 = vmatprep.subr.bf16.mxu0 %v527
  %1753 = vmatpush1.bf16.msra.mxu0 %v526
  %1754 = vmatprep.subr.bf16.mxu0 %v531
  %1755 = vmatpush1.bf16.msra.mxu0 %v530
  %1756 = vmatprep.subr.bf16.mxu0 0
  %1757 = vmatpush1.bf16.msra.mxu0 0
  %1758 = vmatprep.subr.bf16.mxu0 0
  %1759 = vmatpush1.bf16.msra.mxu0 0
  %1760 = vmatprep.subr.bf16.mxu0 0
  %1761 = vmatpush1.bf16.msra.mxu0 0
  %1762 = vmatprep.subr.bf16.mxu0 0
  %1763 = vmatpush1.bf16.msra.mxu0 0
  %1764 = vmatprep.subr.bf16.mxu0 0
  %1765 = vmatpush1.bf16.msra.mxu0 0
  %1766 = vmatprep.subr.bf16.mxu0 0
  %1767 = vmatpush1.bf16.msra.mxu0 0
  %1768 = vmatprep.subr.bf16.mxu0 0
  %1769 = vmatpush1.bf16.msra.mxu0 0
  %1770 = vmatprep.subr.bf16.mxu0 0
  %1771 = vmatpush1.bf16.msra.mxu0 0
  %1772 = vmatprep.mubr.bf16.mxu0 0
  %1773 = vmatmul.mubr.bf16.gmra.mrb[0].mxu0 %v1698
  %v1774 = vpop.f32.mrb[0].mxu0
  %v1775 = vadd.f32 0.0, %v1774
  %v1776 = vpop.f32.mrb[0].mxu0
  %v1777 = vadd.f32 0.0, %v1776
  %v1778 = vpop.f32.mrb[0].mxu0
  %v1779 = vpop.f32.mrb[0].mxu0
  %1780 = vdwg.mxu0
  %v1785 = vcombine.low %v1734, %v1736
  %v1786 = vcombine.low %v1775, %v1777
  %v1788 = vunpack.c.l.s4 1983009808
  %v1789 = vunpack.c.0.s8 %v1788
  %v1790 = vlaneseq
  %v1791 = vshrl.u32 %v1790, 7
  %v1792 = vsub.s32 %v1789, %v1791
  %v1793 = vrot.slane %v1785, %v1792
  %v1795 = vunpack.c.l.s4 1983009808
  %v1796 = vunpack.c.0.s8 %v1795
  %v1797 = vlaneseq
  %v1798 = vshrl.u32 %v1797, 7
  %v1799 = vsub.s32 %v1796, %v1798
  %v1800 = vrot.slane %v1786, %v1799
  %v1801 = vcombine.low %v1793, %v1800
  %v1803 = vadd.f32 %v1697, %v1801
  %v1804 = vxor.u32 %v1694, 2147483648
  %v1805 = vmul.f32 %v1804, 1.442695
  %v1806 = vpow.pop %v1805
  %v1807 = vadd.f32 %v1806, 1.0
  %v1808 = vrcp.pop %v1807
  %v1809 = vmul.f32 1.0, %v1808
  %v1811 = vrot.slane %v1694, 2
  %v1813 = vxor.u32 %v1811, 2147483648
  %v1814 = vmul.f32 %v1813, 1.442695
  %v1815 = vpow.pop %v1814
  %v1816 = vadd.f32 %v1815, 1.0
  %v1817 = vrcp.pop %v1816
  %v1818 = vmul.f32 1.0, %v1817
  %v1819 = vrot.slane %v1694, 4
  %v1821 = vtanh.pop %v1819
  %v1822 = vrot.slane %v1694, 6
  %v1824 = vxor.u32 %v1822, 2147483648
  %v1825 = vmul.f32 %v1824, 1.442695
  %v1826 = vpow.pop %v1825
  %v1827 = vadd.f32 %v1826, 1.0
  %v1828 = vrcp.pop %v1827
  %v1829 = vmul.f32 1.0, %v1828
  %v1830 = vmul.f32 %v1818, %v1548
  %v1831 = vmul.f32 %v1809, %v1821
  %v1832 = vadd.f32 %v1830, %v1831
  %v1833 = vtanh.pop %v1832
  %v1834 = vmul.f32 %v1829, %v1833
  %v1835 = vxor.u32 %v1803, 2147483648
  %v1836 = vmul.f32 %v1835, 1.442695
  %v1837 = vpow.pop %v1836
  %v1838 = vadd.f32 %v1837, 1.0
  %v1839 = vrcp.pop %v1838
  %v1840 = vmul.f32 1.0, %v1839
  %v1842 = vrot.slane %v1803, 2
  %v1844 = vxor.u32 %v1842, 2147483648
  %v1845 = vmul.f32 %v1844, 1.442695
  %v1846 = vpow.pop %v1845
  %v1847 = vadd.f32 %v1846, 1.0
  %v1848 = vrcp.pop %v1847
  %v1849 = vmul.f32 1.0, %v1848
  %v1850 = vrot.slane %v1803, 4
  %v1852 = vtanh.pop %v1850
  %v1853 = vrot.slane %v1803, 6
  %v1855 = vxor.u32 %v1853, 2147483648
  %v1856 = vmul.f32 %v1855, 1.442695
  %v1857 = vpow.pop %v1856
  %v1858 = vadd.f32 %v1857, 1.0
  %v1859 = vrcp.pop %v1858
  %v1860 = vmul.f32 1.0, %v1859
  %v1861 = vmul.f32 %v1849, %v1579
  %v1862 = vmul.f32 %v1840, %v1852
  %v1863 = vadd.f32 %v1861, %v1862
  %v1864 = vtanh.pop %v1863
  %v1865 = vmul.f32 %v1860, %v1864
  %s1866 = scalar_lea.vmem %s3, 8
  %1867 = vst [vmem:[%s1866] sm:$0x3] %v1834
  %s1868 = scalar_lea.vmem %s49, 6
  %1869 = vst [vmem:[%s1868] sm:$0x3] %v1865
  %s1870 = scalar_lea.vmem %s0, 20
  %v1871 = vld [vmem:[%s1870] sm:$0xf]
  %v1872 = vunpack.c.l.bf16 %v1871
  %v1873 = vpack.c.bf16 %v1834, %v1834
  %1874 = vmatprep.subr.bf16.mxu0 %v232
  %1875 = vmatpush1.bf16.msra.mxu0 %v231
  %1876 = vmatprep.subr.bf16.mxu0 %v236
  %1877 = vmatpush1.bf16.msra.mxu0 %v235
  %1878 = vmatprep.subr.bf16.mxu0 %v240
  %1879 = vmatpush1.bf16.msra.mxu0 %v239
  %1880 = vmatprep.subr.bf16.mxu0 %v244
  %1881 = vmatpush1.bf16.msra.mxu0 %v243
  %1882 = vmatprep.subr.bf16.mxu0 %v248
  %1883 = vmatpush1.bf16.msra.mxu0 %v247
  %1884 = vmatprep.subr.bf16.mxu0 %v252
  %1885 = vmatpush1.bf16.msra.mxu0 %v251
  %1886 = vmatprep.subr.bf16.mxu0 %v256
  %1887 = vmatpush1.bf16.msra.mxu0 %v255
  %1888 = vmatprep.subr.bf16.mxu0 %v260
  %1889 = vmatpush1.bf16.msra.mxu0 %v259
  %1890 = vmatprep.subr.bf16.mxu0 0
  %1891 = vmatpush1.bf16.msra.mxu0 0
  %1892 = vmatprep.subr.bf16.mxu0 0
  %1893 = vmatpush1.bf16.msra.mxu0 0
  %1894 = vmatprep.subr.bf16.mxu0 0
  %1895 = vmatpush1.bf16.msra.mxu0 0
  %1896 = vmatprep.subr.bf16.mxu0 0
  %1897 = vmatpush1.bf16.msra.mxu0 0
  %1898 = vmatprep.subr.bf16.mxu0 0
  %1899 = vmatpush1.bf16.msra.mxu0 0
  %1900 = vmatprep.subr.bf16.mxu0 0
  %1901 = vmatpush1.bf16.msra.mxu0 0
  %1902 = vmatprep.subr.bf16.mxu0 0
  %1903 = vmatpush1.bf16.msra.mxu0 0
  %1904 = vmatprep.subr.bf16.mxu0 0
  %1905 = vmatpush1.bf16.msra.mxu0 0
  %1906 = vmatprep.mubr.bf16.mxu0 0
  %1907 = vmatmul.mubr.bf16.gmra.mrb[0].mxu0 %v1873
  %v1908 = vpop.f32.mrb[0].mxu0
  %v1909 = vadd.f32 0.0, %v1908
  %v1910 = vpop.f32.mrb[0].mxu0
  %v1911 = vadd.f32 0.0, %v1910
  %v1912 = vpop.f32.mrb[0].mxu0
  %v1913 = vpop.f32.mrb[0].mxu0
  %1914 = vdwg.mxu0
  %1915 = vmatprep.subr.bf16.mxu0 %v234
  %1916 = vmatpush1.bf16.msra.mxu0 %v233
  %1917 = vmatprep.subr.bf16.mxu0 %v238
  %1918 = vmatpush1.bf16.msra.mxu0 %v237
  %1919 = vmatprep.subr.bf16.mxu0 %v242
  %1920 = vmatpush1.bf16.msra.mxu0 %v241
  %1921 = vmatprep.subr.bf16.mxu0 %v246
  %1922 = vmatpush1.bf16.msra.mxu0 %v245
  %1923 = vmatprep.subr.bf16.mxu0 %v250
  %1924 = vmatpush1.bf16.msra.mxu0 %v249
  %1925 = vmatprep.subr.bf16.mxu0 %v254
  %1926 = vmatpush1.bf16.msra.mxu0 %v253
  %1927 = vmatprep.subr.bf16.mxu0 %v258
  %1928 = vmatpush1.bf16.msra.mxu0 %v257
  %1929 = vmatprep.subr.bf16.mxu0 %v262
  %1930 = vmatpush1.bf16.msra.mxu0 %v261
  %1931 = vmatprep.subr.bf16.mxu0 0
  %1932 = vmatpush1.bf16.msra.mxu0 0
  %1933 = vmatprep.subr.bf16.mxu0 0
  %1934 = vmatpush1.bf16.msra.mxu0 0
  %1935 = vmatprep.subr.bf16.mxu0 0
  %1936 = vmatpush1.bf16.msra.mxu0 0
  %1937 = vmatprep.subr.bf16.mxu0 0
  %1938 = vmatpush1.bf16.msra.mxu0 0
  %1939 = vmatprep.subr.bf16.mxu0 0
  %1940 = vmatpush1.bf16.msra.mxu0 0
  %1941 = vmatprep.subr.bf16.mxu0 0
  %1942 = vmatpush1.bf16.msra.mxu0 0
  %1943 = vmatprep.subr.bf16.mxu0 0
  %1944 = vmatpush1.bf16.msra.mxu0 0
  %1945 = vmatprep.subr.bf16.mxu0 0
  %1946 = vmatpush1.bf16.msra.mxu0 0
  %1947 = vmatprep.mubr.bf16.mxu0 0
  %1948 = vmatmul.mubr.bf16.gmra.mrb[0].mxu0 %v1873
  %v1949 = vpop.f32.mrb[0].mxu0
  %v1950 = vadd.f32 0.0, %v1949
  %v1951 = vpop.f32.mrb[0].mxu0
  %v1952 = vadd.f32 0.0, %v1951
  %v1953 = vpop.f32.mrb[0].mxu0
  %v1954 = vpop.f32.mrb[0].mxu0
  %1955 = vdwg.mxu0
  %v1960 = vcombine.low %v1909, %v1911
  %v1961 = vcombine.low %v1950, %v1952
  %v1963 = vunpack.c.l.s4 1983009808
  %v1964 = vunpack.c.0.s8 %v1963
  %v1965 = vlaneseq
  %v1966 = vshrl.u32 %v1965, 7
  %v1967 = vsub.s32 %v1964, %v1966
  %v1968 = vrot.slane %v1960, %v1967
  %v1970 = vunpack.c.l.s4 1983009808
  %v1971 = vunpack.c.0.s8 %v1970
  %v1972 = vlaneseq
  %v1973 = vshrl.u32 %v1972, 7
  %v1974 = vsub.s32 %v1971, %v1973
  %v1975 = vrot.slane %v1961, %v1974
  %v1976 = vcombine.low %v1968, %v1975
  %v1978 = vadd.f32 %v1872, %v1976
  %s1979 = scalar_lea.vmem %s41, 8
  %v1980 = vld [vmem:[%s1979] sm:$0xf]
  %v1981 = vunpack.c.l.bf16 %v1980
  %v1982 = vpack.c.bf16 %v1865, %v1865
  %1983 = vmatprep.subr.bf16.mxu0 %v501
  %1984 = vmatpush1.bf16.msra.mxu0 %v500
  %1985 = vmatprep.subr.bf16.mxu0 %v505
  %1986 = vmatpush1.bf16.msra.mxu0 %v504
  %1987 = vmatprep.subr.bf16.mxu0 %v509
  %1988 = vmatpush1.bf16.msra.mxu0 %v508
  %1989 = vmatprep.subr.bf16.mxu0 %v513
  %1990 = vmatpush1.bf16.msra.mxu0 %v512
  %1991 = vmatprep.subr.bf16.mxu0 %v517
  %1992 = vmatpush1.bf16.msra.mxu0 %v516
  %1993 = vmatprep.subr.bf16.mxu0 %v521
  %1994 = vmatpush1.bf16.msra.mxu0 %v520
  %1995 = vmatprep.subr.bf16.mxu0 %v525
  %1996 = vmatpush1.bf16.msra.mxu0 %v524
  %1997 = vmatprep.subr.bf16.mxu0 %v529
  %1998 = vmatpush1.bf16.msra.mxu0 %v528
  %1999 = vmatprep.subr.bf16.mxu0 0
  %2000 = vmatpush1.bf16.msra.mxu0 0
  %2001 = vmatprep.subr.bf16.mxu0 0
  %2002 = vmatpush1.bf16.msra.mxu0 0
  %2003 = vmatprep.subr.bf16.mxu0 0
  %2004 = vmatpush1.bf16.msra.mxu0 0
  %2005 = vmatprep.subr.bf16.mxu0 0
  %2006 = vmatpush1.bf16.msra.mxu0 0
  %2007 = vmatprep.subr.bf16.mxu0 0
  %2008 = vmatpush1.bf16.msra.mxu0 0
  %2009 = vmatprep.subr.bf16.mxu0 0
  %2010 = vmatpush1.bf16.msra.mxu0 0
  %2011 = vmatprep.subr.bf16.mxu0 0
  %2012 = vmatpush1.bf16.msra.mxu0 0
  %2013 = vmatprep.subr.bf16.mxu0 0
  %2014 = vmatpush1.bf16.msra.mxu0 0
  %2015 = vmatprep.mubr.bf16.mxu0 0
  %2016 = vmatmul.mubr.bf16.gmra.mrb[0].mxu0 %v1982
  %v2017 = vpop.f32.mrb[0].mxu0
  %v2018 = vadd.f32 0.0, %v2017
  %v2019 = vpop.f32.mrb[0].mxu0
  %v2020 = vadd.f32 0.0, %v2019
  %v2021 = vpop.f32.mrb[0].mxu0
  %v2022 = vpop.f32.mrb[0].mxu0
  %2023 = vdwg.mxu0
  %2024 = vmatprep.subr.bf16.mxu0 %v503
  %2025 = vmatpush1.bf16.msra.mxu0 %v502
  %2026 = vmatprep.subr.bf16.mxu0 %v507
  %2027 = vmatpush1.bf16.msra.mxu0 %v506
  %2028 = vmatprep.subr.bf16.mxu0 %v511
  %2029 = vmatpush1.bf16.msra.mxu0 %v510
  %2030 = vmatprep.subr.bf16.mxu0 %v515
  %2031 = vmatpush1.bf16.msra.mxu0 %v514
  %2032 = vmatprep.subr.bf16.mxu0 %v519
  %2033 = vmatpush1.bf16.msra.mxu0 %v518
  %2034 = vmatprep.subr.bf16.mxu0 %v523
  %2035 = vmatpush1.bf16.msra.mxu0 %v522
  %2036 = vmatprep.subr.bf16.mxu0 %v527
  %2037 = vmatpush1.bf16.msra.mxu0 %v526
  %2038 = vmatprep.subr.bf16.mxu0 %v531
  %2039 = vmatpush1.bf16.msra.mxu0 %v530
  %2040 = vmatprep.subr.bf16.mxu0 0
  %2041 = vmatpush1.bf16.msra.mxu0 0
  %2042 = vmatprep.subr.bf16.mxu0 0
  %2043 = vmatpush1.bf16.msra.mxu0 0
  %2044 = vmatprep.subr.bf16.mxu0 0
  %2045 = vmatpush1.bf16.msra.mxu0 0
  %2046 = vmatprep.subr.bf16.mxu0 0
  %2047 = vmatpush1.bf16.msra.mxu0 0
  %2048 = vmatprep.subr.bf16.mxu0 0
  %2049 = vmatpush1.bf16.msra.mxu0 0
  %2050 = vmatprep.subr.bf16.mxu0 0
  %2051 = vmatpush1.bf16.msra.mxu0 0
  %2052 = vmatprep.subr.bf16.mxu0 0
  %2053 = vmatpush1.bf16.msra.mxu0 0
  %2054 = vmatprep.subr.bf16.mxu0 0
  %2055 = vmatpush1.bf16.msra.mxu0 0
  %2056 = vmatprep.mubr.bf16.mxu0 0
  %2057 = vmatmul.mubr.bf16.gmra.mrb[0].mxu0 %v1982
  %v2058 = vpop.f32.mrb[0].mxu0
  %v2059 = vadd.f32 0.0, %v2058
  %v2060 = vpop.f32.mrb[0].mxu0
  %v2061 = vadd.f32 0.0, %v2060
  %v2062 = vpop.f32.mrb[0].mxu0
  %v2063 = vpop.f32.mrb[0].mxu0
  %2064 = vdwg.mxu0
  %v2069 = vcombine.low %v2018, %v2020
  %v2070 = vcombine.low %v2059, %v2061
  %v2072 = vunpack.c.l.s4 1983009808
  %v2073 = vunpack.c.0.s8 %v2072
  %v2074 = vlaneseq
  %v2075 = vshrl.u32 %v2074, 7
  %v2076 = vsub.s32 %v2073, %v2075
  %v2077 = vrot.slane %v2069, %v2076
  %v2079 = vunpack.c.l.s4 1983009808
  %v2080 = vunpack.c.0.s8 %v2079
  %v2081 = vlaneseq
  %v2082 = vshrl.u32 %v2081, 7
  %v2083 = vsub.s32 %v2080, %v2082
  %v2084 = vrot.slane %v2070, %v2083
  %v2085 = vcombine.low %v2077, %v2084
  %v2087 = vadd.f32 %v1981, %v2085
  %v2088 = vxor.u32 %v1978, 2147483648
  %v2089 = vmul.f32 %v2088, 1.442695
  %v2090 = vpow.pop %v2089
  %v2091 = vadd.f32 %v2090, 1.0
  %v2092 = vrcp.pop %v2091
  %v2093 = vmul.f32 1.0, %v2092
  %v2095 = vrot.slane %v1978, 2
  %v2097 = vxor.u32 %v2095, 2147483648
  %v2098 = vmul.f32 %v2097, 1.442695
  %v2099 = vpow.pop %v2098
  %v2100 = vadd.f32 %v2099, 1.0
  %v2101 = vrcp.pop %v2100
  %v2102 = vmul.f32 1.0, %v2101
  %v2103 = vrot.slane %v1978, 4
  %v2105 = vtanh.pop %v2103
  %v2106 = vrot.slane %v1978, 6
  %v2108 = vxor.u32 %v2106, 2147483648
  %v2109 = vmul.f32 %v2108, 1.442695
  %v2110 = vpow.pop %v2109
  %v2111 = vadd.f32 %v2110, 1.0
  %v2112 = vrcp.pop %v2111
  %v2113 = vmul.f32 1.0, %v2112
  %v2114 = vmul.f32 %v2102, %v1832
  %v2115 = vmul.f32 %v2093, %v2105
  %v2116 = vadd.f32 %v2114, %v2115
  %v2117 = vtanh.pop %v2116
  %v2118 = vmul.f32 %v2113, %v2117
  %v2119 = vxor.u32 %v2087, 2147483648
  %v2120 = vmul.f32 %v2119, 1.442695
  %v2121 = vpow.pop %v2120
  %v2122 = vadd.f32 %v2121, 1.0
  %v2123 = vrcp.pop %v2122
  %v2124 = vmul.f32 1.0, %v2123
  %v2126 = vrot.slane %v2087, 2
  %v2128 = vxor.u32 %v2126, 2147483648
  %v2129 = vmul.f32 %v2128, 1.442695
  %v2130 = vpow.pop %v2129
  %v2131 = vadd.f32 %v2130, 1.0
  %v2132 = vrcp.pop %v2131
  %v2133 = vmul.f32 1.0, %v2132
  %v2134 = vrot.slane %v2087, 4
  %v2136 = vtanh.pop %v2134
  %v2137 = vrot.slane %v2087, 6
  %v2139 = vxor.u32 %v2137, 2147483648
  %v2140 = vmul.f32 %v2139, 1.442695
  %v2141 = vpow.pop %v2140
  %v2142 = vadd.f32 %v2141, 1.0
  %v2143 = vrcp.pop %v2142
  %v2144 = vmul.f32 1.0, %v2143
  %v2145 = vmul.f32 %v2133, %v1863
  %v2146 = vmul.f32 %v2124, %v2136
  %v2147 = vadd.f32 %v2145, %v2146
  %v2148 = vtanh.pop %v2147
  %v2149 = vmul.f32 %v2144, %v2148
  %s2150 = scalar_lea.vmem %s3, 10
  %2151 = vst [vmem:[%s2150] sm:$0x3] %v2118
  %s2152 = scalar_lea.vmem %s49, 4
  %2153 = vst [vmem:[%s2152] sm:$0x3] %v2149
  %s2154 = scalar_lea.vmem %s0, 24
  %v2155 = vld [vmem:[%s2154] sm:$0xf]
  %v2156 = vunpack.c.l.bf16 %v2155
  %v2157 = vpack.c.bf16 %v2118, %v2118
  %2158 = vmatprep.subr.bf16.mxu0 %v232
  %2159 = vmatpush1.bf16.msra.mxu0 %v231
  %2160 = vmatprep.subr.bf16.mxu0 %v236
  %2161 = vmatpush1.bf16.msra.mxu0 %v235
  %2162 = vmatprep.subr.bf16.mxu0 %v240
  %2163 = vmatpush1.bf16.msra.mxu0 %v239
  %2164 = vmatprep.subr.bf16.mxu0 %v244
  %2165 = vmatpush1.bf16.msra.mxu0 %v243
  %2166 = vmatprep.subr.bf16.mxu0 %v248
  %2167 = vmatpush1.bf16.msra.mxu0 %v247
  %2168 = vmatprep.subr.bf16.mxu0 %v252
  %2169 = vmatpush1.bf16.msra.mxu0 %v251
  %2170 = vmatprep.subr.bf16.mxu0 %v256
  %2171 = vmatpush1.bf16.msra.mxu0 %v255
  %2172 = vmatprep.subr.bf16.mxu0 %v260
  %2173 = vmatpush1.bf16.msra.mxu0 %v259
  %2174 = vmatprep.subr.bf16.mxu0 0
  %2175 = vmatpush1.bf16.msra.mxu0 0
  %2176 = vmatprep.subr.bf16.mxu0 0
  %2177 = vmatpush1.bf16.msra.mxu0 0
  %2178 = vmatprep.subr.bf16.mxu0 0
  %2179 = vmatpush1.bf16.msra.mxu0 0
  %2180 = vmatprep.subr.bf16.mxu0 0
  %2181 = vmatpush1.bf16.msra.mxu0 0
  %2182 = vmatprep.subr.bf16.mxu0 0
  %2183 = vmatpush1.bf16.msra.mxu0 0
  %2184 = vmatprep.subr.bf16.mxu0 0
  %2185 = vmatpush1.bf16.msra.mxu0 0
  %2186 = vmatprep.subr.bf16.mxu0 0
  %2187 = vmatpush1.bf16.msra.mxu0 0
  %2188 = vmatprep.subr.bf16.mxu0 0
  %2189 = vmatpush1.bf16.msra.mxu0 0
  %2190 = vmatprep.mubr.bf16.mxu0 0
  %2191 = vmatmul.mubr.bf16.gmra.mrb[0].mxu0 %v2157
  %v2192 = vpop.f32.mrb[0].mxu0
  %v2193 = vadd.f32 0.0, %v2192
  %v2194 = vpop.f32.mrb[0].mxu0
  %v2195 = vadd.f32 0.0, %v2194
  %v2196 = vpop.f32.mrb[0].mxu0
  %v2197 = vpop.f32.mrb[0].mxu0
  %2198 = vdwg.mxu0
  %2199 = vmatprep.subr.bf16.mxu0 %v234
  %2200 = vmatpush1.bf16.msra.mxu0 %v233
  %2201 = vmatprep.subr.bf16.mxu0 %v238
  %2202 = vmatpush1.bf16.msra.mxu0 %v237
  %2203 = vmatprep.subr.bf16.mxu0 %v242
  %2204 = vmatpush1.bf16.msra.mxu0 %v241
  %2205 = vmatprep.subr.bf16.mxu0 %v246
  %2206 = vmatpush1.bf16.msra.mxu0 %v245
  %2207 = vmatprep.subr.bf16.mxu0 %v250
  %2208 = vmatpush1.bf16.msra.mxu0 %v249
  %2209 = vmatprep.subr.bf16.mxu0 %v254
  %2210 = vmatpush1.bf16.msra.mxu0 %v253
  %2211 = vmatprep.subr.bf16.mxu0 %v258
  %2212 = vmatpush1.bf16.msra.mxu0 %v257
  %2213 = vmatprep.subr.bf16.mxu0 %v262
  %2214 = vmatpush1.bf16.msra.mxu0 %v261
  %2215 = vmatprep.subr.bf16.mxu0 0
  %2216 = vmatpush1.bf16.msra.mxu0 0
  %2217 = vmatprep.subr.bf16.mxu0 0
  %2218 = vmatpush1.bf16.msra.mxu0 0
  %2219 = vmatprep.subr.bf16.mxu0 0
  %2220 = vmatpush1.bf16.msra.mxu0 0
  %2221 = vmatprep.subr.bf16.mxu0 0
  %2222 = vmatpush1.bf16.msra.mxu0 0
  %2223 = vmatprep.subr.bf16.mxu0 0
  %2224 = vmatpush1.bf16.msra.mxu0 0
  %2225 = vmatprep.subr.bf16.mxu0 0
  %2226 = vmatpush1.bf16.msra.mxu0 0
  %2227 = vmatprep.subr.bf16.mxu0 0
  %2228 = vmatpush1.bf16.msra.mxu0 0
  %2229 = vmatprep.subr.bf16.mxu0 0
  %2230 = vmatpush1.bf16.msra.mxu0 0
  %2231 = vmatprep.mubr.bf16.mxu0 0
  %2232 = vmatmul.mubr.bf16.gmra.mrb[0].mxu0 %v2157
  %v2233 = vpop.f32.mrb[0].mxu0
  %v2234 = vadd.f32 0.0, %v2233
  %v2235 = vpop.f32.mrb[0].mxu0
  %v2236 = vadd.f32 0.0, %v2235
  %v2237 = vpop.f32.mrb[0].mxu0
  %v2238 = vpop.f32.mrb[0].mxu0
  %2239 = vdwg.mxu0
  %v2244 = vcombine.low %v2193, %v2195
  %v2245 = vcombine.low %v2234, %v2236
  %v2247 = vunpack.c.l.s4 1983009808
  %v2248 = vunpack.c.0.s8 %v2247
  %v2249 = vlaneseq
  %v2250 = vshrl.u32 %v2249, 7
  %v2251 = vsub.s32 %v2248, %v2250
  %v2252 = vrot.slane %v2244, %v2251
  %v2254 = vunpack.c.l.s4 1983009808
  %v2255 = vunpack.c.0.s8 %v2254
  %v2256 = vlaneseq
  %v2257 = vshrl.u32 %v2256, 7
  %v2258 = vsub.s32 %v2255, %v2257
  %v2259 = vrot.slane %v2245, %v2258
  %v2260 = vcombine.low %v2252, %v2259
  %v2262 = vadd.f32 %v2156, %v2260
  %s2263 = scalar_lea.vmem %s41, 4
  %v2264 = vld [vmem:[%s2263] sm:$0xf]
  %v2265 = vunpack.c.l.bf16 %v2264
  %v2266 = vpack.c.bf16 %v2149, %v2149
  %2267 = vmatprep.subr.bf16.mxu0 %v501
  %2268 = vmatpush1.bf16.msra.mxu0 %v500
  %2269 = vmatprep.subr.bf16.mxu0 %v505
  %2270 = vmatpush1.bf16.msra.mxu0 %v504
  %2271 = vmatprep.subr.bf16.mxu0 %v509
  %2272 = vmatpush1.bf16.msra.mxu0 %v508
  %2273 = vmatprep.subr.bf16.mxu0 %v513
  %2274 = vmatpush1.bf16.msra.mxu0 %v512
  %2275 = vmatprep.subr.bf16.mxu0 %v517
  %2276 = vmatpush1.bf16.msra.mxu0 %v516
  %2277 = vmatprep.subr.bf16.mxu0 %v521
  %2278 = vmatpush1.bf16.msra.mxu0 %v520
  %2279 = vmatprep.subr.bf16.mxu0 %v525
  %2280 = vmatpush1.bf16.msra.mxu0 %v524
  %2281 = vmatprep.subr.bf16.mxu0 %v529
  %2282 = vmatpush1.bf16.msra.mxu0 %v528
  %2283 = vmatprep.subr.bf16.mxu0 0
  %2284 = vmatpush1.bf16.msra.mxu0 0
  %2285 = vmatprep.subr.bf16.mxu0 0
  %2286 = vmatpush1.bf16.msra.mxu0 0
  %2287 = vmatprep.subr.bf16.mxu0 0
  %2288 = vmatpush1.bf16.msra.mxu0 0
  %2289 = vmatprep.subr.bf16.mxu0 0
  %2290 = vmatpush1.bf16.msra.mxu0 0
  %2291 = vmatprep.subr.bf16.mxu0 0
  %2292 = vmatpush1.bf16.msra.mxu0 0
  %2293 = vmatprep.subr.bf16.mxu0 0
  %2294 = vmatpush1.bf16.msra.mxu0 0
  %2295 = vmatprep.subr.bf16.mxu0 0
  %2296 = vmatpush1.bf16.msra.mxu0 0
  %2297 = vmatprep.subr.bf16.mxu0 0
  %2298 = vmatpush1.bf16.msra.mxu0 0
  %2299 = vmatprep.mubr.bf16.mxu0 0
  %2300 = vmatmul.mubr.bf16.gmra.mrb[0].mxu0 %v2266
  %v2301 = vpop.f32.mrb[0].mxu0
  %v2302 = vadd.f32 0.0, %v2301
  %v2303 = vpop.f32.mrb[0].mxu0
  %v2304 = vadd.f32 0.0, %v2303
  %v2305 = vpop.f32.mrb[0].mxu0
  %v2306 = vpop.f32.mrb[0].mxu0
  %2307 = vdwg.mxu0
  %2308 = vmatprep.subr.bf16.mxu0 %v503
  %2309 = vmatpush1.bf16.msra.mxu0 %v502
  %2310 = vmatprep.subr.bf16.mxu0 %v507
  %2311 = vmatpush1.bf16.msra.mxu0 %v506
  %2312 = vmatprep.subr.bf16.mxu0 %v511
  %2313 = vmatpush1.bf16.msra.mxu0 %v510
  %2314 = vmatprep.subr.bf16.mxu0 %v515
  %2315 = vmatpush1.bf16.msra.mxu0 %v514
  %2316 = vmatprep.subr.bf16.mxu0 %v519
  %2317 = vmatpush1.bf16.msra.mxu0 %v518
  %2318 = vmatprep.subr.bf16.mxu0 %v523
  %2319 = vmatpush1.bf16.msra.mxu0 %v522
  %2320 = vmatprep.subr.bf16.mxu0 %v527
  %2321 = vmatpush1.bf16.msra.mxu0 %v526
  %2322 = vmatprep.subr.bf16.mxu0 %v531
  %2323 = vmatpush1.bf16.msra.mxu0 %v530
  %2324 = vmatprep.subr.bf16.mxu0 0
  %2325 = vmatpush1.bf16.msra.mxu0 0
  %2326 = vmatprep.subr.bf16.mxu0 0
  %2327 = vmatpush1.bf16.msra.mxu0 0
  %2328 = vmatprep.subr.bf16.mxu0 0
  %2329 = vmatpush1.bf16.msra.mxu0 0
  %2330 = vmatprep.subr.bf16.mxu0 0
  %2331 = vmatpush1.bf16.msra.mxu0 0
  %2332 = vmatprep.subr.bf16.mxu0 0
  %2333 = vmatpush1.bf16.msra.mxu0 0
  %2334 = vmatprep.subr.bf16.mxu0 0
  %2335 = vmatpush1.bf16.msra.mxu0 0
  %2336 = vmatprep.subr.bf16.mxu0 0
  %2337 = vmatpush1.bf16.msra.mxu0 0
  %2338 = vmatprep.subr.bf16.mxu0 0
  %2339 = vmatpush1.bf16.msra.mxu0 0
  %2340 = vmatprep.mubr.bf16.mxu0 0
  %2341 = vmatmul.mubr.bf16.gmra.mrb[0].mxu0 %v2266
  %v2342 = vpop.f32.mrb[0].mxu0
  %v2343 = vadd.f32 0.0, %v2342
  %v2344 = vpop.f32.mrb[0].mxu0
  %v2345 = vadd.f32 0.0, %v2344
  %v2346 = vpop.f32.mrb[0].mxu0
  %v2347 = vpop.f32.mrb[0].mxu0
  %2348 = vdwg.mxu0
  %v2353 = vcombine.low %v2302, %v2304
  %v2354 = vcombine.low %v2343, %v2345
  %v2356 = vunpack.c.l.s4 1983009808
  %v2357 = vunpack.c.0.s8 %v2356
  %v2358 = vlaneseq
  %v2359 = vshrl.u32 %v2358, 7
  %v2360 = vsub.s32 %v2357, %v2359
  %v2361 = vrot.slane %v2353, %v2360
  %v2363 = vunpack.c.l.s4 1983009808
  %v2364 = vunpack.c.0.s8 %v2363
  %v2365 = vlaneseq
  %v2366 = vshrl.u32 %v2365, 7
  %v2367 = vsub.s32 %v2364, %v2366
  %v2368 = vrot.slane %v2354, %v2367
  %v2369 = vcombine.low %v2361, %v2368
  %v2371 = vadd.f32 %v2265, %v2369
  %v2372 = vxor.u32 %v2262, 2147483648
  %v2373 = vmul.f32 %v2372, 1.442695
  %v2374 = vpow.pop %v2373
  %v2375 = vadd.f32 %v2374, 1.0
  %v2376 = vrcp.pop %v2375
  %v2377 = vmul.f32 1.0, %v2376
  %v2379 = vrot.slane %v2262, 2
  %v2381 = vxor.u32 %v2379, 2147483648
  %v2382 = vmul.f32 %v2381, 1.442695
  %v2383 = vpow.pop %v2382
  %v2384 = vadd.f32 %v2383, 1.0
  %v2385 = vrcp.pop %v2384
  %v2386 = vmul.f32 1.0, %v2385
  %v2387 = vrot.slane %v2262, 4
  %v2389 = vtanh.pop %v2387
  %v2390 = vrot.slane %v2262, 6
  %v2392 = vxor.u32 %v2390, 2147483648
  %v2393 = vmul.f32 %v2392, 1.442695
  %v2394 = vpow.pop %v2393
  %v2395 = vadd.f32 %v2394, 1.0
  %v2396 = vrcp.pop %v2395
  %v2397 = vmul.f32 1.0, %v2396
  %v2398 = vmul.f32 %v2386, %v2116
  %v2399 = vmul.f32 %v2377, %v2389
  %v2400 = vadd.f32 %v2398, %v2399
  %v2401 = vtanh.pop %v2400
  %v2402 = vmul.f32 %v2397, %v2401
  %v2403 = vxor.u32 %v2371, 2147483648
  %v2404 = vmul.f32 %v2403, 1.442695
  %v2405 = vpow.pop %v2404
  %v2406 = vadd.f32 %v2405, 1.0
  %v2407 = vrcp.pop %v2406
  %v2408 = vmul.f32 1.0, %v2407
  %v2410 = vrot.slane %v2371, 2
  %v2412 = vxor.u32 %v2410, 2147483648
  %v2413 = vmul.f32 %v2412, 1.442695
  %v2414 = vpow.pop %v2413
  %v2415 = vadd.f32 %v2414, 1.0
  %v2416 = vrcp.pop %v2415
  %v2417 = vmul.f32 1.0, %v2416
  %v2418 = vrot.slane %v2371, 4
  %v2420 = vtanh.pop %v2418
  %v2421 = vrot.slane %v2371, 6
  %v2423 = vxor.u32 %v2421, 2147483648
  %v2424 = vmul.f32 %v2423, 1.442695
  %v2425 = vpow.pop %v2424
  %v2426 = vadd.f32 %v2425, 1.0
  %v2427 = vrcp.pop %v2426
  %v2428 = vmul.f32 1.0, %v2427
  %v2429 = vmul.f32 %v2417, %v2147
  %v2430 = vmul.f32 %v2408, %v2420
  %v2431 = vadd.f32 %v2429, %v2430
  %v2432 = vtanh.pop %v2431
  %v2433 = vmul.f32 %v2428, %v2432
  %s2434 = scalar_lea.vmem %s3, 12
  %2435 = vst [vmem:[%s2434] sm:$0x3] %v2402
  %s2436 = scalar_lea.vmem %s49, 2
  %2437 = vst [vmem:[%s2436] sm:$0x3] %v2433
  %s2438 = scalar_lea.vmem %s0, 28
  %v2439 = vld [vmem:[%s2438] sm:$0xf]
  %v2440 = vunpack.c.l.bf16 %v2439
  %v2441 = vpack.c.bf16 %v2402, %v2402
  %2442 = vmatprep.subr.bf16.mxu0 %v232
  %2443 = vmatpush1.bf16.msra.mxu0 %v231
  %2444 = vmatprep.subr.bf16.mxu0 %v236
  %2445 = vmatpush1.bf16.msra.mxu0 %v235
  %2446 = vmatprep.subr.bf16.mxu0 %v240
  %2447 = vmatpush1.bf16.msra.mxu0 %v239
  %2448 = vmatprep.subr.bf16.mxu0 %v244
  %2449 = vmatpush1.bf16.msra.mxu0 %v243
  %2450 = vmatprep.subr.bf16.mxu0 %v248
  %2451 = vmatpush1.bf16.msra.mxu0 %v247
  %2452 = vmatprep.subr.bf16.mxu0 %v252
  %2453 = vmatpush1.bf16.msra.mxu0 %v251
  %2454 = vmatprep.subr.bf16.mxu0 %v256
  %2455 = vmatpush1.bf16.msra.mxu0 %v255
  %2456 = vmatprep.subr.bf16.mxu0 %v260
  %2457 = vmatpush1.bf16.msra.mxu0 %v259
  %2458 = vmatprep.subr.bf16.mxu0 0
  %2459 = vmatpush1.bf16.msra.mxu0 0
  %2460 = vmatprep.subr.bf16.mxu0 0
  %2461 = vmatpush1.bf16.msra.mxu0 0
  %2462 = vmatprep.subr.bf16.mxu0 0
  %2463 = vmatpush1.bf16.msra.mxu0 0
  %2464 = vmatprep.subr.bf16.mxu0 0
  %2465 = vmatpush1.bf16.msra.mxu0 0
  %2466 = vmatprep.subr.bf16.mxu0 0
  %2467 = vmatpush1.bf16.msra.mxu0 0
  %2468 = vmatprep.subr.bf16.mxu0 0
  %2469 = vmatpush1.bf16.msra.mxu0 0
  %2470 = vmatprep.subr.bf16.mxu0 0
  %2471 = vmatpush1.bf16.msra.mxu0 0
  %2472 = vmatprep.subr.bf16.mxu0 0
  %2473 = vmatpush1.bf16.msra.mxu0 0
  %2474 = vmatprep.mubr.bf16.mxu0 0
  %2475 = vmatmul.mubr.bf16.gmra.mrb[0].mxu0 %v2441
  %v2476 = vpop.f32.mrb[0].mxu0
  %v2477 = vadd.f32 0.0, %v2476
  %v2478 = vpop.f32.mrb[0].mxu0
  %v2479 = vadd.f32 0.0, %v2478
  %v2480 = vpop.f32.mrb[0].mxu0
  %v2481 = vpop.f32.mrb[0].mxu0
  %2482 = vdwg.mxu0
  %2483 = vmatprep.subr.bf16.mxu0 %v234
  %2484 = vmatpush1.bf16.msra.mxu0 %v233
  %2485 = vmatprep.subr.bf16.mxu0 %v238
  %2486 = vmatpush1.bf16.msra.mxu0 %v237
  %2487 = vmatprep.subr.bf16.mxu0 %v242
  %2488 = vmatpush1.bf16.msra.mxu0 %v241
  %2489 = vmatprep.subr.bf16.mxu0 %v246
  %2490 = vmatpush1.bf16.msra.mxu0 %v245
  %2491 = vmatprep.subr.bf16.mxu0 %v250
  %2492 = vmatpush1.bf16.msra.mxu0 %v249
  %2493 = vmatprep.subr.bf16.mxu0 %v254
  %2494 = vmatpush1.bf16.msra.mxu0 %v253
  %2495 = vmatprep.subr.bf16.mxu0 %v258
  %2496 = vmatpush1.bf16.msra.mxu0 %v257
  %2497 = vmatprep.subr.bf16.mxu0 %v262
  %2498 = vmatpush1.bf16.msra.mxu0 %v261
  %2499 = vmatprep.subr.bf16.mxu0 0
  %2500 = vmatpush1.bf16.msra.mxu0 0
  %2501 = vmatprep.subr.bf16.mxu0 0
  %2502 = vmatpush1.bf16.msra.mxu0 0
  %2503 = vmatprep.subr.bf16.mxu0 0
  %2504 = vmatpush1.bf16.msra.mxu0 0
  %2505 = vmatprep.subr.bf16.mxu0 0
  %2506 = vmatpush1.bf16.msra.mxu0 0
  %2507 = vmatprep.subr.bf16.mxu0 0
  %2508 = vmatpush1.bf16.msra.mxu0 0
  %2509 = vmatprep.subr.bf16.mxu0 0
  %2510 = vmatpush1.bf16.msra.mxu0 0
  %2511 = vmatprep.subr.bf16.mxu0 0
  %2512 = vmatpush1.bf16.msra.mxu0 0
  %2513 = vmatprep.subr.bf16.mxu0 0
  %2514 = vmatpush1.bf16.msra.mxu0 0
  %2515 = vmatprep.mubr.bf16.mxu0 0
  %2516 = vmatmul.mubr.bf16.gmra.mrb[0].mxu0 %v2441
  %v2517 = vpop.f32.mrb[0].mxu0
  %v2518 = vadd.f32 0.0, %v2517
  %v2519 = vpop.f32.mrb[0].mxu0
  %v2520 = vadd.f32 0.0, %v2519
  %v2521 = vpop.f32.mrb[0].mxu0
  %v2522 = vpop.f32.mrb[0].mxu0
  %2523 = vdwg.mxu0
  %v2528 = vcombine.low %v2477, %v2479
  %v2529 = vcombine.low %v2518, %v2520
  %v2531 = vunpack.c.l.s4 1983009808
  %v2532 = vunpack.c.0.s8 %v2531
  %v2533 = vlaneseq
  %v2534 = vshrl.u32 %v2533, 7
  %v2535 = vsub.s32 %v2532, %v2534
  %v2536 = vrot.slane %v2528, %v2535
  %v2538 = vunpack.c.l.s4 1983009808
  %v2539 = vunpack.c.0.s8 %v2538
  %v2540 = vlaneseq
  %v2541 = vshrl.u32 %v2540, 7
  %v2542 = vsub.s32 %v2539, %v2541
  %v2543 = vrot.slane %v2529, %v2542
  %v2544 = vcombine.low %v2536, %v2543
  %v2546 = vadd.f32 %v2440, %v2544
  %v2547 = vld [vmem:[%s41] sm:$0xf]
  %v2548 = vunpack.c.l.bf16 %v2547
  %v2549 = vpack.c.bf16 %v2433, %v2433
  %2550 = vmatprep.subr.bf16.mxu0 %v501
  %2551 = vmatpush1.bf16.msra.mxu0 %v500
  %2552 = vmatprep.subr.bf16.mxu0 %v505
  %2553 = vmatpush1.bf16.msra.mxu0 %v504
  %2554 = vmatprep.subr.bf16.mxu0 %v509
  %2555 = vmatpush1.bf16.msra.mxu0 %v508
  %2556 = vmatprep.subr.bf16.mxu0 %v513
  %2557 = vmatpush1.bf16.msra.mxu0 %v512
  %2558 = vmatprep.subr.bf16.mxu0 %v517
  %2559 = vmatpush1.bf16.msra.mxu0 %v516
  %2560 = vmatprep.subr.bf16.mxu0 %v521
  %2561 = vmatpush1.bf16.msra.mxu0 %v520
  %2562 = vmatprep.subr.bf16.mxu0 %v525
  %2563 = vmatpush1.bf16.msra.mxu0 %v524
  %2564 = vmatprep.subr.bf16.mxu0 %v529
  %2565 = vmatpush1.bf16.msra.mxu0 %v528
  %2566 = vmatprep.subr.bf16.mxu0 0
  %2567 = vmatpush1.bf16.msra.mxu0 0
  %2568 = vmatprep.subr.bf16.mxu0 0
  %2569 = vmatpush1.bf16.msra.mxu0 0
  %2570 = vmatprep.subr.bf16.mxu0 0
  %2571 = vmatpush1.bf16.msra.mxu0 0
  %2572 = vmatprep.subr.bf16.mxu0 0
  %2573 = vmatpush1.bf16.msra.mxu0 0
  %2574 = vmatprep.subr.bf16.mxu0 0
  %2575 = vmatpush1.bf16.msra.mxu0 0
  %2576 = vmatprep.subr.bf16.mxu0 0
  %2577 = vmatpush1.bf16.msra.mxu0 0
  %2578 = vmatprep.subr.bf16.mxu0 0
  %2579 = vmatpush1.bf16.msra.mxu0 0
  %2580 = vmatprep.subr.bf16.mxu0 0
  %2581 = vmatpush1.bf16.msra.mxu0 0
  %2582 = vmatprep.mubr.bf16.mxu0 0
  %2583 = vmatmul.mubr.bf16.gmra.mrb[0].mxu0 %v2549
  %v2584 = vpop.f32.mrb[0].mxu0
  %v2585 = vadd.f32 0.0, %v2584
  %v2586 = vpop.f32.mrb[0].mxu0
  %v2587 = vadd.f32 0.0, %v2586
  %v2588 = vpop.f32.mrb[0].mxu0
  %v2589 = vpop.f32.mrb[0].mxu0
  %2590 = vdwg.mxu0
  %2591 = vmatprep.subr.bf16.mxu0 %v503
  %2592 = vmatpush1.bf16.msra.mxu0 %v502
  %2593 = vmatprep.subr.bf16.mxu0 %v507
  %2594 = vmatpush1.bf16.msra.mxu0 %v506
  %2595 = vmatprep.subr.bf16.mxu0 %v511
  %2596 = vmatpush1.bf16.msra.mxu0 %v510
  %2597 = vmatprep.subr.bf16.mxu0 %v515
  %2598 = vmatpush1.bf16.msra.mxu0 %v514
  %2599 = vmatprep.subr.bf16.mxu0 %v519
  %2600 = vmatpush1.bf16.msra.mxu0 %v518
  %2601 = vmatprep.subr.bf16.mxu0 %v523
  %2602 = vmatpush1.bf16.msra.mxu0 %v522
  %2603 = vmatprep.subr.bf16.mxu0 %v527
  %2604 = vmatpush1.bf16.msra.mxu0 %v526
  %2605 = vmatprep.subr.bf16.mxu0 %v531
  %2606 = vmatpush1.bf16.msra.mxu0 %v530
  %2607 = vmatprep.subr.bf16.mxu0 0
  %2608 = vmatpush1.bf16.msra.mxu0 0
  %2609 = vmatprep.subr.bf16.mxu0 0
  %2610 = vmatpush1.bf16.msra.mxu0 0
  %2611 = vmatprep.subr.bf16.mxu0 0
  %2612 = vmatpush1.bf16.msra.mxu0 0
  %2613 = vmatprep.subr.bf16.mxu0 0
  %2614 = vmatpush1.bf16.msra.mxu0 0
  %2615 = vmatprep.subr.bf16.mxu0 0
  %2616 = vmatpush1.bf16.msra.mxu0 0
  %2617 = vmatprep.subr.bf16.mxu0 0
  %2618 = vmatpush1.bf16.msra.mxu0 0
  %2619 = vmatprep.subr.bf16.mxu0 0
  %2620 = vmatpush1.bf16.msra.mxu0 0
  %2621 = vmatprep.subr.bf16.mxu0 0
  %2622 = vmatpush1.bf16.msra.mxu0 0
  %2623 = vmatprep.mubr.bf16.mxu0 0
  %2624 = vmatmul.mubr.bf16.gmra.mrb[0].mxu0 %v2549
  %v2625 = vpop.f32.mrb[0].mxu0
  %v2626 = vadd.f32 0.0, %v2625
  %v2627 = vpop.f32.mrb[0].mxu0
  %v2628 = vadd.f32 0.0, %v2627
  %v2629 = vpop.f32.mrb[0].mxu0
  %v2630 = vpop.f32.mrb[0].mxu0
  %2631 = vdwg.mxu0
  %v2636 = vcombine.low %v2585, %v2587
  %v2637 = vcombine.low %v2626, %v2628
  %v2639 = vunpack.c.l.s4 1983009808
  %v2640 = vunpack.c.0.s8 %v2639
  %v2641 = vlaneseq
  %v2642 = vshrl.u32 %v2641, 7
  %v2643 = vsub.s32 %v2640, %v2642
  %v2644 = vrot.slane %v2636, %v2643
  %v2646 = vunpack.c.l.s4 1983009808
  %v2647 = vunpack.c.0.s8 %v2646
  %v2648 = vlaneseq
  %v2649 = vshrl.u32 %v2648, 7
  %v2650 = vsub.s32 %v2647, %v2649
  %v2651 = vrot.slane %v2637, %v2650
  %v2652 = vcombine.low %v2644, %v2651
  %v2654 = vadd.f32 %v2548, %v2652
  %v2655 = vxor.u32 %v2546, 2147483648
  %v2656 = vmul.f32 %v2655, 1.442695
  %v2657 = vpow.pop %v2656
  %v2658 = vadd.f32 %v2657, 1.0
  %v2659 = vrcp.pop %v2658
  %v2660 = vmul.f32 1.0, %v2659
  %v2662 = vrot.slane %v2546, 2
  %v2664 = vxor.u32 %v2662, 2147483648
  %v2665 = vmul.f32 %v2664, 1.442695
  %v2666 = vpow.pop %v2665
  %v2667 = vadd.f32 %v2666, 1.0
  %v2668 = vrcp.pop %v2667
  %v2669 = vmul.f32 1.0, %v2668
  %v2670 = vrot.slane %v2546, 4
  %v2672 = vtanh.pop %v2670
  %v2673 = vrot.slane %v2546, 6
  %v2675 = vxor.u32 %v2673, 2147483648
  %v2676 = vmul.f32 %v2675, 1.442695
  %v2677 = vpow.pop %v2676
  %v2678 = vadd.f32 %v2677, 1.0
  %v2679 = vrcp.pop %v2678
  %v2680 = vmul.f32 1.0, %v2679
  %v2681 = vmul.f32 %v2669, %v2400
  %v2682 = vmul.f32 %v2660, %v2672
  %v2683 = vadd.f32 %v2681, %v2682
  %v2684 = vtanh.pop %v2683
  %v2685 = vmul.f32 %v2680, %v2684
  %v2686 = vxor.u32 %v2654, 2147483648
  %v2687 = vmul.f32 %v2686, 1.442695
  %v2688 = vpow.pop %v2687
  %v2689 = vadd.f32 %v2688, 1.0
  %v2690 = vrcp.pop %v2689
  %v2691 = vmul.f32 1.0, %v2690
  %v2693 = vrot.slane %v2654, 2
  %v2695 = vxor.u32 %v2693, 2147483648
  %v2696 = vmul.f32 %v2695, 1.442695
  %v2697 = vpow.pop %v2696
  %v2698 = vadd.f32 %v2697, 1.0
  %v2699 = vrcp.pop %v2698
  %v2700 = vmul.f32 1.0, %v2699
  %v2701 = vrot.slane %v2654, 4
  %v2703 = vtanh.pop %v2701
  %v2704 = vrot.slane %v2654, 6
  %v2706 = vxor.u32 %v2704, 2147483648
  %v2707 = vmul.f32 %v2706, 1.442695
  %v2708 = vpow.pop %v2707
  %v2709 = vadd.f32 %v2708, 1.0
  %v2710 = vrcp.pop %v2709
  %v2711 = vmul.f32 1.0, %v2710
  %v2712 = vmul.f32 %v2700, %v2431
  %v2713 = vmul.f32 %v2691, %v2703
  %v2714 = vadd.f32 %v2712, %v2713
  %v2715 = vtanh.pop %v2714
  %v2716 = vmul.f32 %v2711, %v2715
  %s2717 = scalar_lea.vmem %s3, 14
  %2718 = vst [vmem:[%s2717] sm:$0x3] %v2685
  %2719 = vst [vmem:[%s49] sm:$0x3] %v2716
  %2720 = vst [vmem:[#allocation2] sm:$0x3] %v2685
  %2721 = vst [vmem:[#allocation3] sm:$0x3] %v2683
  %2722 = vst [vmem:[%s128] sm:$0x3] %v2716
  %2723 = vst [vmem:[%s130] sm:$0x3] %v2714
  %s2724 = ssub.s32 0, 0
  %s2725 = smul.u32 8, %s2724
  %p2726 = scmp.lt.s32.totalorder %s2725, 7
  %s2727 = scalar_select %p2726, %s2725, 7
  %s2728 = smul.addr %s2727, 2
  %s2729 = scalar_lea.vmem %s4, %s2728
  // Predicated region
  $region18: #{encoder_forward.3} parent=0 // pred_check
    _
  $region19: #{encoder_forward.3} parent=0 // pred_check_branch
    %2731 = sbr.rel (0) target = $region21
  $region20: #{encoder_forward.3} parent=0 // pred_region
    _
  $region21: #{encoder_forward.3} parent=0 // pred_fallthru
    _
  // Predicated region
  $region22: #{encoder_forward.3} parent=0 // pred_check
    _
  $region23: #{encoder_forward.3} parent=0 // pred_check_branch
    %2733 = sbr.rel (0) target = $region25
  $region24: #{encoder_forward.3} parent=0 // pred_region
    %s2734 = ssub.s32 0, 0
    %s2735 = smul.u32 8, %s2734
  $region25: #{encoder_forward.3} parent=0 // pred_fallthru
    _
  // Predicated region
  $region26: #{encoder_forward.3} parent=0 // pred_check
    _
  $region27: #{encoder_forward.3} parent=0 // pred_check_branch
    %2737 = sbr.rel (0) target = $region29
  $region28: #{encoder_forward.3} parent=0 // pred_region
    _
  $region29: #{encoder_forward.3} parent=0 // pred_fallthru
    _
  // Predicated region
  $region30: #{encoder_forward.3} parent=0 // pred_check
    _
  $region31: #{encoder_forward.3} parent=0 // pred_check_branch
    %2739 = sbr.rel (0) target = $region33
  $region32: #{encoder_forward.3} parent=0 // pred_region
    %s2740 = ssub.s32 0, 0
    %s2741 = smul.u32 8, %s2740
    %p2742 = scmp.lt.s32.totalorder %s2741, 7
    %s2743 = scalar_select %p2742, %s2741, 7
    %s2744 = smul.addr %s2743, 2
    %s2745 = scalar_lea.vmem %s4, %s2744
  $region33: #{encoder_forward.3} parent=0 // pred_fallthru
    _

</llo_original>
